<compile_context>
chip_gen: v6e
topology: v6e:2x2x1
jax: 0.10.0
libtpu: 0.0.40
codegen_flags: <defaults>
</compile_context>

<pallas_src>
import jax
import jax.numpy as jnp
from jax import lax
from jax.experimental import pallas as pl
from jax.experimental.pallas import tpu as pltpu


def lstm_tagger_kernel(idx_ref, emb_ref, w_ih_t_ref, w_hh_t_ref, b_ref,
                       w_out_t_ref, b_out_ref, out_ref,
                       gih_sc, hseq_sc, h_sc, c_sc):
    """Single-invocation kernel: sequential LSTM over the sentence.

    idx_ref     : VMEM (S, 1)      int32   token ids
    emb_ref     : VMEM (V, E)      f32     embedding table
    w_ih_t_ref  : VMEM (E, 4*Hp)   f32     W_ih^T, gate-padded (PyTorch order i,f,g,o)
    w_hh_t_ref  : VMEM (Hp, 4*Hp)  f32     W_hh^T, gate-padded
    b_ref       : VMEM (1, 4*Hp)   f32     b_ih + b_hh, gate-padded
    w_out_t_ref : VMEM (Hp, T)     f32     hidden2tag weight^T, row-padded
    b_out_ref   : VMEM (1, T)      f32     hidden2tag bias
    out_ref     : VMEM (S, T)      f32     log_softmax(tag_space)
    gih_sc      : VMEM (S, 4*Hp)   f32     precomputed input-to-hidden gates
    hseq_sc     : VMEM (S, Hp)     f32     per-step hidden states
    h_sc, c_sc  : VMEM (1, Hp)     f32     recurrent state scratch
    """
    seq_len = out_ref.shape[0]
    vocab = emb_ref.shape[0]
    hp = h_sc.shape[1]

    # ---- Embedding lookup for the whole sentence as one MXU matmul -------
    ids = idx_ref[...]                                          # (S, 1) int32
    vocab_iota = lax.broadcasted_iota(jnp.int32, (seq_len, vocab), 1)
    one_hot = (vocab_iota == ids).astype(jnp.float32)           # (S, V)
    x = jnp.dot(one_hot, emb_ref[...],
                preferred_element_type=jnp.float32)             # (S, E)

    # ---- Hoisted input-to-hidden gate pre-activations + fused bias -------
    gih_sc[...] = jnp.dot(x, w_ih_t_ref[...],
                          preferred_element_type=jnp.float32) + b_ref[...]

    # h_0 = c_0 = 0 (PyTorch default when no initial state is passed).
    h_sc[...] = jnp.zeros_like(h_sc)
    c_sc[...] = jnp.zeros_like(c_sc)

    def step(t, carry):
        del carry
        # Only the recurrent matmul stays on the serial critical path.
        gates = (jnp.dot(h_sc[...], w_hh_t_ref[...],
                         preferred_element_type=jnp.float32)
                 + gih_sc[pl.ds(t, 1), :])                      # (1, 4*Hp)

        # Each gate slice is a full 128-lane-aligned chunk (no masked selects).
        i_g = jax.nn.sigmoid(gates[:, 0 * hp:1 * hp])
        f_g = jax.nn.sigmoid(gates[:, 1 * hp:2 * hp])
        g_g = jnp.tanh(gates[:, 2 * hp:3 * hp])
        o_g = jax.nn.sigmoid(gates[:, 3 * hp:4 * hp])

        c_new = f_g * c_sc[...] + i_g * g_g
        h_new = o_g * jnp.tanh(c_new)
        c_sc[...] = c_new
        h_sc[...] = h_new
        hseq_sc[pl.ds(t, 1), :] = h_new
        return 0

    # Fully unroll the (static, short) recurrence for cross-step scheduling.
    lax.fori_loop(0, seq_len, step, 0, unroll=True)

    # ---- Hoisted output projection + batched log_softmax, single store ---
    tag = (jnp.dot(hseq_sc[...], w_out_t_ref[...],
                   preferred_element_type=jnp.float32)
           + b_out_ref[...])                                    # (S, T)
    m = jnp.max(tag, axis=-1, keepdims=True)
    z = tag - m
    lse = jnp.log(jnp.sum(jnp.exp(z), axis=-1, keepdims=True))
    out_ref[...] = z - lse


def _round_up(n, m):
    return ((n + m - 1) // m) * m


def lstm_tagger_forward(sentence, params):
    """Wrapper: prepares (gate-padded, transposed) parameters and calls the kernel."""
    emb = params["emb"]
    w_ih, w_hh = params["w_ih"], params["w_hh"]
    b_ih, b_hh = params["b_ih"], params["b_hh"]
    w_out, b_out = params["w_out"], params["b_out"]

    seq_len = sentence.shape[0]
    hidden = w_hh.shape[1]
    tagset = w_out.shape[0]
    hp = _round_up(hidden, 128)           # per-gate lane-aligned hidden width

    def pad_gate_rows(w):
        # (4H, K) -> (4*Hp, K): pad each gate's row block from H to Hp rows.
        w4 = w.reshape(4, hidden, w.shape[1]).astype(jnp.float32)
        return jnp.pad(w4, ((0, 0), (0, hp - hidden), (0, 0))).reshape(4 * hp, -1)

    # Glue: gate-pad, pre-transpose and fold biases so the kernel does plain
    # row-major matmuls on the MXU with lane-aligned gate slices.
    w_ih_t = jnp.transpose(pad_gate_rows(w_ih))                     # (E, 4*Hp)
    w_hh_pad = jnp.pad(pad_gate_rows(w_hh), ((0, 0), (0, hp - hidden)))
    w_hh_t = jnp.transpose(w_hh_pad)                                # (Hp, 4*Hp)
    b4 = (b_ih + b_hh).reshape(4, hidden).astype(jnp.float32)
    b = jnp.pad(b4, ((0, 0), (0, hp - hidden))).reshape(1, 4 * hp)  # (1, 4*Hp)
    w_out_t = jnp.transpose(
        jnp.pad(w_out.astype(jnp.float32), ((0, 0), (0, hp - hidden))))  # (Hp, T)
    b_out2 = b_out.reshape(1, -1).astype(jnp.float32)               # (1, T)

    idx = sentence.reshape(seq_len, 1).astype(jnp.int32)

    vmem = pl.BlockSpec(memory_space=pltpu.MemorySpace.VMEM)
    return pl.pallas_call(
        lstm_tagger_kernel,
        out_shape=jax.ShapeDtypeStruct((seq_len, tagset), jnp.float32),
        in_specs=[vmem,    # token ids (S, 1)
                  vmem,    # embedding table (V, E)
                  vmem,    # W_ih^T (E, 4*Hp)
                  vmem,    # W_hh^T (Hp, 4*Hp)
                  vmem,    # fused LSTM bias (1, 4*Hp)
                  vmem,    # W_out^T (Hp, T)
                  vmem],   # b_out (1, T)
        out_specs=vmem,
        scratch_shapes=[pltpu.VMEM((seq_len, 4 * hp), jnp.float32),  # gates_ih
                        pltpu.VMEM((seq_len, hp), jnp.float32),      # h sequence
                        pltpu.VMEM((1, hp), jnp.float32),            # h_t
                        pltpu.VMEM((1, hp), jnp.float32)],           # c_t
    )(idx, emb.astype(jnp.float32), w_ih_t, w_hh_t, b, w_out_t, b_out2)


def lstm_tagger_reference(sentence, params):
    """Pure-JAX reference mirroring the PyTorch forward pass."""
    emb = params["emb"][sentence]                              # (S, E)
    w_ih, w_hh = params["w_ih"], params["w_hh"]
    b = params["b_ih"] + params["b_hh"]
    hidden = w_hh.shape[1]

    def step(carry, x_t):
        h, c = carry
        gates = x_t @ w_ih.T + h @ w_hh.T + b
        i_g = jax.nn.sigmoid(gates[0 * hidden:1 * hidden])
        f_g = jax.nn.sigmoid(gates[1 * hidden:2 * hidden])
        g_g = jnp.tanh(gates[2 * hidden:3 * hidden])
        o_g = jax.nn.sigmoid(gates[3 * hidden:4 * hidden])
        c_new = f_g * c + i_g * g_g
        h_new = o_g * jnp.tanh(c_new)
        return (h_new, c_new), h_new

    h0 = jnp.zeros((hidden,), jnp.float32)
    _, lstm_out = lax.scan(step, (h0, h0), emb)                # (S, H)
    tag_space = lstm_out @ params["w_out"].T + params["b_out"]  # (S, T)
    return jax.nn.log_softmax(tag_space, axis=1)


def init_params(key, embedding_dim, hidden_dim, vocab_size, tagset_size):
    """Deterministic synthetic parameters (shapes follow nn.Embedding/LSTM/Linear)."""
    ks = jax.random.split(key, 7)
    k_lstm = 1.0 / jnp.sqrt(hidden_dim)
    k_lin = 1.0 / jnp.sqrt(hidden_dim)
    u = lambda k, shape, s: jax.random.uniform(k, shape, jnp.float32, -s, s)
    return {
        "emb":   jax.random.normal(ks[0], (vocab_size, embedding_dim), jnp.float32),
        "w_ih":  u(ks[1], (4 * hidden_dim, embedding_dim), k_lstm),
        "w_hh":  u(ks[2], (4 * hidden_dim, hidden_dim), k_lstm),
        "b_ih":  u(ks[3], (4 * hidden_dim,), k_lstm),
        "b_hh":  u(ks[4], (4 * hidden_dim,), k_lstm),
        "w_out": u(ks[5], (tagset_size, hidden_dim), k_lin),
        "b_out": u(ks[6], (tagset_size,), k_lin),
    }


if __name__ == "__main__":
    EMBEDDING_DIM = 32
    HIDDEN_DIM = 32
    VOCAB_SIZE = 16
    TAGSET_SIZE = 8
    SEQ_LEN = 8

    key = jax.random.PRNGKey(0)
    k_params, k_sent = jax.random.split(key)
    params = init_params(k_params, EMBEDDING_DIM, HIDDEN_DIM,
                         VOCAB_SIZE, TAGSET_SIZE)
    sentence = jax.random.randint(k_sent, (SEQ_LEN,), 0, VOCAB_SIZE,
                                  dtype=jnp.int32)

    out = lstm_tagger_forward(sentence, params)
    out = jax.block_until_ready(out)

    ref = jax.block_until_ready(lstm_tagger_reference(sentence, params))
    assert out.shape == (SEQ_LEN, TAGSET_SIZE)
    assert jnp.allclose(out, ref, atol=2e-3, rtol=2e-3), (
        f"max abs err {jnp.max(jnp.abs(out - ref))}")

    print("KERNEL_OK")
</pallas_src>

<mosaic_0001>
module attributes {stable_mosaic.version = 11 : i64} {
  func.func @lstm_tagger_kernel(%arg0: memref<8x1xi32, #tpu.memory_space<vmem>>, %arg1: memref<16x32xf32, #tpu.memory_space<vmem>>, %arg2: memref<32x512xf32, #tpu.memory_space<vmem>>, %arg3: memref<128x512xf32, #tpu.memory_space<vmem>>, %arg4: memref<1x512xf32, #tpu.memory_space<vmem>>, %arg5: memref<128x8xf32, #tpu.memory_space<vmem>>, %arg6: memref<1x8xf32, #tpu.memory_space<vmem>>, %arg7: memref<8x8xf32, #tpu.memory_space<vmem>>, %arg8: memref<8x512xf32, #tpu.memory_space<vmem>>, %arg9: memref<8x128xf32, #tpu.memory_space<vmem>>, %arg10: memref<1x128xf32, #tpu.memory_space<vmem>>, %arg11: memref<1x128xf32, #tpu.memory_space<vmem>>) attributes {dimension_semantics = [], scalar_prefetch = 0 : i64, scratch_operands = 4 : i64, tpu.core_type = #tpu.core_type<tc>} {
    %c0 = arith.constant 0 : index
    %c0_0 = arith.constant 0 : index
    %0 = vector.load %arg0[%c0, %c0_0] : memref<8x1xi32, #tpu.memory_space<vmem>>, vector<8x1xi32>
    %1 = tpu.iota {dimensions = array<i32: 1>} : vector<8x16xi32>
    %2 = vector.broadcast %0 : vector<8x1xi32> to vector<8x16xi32>
    %3 = arith.cmpi eq, %1, %2 : vector<8x16xi32>
    %4 = arith.extui %3 : vector<8x16xi1> to vector<8x16xi32>
    %5 = arith.sitofp %4 : vector<8x16xi32> to vector<8x16xf32>
    %c0_1 = arith.constant 0 : index
    %c0_2 = arith.constant 0 : index
    %6 = vector.load %arg1[%c0_1, %c0_2] : memref<16x32xf32, #tpu.memory_space<vmem>>, vector<16x32xf32>
    %cst = arith.constant dense<0.000000e+00> : vector<8x32xf32>
    %7 = tpu.matmul %5, %6, %cst {dimension_numbers = #tpu.dot_dimension_numbers<[1], [0], [0], [1], [0, 0, 1, 1], [], []>} : vector<8x16xf32>, vector<16x32xf32>, vector<8x32xf32> -> vector<8x32xf32>
    %c0_3 = arith.constant 0 : index
    %c0_4 = arith.constant 0 : index
    %8 = vector.load %arg2[%c0_3, %c0_4] : memref<32x512xf32, #tpu.memory_space<vmem>>, vector<32x512xf32>
    %cst_5 = arith.constant dense<0.000000e+00> : vector<8x512xf32>
    %9 = tpu.matmul %7, %8, %cst_5 {dimension_numbers = #tpu.dot_dimension_numbers<[1], [0], [0], [1], [0, 0, 1, 1], [], []>} : vector<8x32xf32>, vector<32x512xf32>, vector<8x512xf32> -> vector<8x512xf32>
    %c0_6 = arith.constant 0 : index
    %c0_7 = arith.constant 0 : index
    %10 = vector.load %arg4[%c0_6, %c0_7] : memref<1x512xf32, #tpu.memory_space<vmem>>, vector<1x512xf32>
    %11 = vector.broadcast %10 : vector<1x512xf32> to vector<8x512xf32>
    %12 = arith.addf %9, %11 : vector<8x512xf32>
    %c0_8 = arith.constant 0 : index
    %c0_9 = arith.constant 0 : index
    %13 = vector.load %arg8[%c0_8, %c0_9] : memref<8x512xf32, #tpu.memory_space<vmem>>, vector<8x512xf32>
    tpu.vector_store %arg8[%c0_8, %c0_9], %12 {strides = array<i32>} : memref<8x512xf32, #tpu.memory_space<vmem>>, vector<8x512xf32>,
    %cst_10 = arith.constant 0.000000e+00 : f32
    %14 = vector.broadcast %cst_10 : f32 to vector<1x128xf32>
    %c0_11 = arith.constant 0 : index
    %c0_12 = arith.constant 0 : index
    %15 = vector.load %arg10[%c0_11, %c0_12] : memref<1x128xf32, #tpu.memory_space<vmem>>, vector<1x128xf32>
    tpu.vector_store %arg10[%c0_11, %c0_12], %14 {strides = array<i32>} : memref<1x128xf32, #tpu.memory_space<vmem>>, vector<1x128xf32>,
    %cst_13 = arith.constant 0.000000e+00 : f32
    %16 = vector.broadcast %cst_13 : f32 to vector<1x128xf32>
    %c0_14 = arith.constant 0 : index
    %c0_15 = arith.constant 0 : index
    %17 = vector.load %arg11[%c0_14, %c0_15] : memref<1x128xf32, #tpu.memory_space<vmem>>, vector<1x128xf32>
    tpu.vector_store %arg11[%c0_14, %c0_15], %16 {strides = array<i32>} : memref<1x128xf32, #tpu.memory_space<vmem>>, vector<1x128xf32>,
    %c0_i32 = arith.constant 0 : i32
    %c0_16 = arith.constant 0 : index
    %c0_17 = arith.constant 0 : index
    %18 = vector.load %arg10[%c0_16, %c0_17] : memref<1x128xf32, #tpu.memory_space<vmem>>, vector<1x128xf32>
    %c0_18 = arith.constant 0 : index
    %c0_19 = arith.constant 0 : index
    %19 = vector.load %arg3[%c0_18, %c0_19] : memref<128x512xf32, #tpu.memory_space<vmem>>, vector<128x512xf32>
    %cst_20 = arith.constant dense<0.000000e+00> : vector<1x512xf32>
    %20 = tpu.matmul %18, %19, %cst_20 {dimension_numbers = #tpu.dot_dimension_numbers<[1], [0], [0], [1], [0, 0, 1, 1], [], []>} : vector<1x128xf32>, vector<128x512xf32>, vector<1x512xf32> -> vector<1x512xf32>
    %21 = arith.index_cast %c0_i32 : i32 to index
    %c0_21 = arith.constant 0 : index
    %22 = vector.load %arg8[%21, %c0_21] : memref<8x512xf32, #tpu.memory_space<vmem>>, vector<1x512xf32>
    %23 = arith.addf %20, %22 : vector<1x512xf32>
    %24 = vector.extract_strided_slice %23 {offsets = [0, 0], sizes = [1, 128], strides = [1, 1]} : vector<1x512xf32> to vector<1x128xf32>
    %25 = arith.negf %24 : vector<1x128xf32>
    %26 = math.exp %25 : vector<1x128xf32>
    %cst_22 = arith.constant 1.000000e+00 : f32
    %27 = vector.broadcast %cst_22 : f32 to vector<1x128xf32>
    %28 = arith.addf %27, %26 : vector<1x128xf32>
    %29 = arith.divf %27, %28 : vector<1x128xf32>
    %30 = vector.extract_strided_slice %23 {offsets = [0, 128], sizes = [1, 128], strides = [1, 1]} : vector<1x512xf32> to vector<1x128xf32>
    %31 = arith.negf %30 : vector<1x128xf32>
    %32 = math.exp %31 : vector<1x128xf32>
    %cst_23 = arith.constant 1.000000e+00 : f32
    %33 = vector.broadcast %cst_23 : f32 to vector<1x128xf32>
    %34 = arith.addf %33, %32 : vector<1x128xf32>
    %35 = arith.divf %33, %34 : vector<1x128xf32>
    %36 = vector.extract_strided_slice %23 {offsets = [0, 256], sizes = [1, 128], strides = [1, 1]} : vector<1x512xf32> to vector<1x128xf32>
    %37 = math.tanh %36 : vector<1x128xf32>
    %38 = vector.extract_strided_slice %23 {offsets = [0, 384], sizes = [1, 128], strides = [1, 1]} : vector<1x512xf32> to vector<1x128xf32>
    %39 = arith.negf %38 : vector<1x128xf32>
    %40 = math.exp %39 : vector<1x128xf32>
    %cst_24 = arith.constant 1.000000e+00 : f32
    %41 = vector.broadcast %cst_24 : f32 to vector<1x128xf32>
    %42 = arith.addf %41, %40 : vector<1x128xf32>
    %43 = arith.divf %41, %42 : vector<1x128xf32>
    %c0_25 = arith.constant 0 : index
    %c0_26 = arith.constant 0 : index
    %44 = vector.load %arg11[%c0_25, %c0_26] : memref<1x128xf32, #tpu.memory_space<vmem>>, vector<1x128xf32>
    %45 = arith.mulf %35, %44 : vector<1x128xf32>
    %46 = arith.mulf %29, %37 : vector<1x128xf32>
    %47 = arith.addf %45, %46 : vector<1x128xf32>
    %48 = math.tanh %47 : vector<1x128xf32>
    %49 = arith.mulf %43, %48 : vector<1x128xf32>
    %c0_27 = arith.constant 0 : index
    %c0_28 = arith.constant 0 : index
    %50 = vector.load %arg11[%c0_27, %c0_28] : memref<1x128xf32, #tpu.memory_space<vmem>>, vector<1x128xf32>
    tpu.vector_store %arg11[%c0_27, %c0_28], %47 {strides = array<i32>} : memref<1x128xf32, #tpu.memory_space<vmem>>, vector<1x128xf32>,
    %c0_29 = arith.constant 0 : index
    %c0_30 = arith.constant 0 : index
    %51 = vector.load %arg10[%c0_29, %c0_30] : memref<1x128xf32, #tpu.memory_space<vmem>>, vector<1x128xf32>
    tpu.vector_store %arg10[%c0_29, %c0_30], %49 {strides = array<i32>} : memref<1x128xf32, #tpu.memory_space<vmem>>, vector<1x128xf32>,
    %52 = arith.index_cast %c0_i32 : i32 to index
    %c0_31 = arith.constant 0 : index
    %53 = vector.load %arg9[%52, %c0_31] : memref<8x128xf32, #tpu.memory_space<vmem>>, vector<1x128xf32>
    tpu.vector_store %arg9[%52, %c0_31], %49 {strides = array<i32>} : memref<8x128xf32, #tpu.memory_space<vmem>>, vector<1x128xf32>,
    %c1_i32 = arith.constant 1 : i32
    %c0_32 = arith.constant 0 : index
    %c0_33 = arith.constant 0 : index
    %54 = vector.load %arg10[%c0_32, %c0_33] : memref<1x128xf32, #tpu.memory_space<vmem>>, vector<1x128xf32>
    %c0_34 = arith.constant 0 : index
    %c0_35 = arith.constant 0 : index
    %55 = vector.load %arg3[%c0_34, %c0_35] : memref<128x512xf32, #tpu.memory_space<vmem>>, vector<128x512xf32>
    %cst_36 = arith.constant dense<0.000000e+00> : vector<1x512xf32>
    %56 = tpu.matmul %54, %55, %cst_36 {dimension_numbers = #tpu.dot_dimension_numbers<[1], [0], [0], [1], [0, 0, 1, 1], [], []>} : vector<1x128xf32>, vector<128x512xf32>, vector<1x512xf32> -> vector<1x512xf32>
    %57 = arith.index_cast %c1_i32 : i32 to index
    %c0_37 = arith.constant 0 : index
    %58 = vector.load %arg8[%57, %c0_37] : memref<8x512xf32, #tpu.memory_space<vmem>>, vector<1x512xf32>
    %59 = arith.addf %56, %58 : vector<1x512xf32>
    %60 = vector.extract_strided_slice %59 {offsets = [0, 0], sizes = [1, 128], strides = [1, 1]} : vector<1x512xf32> to vector<1x128xf32>
    %61 = arith.negf %60 : vector<1x128xf32>
    %62 = math.exp %61 : vector<1x128xf32>
    %cst_38 = arith.constant 1.000000e+00 : f32
    %63 = vector.broadcast %cst_38 : f32 to vector<1x128xf32>
    %64 = arith.addf %63, %62 : vector<1x128xf32>
    %65 = arith.divf %63, %64 : vector<1x128xf32>
    %66 = vector.extract_strided_slice %59 {offsets = [0, 128], sizes = [1, 128], strides = [1, 1]} : vector<1x512xf32> to vector<1x128xf32>
    %67 = arith.negf %66 : vector<1x128xf32>
    %68 = math.exp %67 : vector<1x128xf32>
    %cst_39 = arith.constant 1.000000e+00 : f32
    %69 = vector.broadcast %cst_39 : f32 to vector<1x128xf32>
    %70 = arith.addf %69, %68 : vector<1x128xf32>
    %71 = arith.divf %69, %70 : vector<1x128xf32>
    %72 = vector.extract_strided_slice %59 {offsets = [0, 256], sizes = [1, 128], strides = [1, 1]} : vector<1x512xf32> to vector<1x128xf32>
    %73 = math.tanh %72 : vector<1x128xf32>
    %74 = vector.extract_strided_slice %59 {offsets = [0, 384], sizes = [1, 128], strides = [1, 1]} : vector<1x512xf32> to vector<1x128xf32>
    %75 = arith.negf %74 : vector<1x128xf32>
    %76 = math.exp %75 : vector<1x128xf32>
    %cst_40 = arith.constant 1.000000e+00 : f32
    %77 = vector.broadcast %cst_40 : f32 to vector<1x128xf32>
    %78 = arith.addf %77, %76 : vector<1x128xf32>
    %79 = arith.divf %77, %78 : vector<1x128xf32>
    %c0_41 = arith.constant 0 : index
    %c0_42 = arith.constant 0 : index
    %80 = vector.load %arg11[%c0_41, %c0_42] : memref<1x128xf32, #tpu.memory_space<vmem>>, vector<1x128xf32>
    %81 = arith.mulf %71, %80 : vector<1x128xf32>
    %82 = arith.mulf %65, %73 : vector<1x128xf32>
    %83 = arith.addf %81, %82 : vector<1x128xf32>
    %84 = math.tanh %83 : vector<1x128xf32>
    %85 = arith.mulf %79, %84 : vector<1x128xf32>
    %c0_43 = arith.constant 0 : index
    %c0_44 = arith.constant 0 : index
    %86 = vector.load %arg11[%c0_43, %c0_44] : memref<1x128xf32, #tpu.memory_space<vmem>>, vector<1x128xf32>
    tpu.vector_store %arg11[%c0_43, %c0_44], %83 {strides = array<i32>} : memref<1x128xf32, #tpu.memory_space<vmem>>, vector<1x128xf32>,
    %c0_45 = arith.constant 0 : index
    %c0_46 = arith.constant 0 : index
    %87 = vector.load %arg10[%c0_45, %c0_46] : memref<1x128xf32, #tpu.memory_space<vmem>>, vector<1x128xf32>
    tpu.vector_store %arg10[%c0_45, %c0_46], %85 {strides = array<i32>} : memref<1x128xf32, #tpu.memory_space<vmem>>, vector<1x128xf32>,
    %88 = arith.index_cast %c1_i32 : i32 to index
    %c0_47 = arith.constant 0 : index
    %89 = vector.load %arg9[%88, %c0_47] : memref<8x128xf32, #tpu.memory_space<vmem>>, vector<1x128xf32>
    tpu.vector_store %arg9[%88, %c0_47], %85 {strides = array<i32>} : memref<8x128xf32, #tpu.memory_space<vmem>>, vector<1x128xf32>,
    %c2_i32 = arith.constant 2 : i32
    %c0_48 = arith.constant 0 : index
    %c0_49 = arith.constant 0 : index
    %90 = vector.load %arg10[%c0_48, %c0_49] : memref<1x128xf32, #tpu.memory_space<vmem>>, vector<1x128xf32>
    %c0_50 = arith.constant 0 : index
    %c0_51 = arith.constant 0 : index
    %91 = vector.load %arg3[%c0_50, %c0_51] : memref<128x512xf32, #tpu.memory_space<vmem>>, vector<128x512xf32>
    %cst_52 = arith.constant dense<0.000000e+00> : vector<1x512xf32>
    %92 = tpu.matmul %90, %91, %cst_52 {dimension_numbers = #tpu.dot_dimension_numbers<[1], [0], [0], [1], [0, 0, 1, 1], [], []>} : vector<1x128xf32>, vector<128x512xf32>, vector<1x512xf32> -> vector<1x512xf32>
    %93 = arith.index_cast %c2_i32 : i32 to index
    %c0_53 = arith.constant 0 : index
    %94 = vector.load %arg8[%93, %c0_53] : memref<8x512xf32, #tpu.memory_space<vmem>>, vector<1x512xf32>
    %95 = arith.addf %92, %94 : vector<1x512xf32>
    %96 = vector.extract_strided_slice %95 {offsets = [0, 0], sizes = [1, 128], strides = [1, 1]} : vector<1x512xf32> to vector<1x128xf32>
    %97 = arith.negf %96 : vector<1x128xf32>
    %98 = math.exp %97 : vector<1x128xf32>
    %cst_54 = arith.constant 1.000000e+00 : f32
    %99 = vector.broadcast %cst_54 : f32 to vector<1x128xf32>
    %100 = arith.addf %99, %98 : vector<1x128xf32>
    %101 = arith.divf %99, %100 : vector<1x128xf32>
    %102 = vector.extract_strided_slice %95 {offsets = [0, 128], sizes = [1, 128], strides = [1, 1]} : vector<1x512xf32> to vector<1x128xf32>
    %103 = arith.negf %102 : vector<1x128xf32>
    %104 = math.exp %103 : vector<1x128xf32>
    %cst_55 = arith.constant 1.000000e+00 : f32
    %105 = vector.broadcast %cst_55 : f32 to vector<1x128xf32>
    %106 = arith.addf %105, %104 : vector<1x128xf32>
    %107 = arith.divf %105, %106 : vector<1x128xf32>
    %108 = vector.extract_strided_slice %95 {offsets = [0, 256], sizes = [1, 128], strides = [1, 1]} : vector<1x512xf32> to vector<1x128xf32>
    %109 = math.tanh %108 : vector<1x128xf32>
    %110 = vector.extract_strided_slice %95 {offsets = [0, 384], sizes = [1, 128], strides = [1, 1]} : vector<1x512xf32> to vector<1x128xf32>
    %111 = arith.negf %110 : vector<1x128xf32>
    %112 = math.exp %111 : vector<1x128xf32>
    %cst_56 = arith.constant 1.000000e+00 : f32
    %113 = vector.broadcast %cst_56 : f32 to vector<1x128xf32>
    %114 = arith.addf %113, %112 : vector<1x128xf32>
    %115 = arith.divf %113, %114 : vector<1x128xf32>
    %c0_57 = arith.constant 0 : index
    %c0_58 = arith.constant 0 : index
    %116 = vector.load %arg11[%c0_57, %c0_58] : memref<1x128xf32, #tpu.memory_space<vmem>>, vector<1x128xf32>
    %117 = arith.mulf %107, %116 : vector<1x128xf32>
    %118 = arith.mulf %101, %109 : vector<1x128xf32>
    %119 = arith.addf %117, %118 : vector<1x128xf32>
    %120 = math.tanh %119 : vector<1x128xf32>
    %121 = arith.mulf %115, %120 : vector<1x128xf32>
    %c0_59 = arith.constant 0 : index
    %c0_60 = arith.constant 0 : index
    %122 = vector.load %arg11[%c0_59, %c0_60] : memref<1x128xf32, #tpu.memory_space<vmem>>, vector<1x128xf32>
    tpu.vector_store %arg11[%c0_59, %c0_60], %119 {strides = array<i32>} : memref<1x128xf32, #tpu.memory_space<vmem>>, vector<1x128xf32>,
    %c0_61 = arith.constant 0 : index
    %c0_62 = arith.constant 0 : index
    %123 = vector.load %arg10[%c0_61, %c0_62] : memref<1x128xf32, #tpu.memory_space<vmem>>, vector<1x128xf32>
    tpu.vector_store %arg10[%c0_61, %c0_62], %121 {strides = array<i32>} : memref<1x128xf32, #tpu.memory_space<vmem>>, vector<1x128xf32>,
    %124 = arith.index_cast %c2_i32 : i32 to index
    %c0_63 = arith.constant 0 : index
    %125 = vector.load %arg9[%124, %c0_63] : memref<8x128xf32, #tpu.memory_space<vmem>>, vector<1x128xf32>
    tpu.vector_store %arg9[%124, %c0_63], %121 {strides = array<i32>} : memref<8x128xf32, #tpu.memory_space<vmem>>, vector<1x128xf32>,
    %c3_i32 = arith.constant 3 : i32
    %c0_64 = arith.constant 0 : index
    %c0_65 = arith.constant 0 : index
    %126 = vector.load %arg10[%c0_64, %c0_65] : memref<1x128xf32, #tpu.memory_space<vmem>>, vector<1x128xf32>
    %c0_66 = arith.constant 0 : index
    %c0_67 = arith.constant 0 : index
    %127 = vector.load %arg3[%c0_66, %c0_67] : memref<128x512xf32, #tpu.memory_space<vmem>>, vector<128x512xf32>
    %cst_68 = arith.constant dense<0.000000e+00> : vector<1x512xf32>
    %128 = tpu.matmul %126, %127, %cst_68 {dimension_numbers = #tpu.dot_dimension_numbers<[1], [0], [0], [1], [0, 0, 1, 1], [], []>} : vector<1x128xf32>, vector<128x512xf32>, vector<1x512xf32> -> vector<1x512xf32>
    %129 = arith.index_cast %c3_i32 : i32 to index
    %c0_69 = arith.constant 0 : index
    %130 = vector.load %arg8[%129, %c0_69] : memref<8x512xf32, #tpu.memory_space<vmem>>, vector<1x512xf32>
    %131 = arith.addf %128, %130 : vector<1x512xf32>
    %132 = vector.extract_strided_slice %131 {offsets = [0, 0], sizes = [1, 128], strides = [1, 1]} : vector<1x512xf32> to vector<1x128xf32>
    %133 = arith.negf %132 : vector<1x128xf32>
    %134 = math.exp %133 : vector<1x128xf32>
    %cst_70 = arith.constant 1.000000e+00 : f32
    %135 = vector.broadcast %cst_70 : f32 to vector<1x128xf32>
    %136 = arith.addf %135, %134 : vector<1x128xf32>
    %137 = arith.divf %135, %136 : vector<1x128xf32>
    %138 = vector.extract_strided_slice %131 {offsets = [0, 128], sizes = [1, 128], strides = [1, 1]} : vector<1x512xf32> to vector<1x128xf32>
    %139 = arith.negf %138 : vector<1x128xf32>
    %140 = math.exp %139 : vector<1x128xf32>
    %cst_71 = arith.constant 1.000000e+00 : f32
    %141 = vector.broadcast %cst_71 : f32 to vector<1x128xf32>
    %142 = arith.addf %141, %140 : vector<1x128xf32>
    %143 = arith.divf %141, %142 : vector<1x128xf32>
    %144 = vector.extract_strided_slice %131 {offsets = [0, 256], sizes = [1, 128], strides = [1, 1]} : vector<1x512xf32> to vector<1x128xf32>
    %145 = math.tanh %144 : vector<1x128xf32>
    %146 = vector.extract_strided_slice %131 {offsets = [0, 384], sizes = [1, 128], strides = [1, 1]} : vector<1x512xf32> to vector<1x128xf32>
    %147 = arith.negf %146 : vector<1x128xf32>
    %148 = math.exp %147 : vector<1x128xf32>
    %cst_72 = arith.constant 1.000000e+00 : f32
    %149 = vector.broadcast %cst_72 : f32 to vector<1x128xf32>
    %150 = arith.addf %149, %148 : vector<1x128xf32>
    %151 = arith.divf %149, %150 : vector<1x128xf32>
    %c0_73 = arith.constant 0 : index
    %c0_74 = arith.constant 0 : index
    %152 = vector.load %arg11[%c0_73, %c0_74] : memref<1x128xf32, #tpu.memory_space<vmem>>, vector<1x128xf32>
    %153 = arith.mulf %143, %152 : vector<1x128xf32>
    %154 = arith.mulf %137, %145 : vector<1x128xf32>
    %155 = arith.addf %153, %154 : vector<1x128xf32>
    %156 = math.tanh %155 : vector<1x128xf32>
    %157 = arith.mulf %151, %156 : vector<1x128xf32>
    %c0_75 = arith.constant 0 : index
    %c0_76 = arith.constant 0 : index
    %158 = vector.load %arg11[%c0_75, %c0_76] : memref<1x128xf32, #tpu.memory_space<vmem>>, vector<1x128xf32>
    tpu.vector_store %arg11[%c0_75, %c0_76], %155 {strides = array<i32>} : memref<1x128xf32, #tpu.memory_space<vmem>>, vector<1x128xf32>,
    %c0_77 = arith.constant 0 : index
    %c0_78 = arith.constant 0 : index
    %159 = vector.load %arg10[%c0_77, %c0_78] : memref<1x128xf32, #tpu.memory_space<vmem>>, vector<1x128xf32>
    tpu.vector_store %arg10[%c0_77, %c0_78], %157 {strides = array<i32>} : memref<1x128xf32, #tpu.memory_space<vmem>>, vector<1x128xf32>,
    %160 = arith.index_cast %c3_i32 : i32 to index
    %c0_79 = arith.constant 0 : index
    %161 = vector.load %arg9[%160, %c0_79] : memref<8x128xf32, #tpu.memory_space<vmem>>, vector<1x128xf32>
    tpu.vector_store %arg9[%160, %c0_79], %157 {strides = array<i32>} : memref<8x128xf32, #tpu.memory_space<vmem>>, vector<1x128xf32>,
    %c4_i32 = arith.constant 4 : i32
    %c0_80 = arith.constant 0 : index
    %c0_81 = arith.constant 0 : index
    %162 = vector.load %arg10[%c0_80, %c0_81] : memref<1x128xf32, #tpu.memory_space<vmem>>, vector<1x128xf32>
    %c0_82 = arith.constant 0 : index
    %c0_83 = arith.constant 0 : index
    %163 = vector.load %arg3[%c0_82, %c0_83] : memref<128x512xf32, #tpu.memory_space<vmem>>, vector<128x512xf32>
    %cst_84 = arith.constant dense<0.000000e+00> : vector<1x512xf32>
    %164 = tpu.matmul %162, %163, %cst_84 {dimension_numbers = #tpu.dot_dimension_numbers<[1], [0], [0], [1], [0, 0, 1, 1], [], []>} : vector<1x128xf32>, vector<128x512xf32>, vector<1x512xf32> -> vector<1x512xf32>
    %165 = arith.index_cast %c4_i32 : i32 to index
    %c0_85 = arith.constant 0 : index
    %166 = vector.load %arg8[%165, %c0_85] : memref<8x512xf32, #tpu.memory_space<vmem>>, vector<1x512xf32>
    %167 = arith.addf %164, %166 : vector<1x512xf32>
    %168 = vector.extract_strided_slice %167 {offsets = [0, 0], sizes = [1, 128], strides = [1, 1]} : vector<1x512xf32> to vector<1x128xf32>
    %169 = arith.negf %168 : vector<1x128xf32>
    %170 = math.exp %169 : vector<1x128xf32>
    %cst_86 = arith.constant 1.000000e+00 : f32
    %171 = vector.broadcast %cst_86 : f32 to vector<1x128xf32>
    %172 = arith.addf %171, %170 : vector<1x128xf32>
    %173 = arith.divf %171, %172 : vector<1x128xf32>
    %174 = vector.extract_strided_slice %167 {offsets = [0, 128], sizes = [1, 128], strides = [1, 1]} : vector<1x512xf32> to vector<1x128xf32>
    %175 = arith.negf %174 : vector<1x128xf32>
    %176 = math.exp %175 : vector<1x128xf32>
    %cst_87 = arith.constant 1.000000e+00 : f32
    %177 = vector.broadcast %cst_87 : f32 to vector<1x128xf32>
    %178 = arith.addf %177, %176 : vector<1x128xf32>
    %179 = arith.divf %177, %178 : vector<1x128xf32>
    %180 = vector.extract_strided_slice %167 {offsets = [0, 256], sizes = [1, 128], strides = [1, 1]} : vector<1x512xf32> to vector<1x128xf32>
    %181 = math.tanh %180 : vector<1x128xf32>
    %182 = vector.extract_strided_slice %167 {offsets = [0, 384], sizes = [1, 128], strides = [1, 1]} : vector<1x512xf32> to vector<1x128xf32>
    %183 = arith.negf %182 : vector<1x128xf32>
    %184 = math.exp %183 : vector<1x128xf32>
    %cst_88 = arith.constant 1.000000e+00 : f32
    %185 = vector.broadcast %cst_88 : f32 to vector<1x128xf32>
    %186 = arith.addf %185, %184 : vector<1x128xf32>
    %187 = arith.divf %185, %186 : vector<1x128xf32>
    %c0_89 = arith.constant 0 : index
    %c0_90 = arith.constant 0 : index
    %188 = vector.load %arg11[%c0_89, %c0_90] : memref<1x128xf32, #tpu.memory_space<vmem>>, vector<1x128xf32>
    %189 = arith.mulf %179, %188 : vector<1x128xf32>
    %190 = arith.mulf %173, %181 : vector<1x128xf32>
    %191 = arith.addf %189, %190 : vector<1x128xf32>
    %192 = math.tanh %191 : vector<1x128xf32>
    %193 = arith.mulf %187, %192 : vector<1x128xf32>
    %c0_91 = arith.constant 0 : index
    %c0_92 = arith.constant 0 : index
    %194 = vector.load %arg11[%c0_91, %c0_92] : memref<1x128xf32, #tpu.memory_space<vmem>>, vector<1x128xf32>
    tpu.vector_store %arg11[%c0_91, %c0_92], %191 {strides = array<i32>} : memref<1x128xf32, #tpu.memory_space<vmem>>, vector<1x128xf32>,
    %c0_93 = arith.constant 0 : index
    %c0_94 = arith.constant 0 : index
    %195 = vector.load %arg10[%c0_93, %c0_94] : memref<1x128xf32, #tpu.memory_space<vmem>>, vector<1x128xf32>
    tpu.vector_store %arg10[%c0_93, %c0_94], %193 {strides = array<i32>} : memref<1x128xf32, #tpu.memory_space<vmem>>, vector<1x128xf32>,
    %196 = arith.index_cast %c4_i32 : i32 to index
    %c0_95 = arith.constant 0 : index
    %197 = vector.load %arg9[%196, %c0_95] : memref<8x128xf32, #tpu.memory_space<vmem>>, vector<1x128xf32>
    tpu.vector_store %arg9[%196, %c0_95], %193 {strides = array<i32>} : memref<8x128xf32, #tpu.memory_space<vmem>>, vector<1x128xf32>,
    %c5_i32 = arith.constant 5 : i32
    %c0_96 = arith.constant 0 : index
    %c0_97 = arith.constant 0 : index
    %198 = vector.load %arg10[%c0_96, %c0_97] : memref<1x128xf32, #tpu.memory_space<vmem>>, vector<1x128xf32>
    %c0_98 = arith.constant 0 : index
    %c0_99 = arith.constant 0 : index
    %199 = vector.load %arg3[%c0_98, %c0_99] : memref<128x512xf32, #tpu.memory_space<vmem>>, vector<128x512xf32>
    %cst_100 = arith.constant dense<0.000000e+00> : vector<1x512xf32>
    %200 = tpu.matmul %198, %199, %cst_100 {dimension_numbers = #tpu.dot_dimension_numbers<[1], [0], [0], [1], [0, 0, 1, 1], [], []>} : vector<1x128xf32>, vector<128x512xf32>, vector<1x512xf32> -> vector<1x512xf32>
    %201 = arith.index_cast %c5_i32 : i32 to index
    %c0_101 = arith.constant 0 : index
    %202 = vector.load %arg8[%201, %c0_101] : memref<8x512xf32, #tpu.memory_space<vmem>>, vector<1x512xf32>
    %203 = arith.addf %200, %202 : vector<1x512xf32>
    %204 = vector.extract_strided_slice %203 {offsets = [0, 0], sizes = [1, 128], strides = [1, 1]} : vector<1x512xf32> to vector<1x128xf32>
    %205 = arith.negf %204 : vector<1x128xf32>
    %206 = math.exp %205 : vector<1x128xf32>
    %cst_102 = arith.constant 1.000000e+00 : f32
    %207 = vector.broadcast %cst_102 : f32 to vector<1x128xf32>
    %208 = arith.addf %207, %206 : vector<1x128xf32>
    %209 = arith.divf %207, %208 : vector<1x128xf32>
    %210 = vector.extract_strided_slice %203 {offsets = [0, 128], sizes = [1, 128], strides = [1, 1]} : vector<1x512xf32> to vector<1x128xf32>
    %211 = arith.negf %210 : vector<1x128xf32>
    %212 = math.exp %211 : vector<1x128xf32>
    %cst_103 = arith.constant 1.000000e+00 : f32
    %213 = vector.broadcast %cst_103 : f32 to vector<1x128xf32>
    %214 = arith.addf %213, %212 : vector<1x128xf32>
    %215 = arith.divf %213, %214 : vector<1x128xf32>
    %216 = vector.extract_strided_slice %203 {offsets = [0, 256], sizes = [1, 128], strides = [1, 1]} : vector<1x512xf32> to vector<1x128xf32>
    %217 = math.tanh %216 : vector<1x128xf32>
    %218 = vector.extract_strided_slice %203 {offsets = [0, 384], sizes = [1, 128], strides = [1, 1]} : vector<1x512xf32> to vector<1x128xf32>
    %219 = arith.negf %218 : vector<1x128xf32>
    %220 = math.exp %219 : vector<1x128xf32>
    %cst_104 = arith.constant 1.000000e+00 : f32
    %221 = vector.broadcast %cst_104 : f32 to vector<1x128xf32>
    %222 = arith.addf %221, %220 : vector<1x128xf32>
    %223 = arith.divf %221, %222 : vector<1x128xf32>
    %c0_105 = arith.constant 0 : index
    %c0_106 = arith.constant 0 : index
    %224 = vector.load %arg11[%c0_105, %c0_106] : memref<1x128xf32, #tpu.memory_space<vmem>>, vector<1x128xf32>
    %225 = arith.mulf %215, %224 : vector<1x128xf32>
    %226 = arith.mulf %209, %217 : vector<1x128xf32>
    %227 = arith.addf %225, %226 : vector<1x128xf32>
    %228 = math.tanh %227 : vector<1x128xf32>
    %229 = arith.mulf %223, %228 : vector<1x128xf32>
    %c0_107 = arith.constant 0 : index
    %c0_108 = arith.constant 0 : index
    %230 = vector.load %arg11[%c0_107, %c0_108] : memref<1x128xf32, #tpu.memory_space<vmem>>, vector<1x128xf32>
    tpu.vector_store %arg11[%c0_107, %c0_108], %227 {strides = array<i32>} : memref<1x128xf32, #tpu.memory_space<vmem>>, vector<1x128xf32>,
    %c0_109 = arith.constant 0 : index
    %c0_110 = arith.constant 0 : index
    %231 = vector.load %arg10[%c0_109, %c0_110] : memref<1x128xf32, #tpu.memory_space<vmem>>, vector<1x128xf32>
    tpu.vector_store %arg10[%c0_109, %c0_110], %229 {strides = array<i32>} : memref<1x128xf32, #tpu.memory_space<vmem>>, vector<1x128xf32>,
    %232 = arith.index_cast %c5_i32 : i32 to index
    %c0_111 = arith.constant 0 : index
    %233 = vector.load %arg9[%232, %c0_111] : memref<8x128xf32, #tpu.memory_space<vmem>>, vector<1x128xf32>
    tpu.vector_store %arg9[%232, %c0_111], %229 {strides = array<i32>} : memref<8x128xf32, #tpu.memory_space<vmem>>, vector<1x128xf32>,
    %c6_i32 = arith.constant 6 : i32
    %c0_112 = arith.constant 0 : index
    %c0_113 = arith.constant 0 : index
    %234 = vector.load %arg10[%c0_112, %c0_113] : memref<1x128xf32, #tpu.memory_space<vmem>>, vector<1x128xf32>
    %c0_114 = arith.constant 0 : index
    %c0_115 = arith.constant 0 : index
    %235 = vector.load %arg3[%c0_114, %c0_115] : memref<128x512xf32, #tpu.memory_space<vmem>>, vector<128x512xf32>
    %cst_116 = arith.constant dense<0.000000e+00> : vector<1x512xf32>
    %236 = tpu.matmul %234, %235, %cst_116 {dimension_numbers = #tpu.dot_dimension_numbers<[1], [0], [0], [1], [0, 0, 1, 1], [], []>} : vector<1x128xf32>, vector<128x512xf32>, vector<1x512xf32> -> vector<1x512xf32>
    %237 = arith.index_cast %c6_i32 : i32 to index
    %c0_117 = arith.constant 0 : index
    %238 = vector.load %arg8[%237, %c0_117] : memref<8x512xf32, #tpu.memory_space<vmem>>, vector<1x512xf32>
    %239 = arith.addf %236, %238 : vector<1x512xf32>
    %240 = vector.extract_strided_slice %239 {offsets = [0, 0], sizes = [1, 128], strides = [1, 1]} : vector<1x512xf32> to vector<1x128xf32>
    %241 = arith.negf %240 : vector<1x128xf32>
    %242 = math.exp %241 : vector<1x128xf32>
    %cst_118 = arith.constant 1.000000e+00 : f32
    %243 = vector.broadcast %cst_118 : f32 to vector<1x128xf32>
    %244 = arith.addf %243, %242 : vector<1x128xf32>
    %245 = arith.divf %243, %244 : vector<1x128xf32>
    %246 = vector.extract_strided_slice %239 {offsets = [0, 128], sizes = [1, 128], strides = [1, 1]} : vector<1x512xf32> to vector<1x128xf32>
    %247 = arith.negf %246 : vector<1x128xf32>
    %248 = math.exp %247 : vector<1x128xf32>
    %cst_119 = arith.constant 1.000000e+00 : f32
    %249 = vector.broadcast %cst_119 : f32 to vector<1x128xf32>
    %250 = arith.addf %249, %248 : vector<1x128xf32>
    %251 = arith.divf %249, %250 : vector<1x128xf32>
    %252 = vector.extract_strided_slice %239 {offsets = [0, 256], sizes = [1, 128], strides = [1, 1]} : vector<1x512xf32> to vector<1x128xf32>
    %253 = math.tanh %252 : vector<1x128xf32>
    %254 = vector.extract_strided_slice %239 {offsets = [0, 384], sizes = [1, 128], strides = [1, 1]} : vector<1x512xf32> to vector<1x128xf32>
    %255 = arith.negf %254 : vector<1x128xf32>
    %256 = math.exp %255 : vector<1x128xf32>
    %cst_120 = arith.constant 1.000000e+00 : f32
    %257 = vector.broadcast %cst_120 : f32 to vector<1x128xf32>
    %258 = arith.addf %257, %256 : vector<1x128xf32>
    %259 = arith.divf %257, %258 : vector<1x128xf32>
    %c0_121 = arith.constant 0 : index
    %c0_122 = arith.constant 0 : index
    %260 = vector.load %arg11[%c0_121, %c0_122] : memref<1x128xf32, #tpu.memory_space<vmem>>, vector<1x128xf32>
    %261 = arith.mulf %251, %260 : vector<1x128xf32>
    %262 = arith.mulf %245, %253 : vector<1x128xf32>
    %263 = arith.addf %261, %262 : vector<1x128xf32>
    %264 = math.tanh %263 : vector<1x128xf32>
    %265 = arith.mulf %259, %264 : vector<1x128xf32>
    %c0_123 = arith.constant 0 : index
    %c0_124 = arith.constant 0 : index
    %266 = vector.load %arg11[%c0_123, %c0_124] : memref<1x128xf32, #tpu.memory_space<vmem>>, vector<1x128xf32>
    tpu.vector_store %arg11[%c0_123, %c0_124], %263 {strides = array<i32>} : memref<1x128xf32, #tpu.memory_space<vmem>>, vector<1x128xf32>,
    %c0_125 = arith.constant 0 : index
    %c0_126 = arith.constant 0 : index
    %267 = vector.load %arg10[%c0_125, %c0_126] : memref<1x128xf32, #tpu.memory_space<vmem>>, vector<1x128xf32>
    tpu.vector_store %arg10[%c0_125, %c0_126], %265 {strides = array<i32>} : memref<1x128xf32, #tpu.memory_space<vmem>>, vector<1x128xf32>,
    %268 = arith.index_cast %c6_i32 : i32 to index
    %c0_127 = arith.constant 0 : index
    %269 = vector.load %arg9[%268, %c0_127] : memref<8x128xf32, #tpu.memory_space<vmem>>, vector<1x128xf32>
    tpu.vector_store %arg9[%268, %c0_127], %265 {strides = array<i32>} : memref<8x128xf32, #tpu.memory_space<vmem>>, vector<1x128xf32>,
    %c7_i32 = arith.constant 7 : i32
    %c0_128 = arith.constant 0 : index
    %c0_129 = arith.constant 0 : index
    %270 = vector.load %arg10[%c0_128, %c0_129] : memref<1x128xf32, #tpu.memory_space<vmem>>, vector<1x128xf32>
    %c0_130 = arith.constant 0 : index
    %c0_131 = arith.constant 0 : index
    %271 = vector.load %arg3[%c0_130, %c0_131] : memref<128x512xf32, #tpu.memory_space<vmem>>, vector<128x512xf32>
    %cst_132 = arith.constant dense<0.000000e+00> : vector<1x512xf32>
    %272 = tpu.matmul %270, %271, %cst_132 {dimension_numbers = #tpu.dot_dimension_numbers<[1], [0], [0], [1], [0, 0, 1, 1], [], []>} : vector<1x128xf32>, vector<128x512xf32>, vector<1x512xf32> -> vector<1x512xf32>
    %273 = arith.index_cast %c7_i32 : i32 to index
    %c0_133 = arith.constant 0 : index
    %274 = vector.load %arg8[%273, %c0_133] : memref<8x512xf32, #tpu.memory_space<vmem>>, vector<1x512xf32>
    %275 = arith.addf %272, %274 : vector<1x512xf32>
    %276 = vector.extract_strided_slice %275 {offsets = [0, 0], sizes = [1, 128], strides = [1, 1]} : vector<1x512xf32> to vector<1x128xf32>
    %277 = arith.negf %276 : vector<1x128xf32>
    %278 = math.exp %277 : vector<1x128xf32>
    %cst_134 = arith.constant 1.000000e+00 : f32
    %279 = vector.broadcast %cst_134 : f32 to vector<1x128xf32>
    %280 = arith.addf %279, %278 : vector<1x128xf32>
    %281 = arith.divf %279, %280 : vector<1x128xf32>
    %282 = vector.extract_strided_slice %275 {offsets = [0, 128], sizes = [1, 128], strides = [1, 1]} : vector<1x512xf32> to vector<1x128xf32>
    %283 = arith.negf %282 : vector<1x128xf32>
    %284 = math.exp %283 : vector<1x128xf32>
    %cst_135 = arith.constant 1.000000e+00 : f32
    %285 = vector.broadcast %cst_135 : f32 to vector<1x128xf32>
    %286 = arith.addf %285, %284 : vector<1x128xf32>
    %287 = arith.divf %285, %286 : vector<1x128xf32>
    %288 = vector.extract_strided_slice %275 {offsets = [0, 256], sizes = [1, 128], strides = [1, 1]} : vector<1x512xf32> to vector<1x128xf32>
    %289 = math.tanh %288 : vector<1x128xf32>
    %290 = vector.extract_strided_slice %275 {offsets = [0, 384], sizes = [1, 128], strides = [1, 1]} : vector<1x512xf32> to vector<1x128xf32>
    %291 = arith.negf %290 : vector<1x128xf32>
    %292 = math.exp %291 : vector<1x128xf32>
    %cst_136 = arith.constant 1.000000e+00 : f32
    %293 = vector.broadcast %cst_136 : f32 to vector<1x128xf32>
    %294 = arith.addf %293, %292 : vector<1x128xf32>
    %295 = arith.divf %293, %294 : vector<1x128xf32>
    %c0_137 = arith.constant 0 : index
    %c0_138 = arith.constant 0 : index
    %296 = vector.load %arg11[%c0_137, %c0_138] : memref<1x128xf32, #tpu.memory_space<vmem>>, vector<1x128xf32>
    %297 = arith.mulf %287, %296 : vector<1x128xf32>
    %298 = arith.mulf %281, %289 : vector<1x128xf32>
    %299 = arith.addf %297, %298 : vector<1x128xf32>
    %300 = math.tanh %299 : vector<1x128xf32>
    %301 = arith.mulf %295, %300 : vector<1x128xf32>
    %c0_139 = arith.constant 0 : index
    %c0_140 = arith.constant 0 : index
    %302 = vector.load %arg11[%c0_139, %c0_140] : memref<1x128xf32, #tpu.memory_space<vmem>>, vector<1x128xf32>
    tpu.vector_store %arg11[%c0_139, %c0_140], %299 {strides = array<i32>} : memref<1x128xf32, #tpu.memory_space<vmem>>, vector<1x128xf32>,
    %c0_141 = arith.constant 0 : index
    %c0_142 = arith.constant 0 : index
    %303 = vector.load %arg10[%c0_141, %c0_142] : memref<1x128xf32, #tpu.memory_space<vmem>>, vector<1x128xf32>
    tpu.vector_store %arg10[%c0_141, %c0_142], %301 {strides = array<i32>} : memref<1x128xf32, #tpu.memory_space<vmem>>, vector<1x128xf32>,
    %304 = arith.index_cast %c7_i32 : i32 to index
    %c0_143 = arith.constant 0 : index
    %305 = vector.load %arg9[%304, %c0_143] : memref<8x128xf32, #tpu.memory_space<vmem>>, vector<1x128xf32>
    tpu.vector_store %arg9[%304, %c0_143], %301 {strides = array<i32>} : memref<8x128xf32, #tpu.memory_space<vmem>>, vector<1x128xf32>,
    %c8_i32 = arith.constant 8 : i32
    %c0_144 = arith.constant 0 : index
    %c0_145 = arith.constant 0 : index
    %306 = vector.load %arg9[%c0_144, %c0_145] : memref<8x128xf32, #tpu.memory_space<vmem>>, vector<8x128xf32>
    %c0_146 = arith.constant 0 : index
    %c0_147 = arith.constant 0 : index
    %307 = vector.load %arg5[%c0_146, %c0_147] : memref<128x8xf32, #tpu.memory_space<vmem>>, vector<128x8xf32>
    %cst_148 = arith.constant dense<0.000000e+00> : vector<8x8xf32>
    %308 = tpu.matmul %306, %307, %cst_148 {dimension_numbers = #tpu.dot_dimension_numbers<[1], [0], [0], [1], [0, 0, 1, 1], [], []>} : vector<8x128xf32>, vector<128x8xf32>, vector<8x8xf32> -> vector<8x8xf32>
    %c0_149 = arith.constant 0 : index
    %c0_150 = arith.constant 0 : index
    %309 = vector.load %arg6[%c0_149, %c0_150] : memref<1x8xf32, #tpu.memory_space<vmem>>, vector<1x8xf32>
    %310 = vector.broadcast %309 : vector<1x8xf32> to vector<8x8xf32>
    %311 = arith.addf %308, %310 : vector<8x8xf32>
    %cst_151 = arith.constant dense<0xFF800000> : vector<8xf32>
    %312 = vector.multi_reduction <maximumf>, %311, %cst_151 [1] : vector<8x8xf32> to vector<8xf32>
    %313 = vector.shape_cast %312 : vector<8xf32> to vector<8x1xf32>
    %314 = vector.broadcast %313 : vector<8x1xf32> to vector<8x8xf32>
    %315 = arith.subf %311, %314 : vector<8x8xf32>
    %316 = math.exp %315 : vector<8x8xf32>
    %cst_152 = arith.constant dense<0.000000e+00> : vector<8xf32>
    %317 = vector.multi_reduction <add>, %316, %cst_152 [1] : vector<8x8xf32> to vector<8xf32>
    %318 = vector.shape_cast %317 : vector<8xf32> to vector<8x1xf32>
    %319 = math.log %318 : vector<8x1xf32>
    %320 = vector.broadcast %319 : vector<8x1xf32> to vector<8x8xf32>
    %321 = arith.subf %315, %320 : vector<8x8xf32>
    %c0_153 = arith.constant 0 : index
    %c0_154 = arith.constant 0 : index
    %322 = vector.load %arg7[%c0_153, %c0_154] : memref<8x8xf32, #tpu.memory_space<vmem>>, vector<8x8xf32>
    tpu.vector_store %arg7[%c0_153, %c0_154], %321 {strides = array<i32>} : memref<8x8xf32, #tpu.memory_space<vmem>>, vector<8x8xf32>,
    return
  }
}

</mosaic_0001>

<llo_original>
// kernel: tpu_custom_call.1
$region0: #{tpu_custom_call.1}
  #allocation0 [shape = 'u32[]', space=smem, size = 0x4, offset = 0x4, fixed_abs, tag = 'smem constant byte address 0x4 - core index']
  #allocation1 [shape = 'u32[144,128]{1,0:T(1,128)}', space=vmem, size = 0x12000, scoped, tag = 'internal scratch']
  #allocation2 [shape = 'f32[8,512]{1,0:T(8,128)}', space=vmem, size = 0x4000, scoped, tag = 'scratch operand']
  #allocation3 [shape = 'f32[8,128]{1,0:T(8,128)}', space=vmem, size = 0x1000, scoped, tag = 'scratch operand']
  #allocation4 [shape = 'f32[1,128]{1,0:T(1,128)}', space=vmem, size = 0x200, scoped, tag = 'scratch operand']
  #allocation5 [shape = 'f32[1,128]{1,0:T(1,128)}', space=vmem, size = 0x200, scoped, tag = 'scratch operand']
  %s0 = inlined_call_operand.vmem [shape: s32[8,1], index: 0, kind: input, shape index: {}]
  %s1 = inlined_call_operand.vmem [shape: f32[16,32], index: 1, kind: input, shape index: {}]
  %s2 = inlined_call_operand.vmem [shape: f32[32,512], index: 2, kind: input, shape index: {}]
  %s3 = inlined_call_operand.hbm [shape: f32[128,512], index: 3, kind: input, shape index: {}]
  %s4 = inlined_call_operand.hbm [shape: f32[1,512], index: 4, kind: input, shape index: {}]
  %s5 = inlined_call_operand.vmem [shape: f32[128,8], index: 5, kind: input, shape index: {}]
  %s6 = inlined_call_operand.vmem [shape: f32[1,8], index: 6, kind: input, shape index: {}]
  %s7 = inlined_call_operand.hbm [shape: f32[8,8], index: 7, kind: output, shape index: {}]
  %s8 = sld [smem:[#allocation0]]
  $region46: #{tpu_custom_call.1} parent=0
    _
  %s10 = ssub.s32 1, %s8
  %s11 = scalar_select 0, %s10, %s8
  $region1: #{tpu_custom_call.1} parent=0
    #allocation6 [shape = 'u8[262144]{0}', space=vmem, size = 0x40000, scoped, tag = 'input window, operand 3, single buffered']
    #allocation7 [shape = 's32[1]{0}', space=sflag, size = 0x4, scoped, tag = 'scoped memory for tpu_custom_call.1']
    #allocation8 [shape = 's32[1]{0}', space=sflag, size = 0x4, scoped, tag = 'scoped memory for tpu_custom_call.1']
    #allocation9 [shape = 'u8[2048]{0}', space=vmem, size = 0x800, scoped, tag = 'input window, operand 4, single buffered']
    #allocation10 [shape = 's32[1]{0}', space=sflag, size = 0x4, scoped, tag = 'scoped memory for tpu_custom_call.1']
    #allocation11 [shape = 'u8[4096]{0}', space=vmem, size = 0x1000, scoped, tag = 'output window, operand 0, single buffered']
    %12 = vsyncpa [#allocation7], 0
    %13 = vsyncpa [#allocation10], 0
    %14 = vsyncpa [#allocation8], 0
    // Predicated region
    $region2: #{tpu_custom_call.1} parent=1 // pred_check
      _
    $region3: #{tpu_custom_call.1} parent=1 // pred_check_branch
      %16 = sbr.rel (0) target = $region5
    $region4: #{tpu_custom_call.1} parent=1 // pred_region
      _
    $region5: #{tpu_custom_call.1} parent=1 // pred_fallthru
      _
    // Predicated region
    $region6: #{tpu_custom_call.1} parent=1 // pred_check
      _
    $region7: #{tpu_custom_call.1} parent=1 // pred_check_branch
      %18 = sbr.rel (0) target = $region9
    $region8: #{tpu_custom_call.1} parent=1 // pred_region
      _
    $region9: #{tpu_custom_call.1} parent=1 // pred_fallthru
      _
    // Predicated region
    $region10: #{tpu_custom_call.1} parent=1 // pred_check
      _
    $region11: #{tpu_custom_call.1} parent=1 // pred_check_branch
      %20 = sbr.rel (0) target = $region13
    $region12: #{tpu_custom_call.1} parent=1 // pred_region
      _
    $region13: #{tpu_custom_call.1} parent=1 // pred_fallthru
      _
    // Predicated region
    $region14: #{tpu_custom_call.1} parent=1 // pred_check
      _
    $region15: #{tpu_custom_call.1} parent=1 // pred_check_branch
      %22 = sbr.rel (0) target = $region17
    $region16: #{tpu_custom_call.1} parent=1 // pred_region
      %s24 = ssub.s32 8192, 8192
      %25 = vsyncadd [#allocation7], %s24
      %s26 = sshll.u32 [#allocation6], 4
      %s27 = int_to_ptr.vmem [resolvable:$true] %s26
      %32 = dma.hbm_to_vmem [thread:$0]  %s3, 8192, %s27, [#allocation7], 512, 512, 32
    $region17: #{tpu_custom_call.1} parent=1 // pred_fallthru
      _
    // Predicated region
    $region18: #{tpu_custom_call.1} parent=1 // pred_check
      _
    $region19: #{tpu_custom_call.1} parent=1 // pred_check_branch
      %34 = sbr.rel (0) target = $region21
    $region20: #{tpu_custom_call.1} parent=1 // pred_region
      %s36 = ssub.s32 64, 64
      %37 = vsyncadd [#allocation10], %s36
      %s39 = sshll.u32 [#allocation9], 4
      %s40 = int_to_ptr.vmem [resolvable:$true] %s39
      %42 = dma.hbm_to_vmem [thread:$0]  %s4, 64, %s40, [#allocation10]
    $region21: #{tpu_custom_call.1} parent=1 // pred_fallthru
      _
    // Predicated region
    $region22: #{tpu_custom_call.1} parent=1 // pred_check
      _
    $region23: #{tpu_custom_call.1} parent=1 // pred_check_branch
      %44 = sbr.rel (0) target = $region25
    $region24: #{tpu_custom_call.1} parent=1 // pred_region
      _
    $region25: #{tpu_custom_call.1} parent=1 // pred_fallthru
      _
    // Predicated region
    $region26: #{tpu_custom_call.1} parent=1 // pred_check
      _
    $region27: #{tpu_custom_call.1} parent=1 // pred_check_branch
      %46 = sbr.rel (0) target = $region29
    $region28: #{tpu_custom_call.1} parent=1 // pred_region
      _
    $region29: #{tpu_custom_call.1} parent=1 // pred_fallthru
      _
    // Predicated region
    $region30: #{tpu_custom_call.1} parent=1 // pred_check
      _
    $region31: #{tpu_custom_call.1} parent=1 // pred_check_branch
      %48 = sbr.rel (0) target = $region33
    $region32: #{tpu_custom_call.1} parent=1 // pred_region
      %49 = dma.done [#allocation7], 8192
    $region33: #{tpu_custom_call.1} parent=1 // pred_fallthru
      _
    // Predicated region
    $region34: #{tpu_custom_call.1} parent=1 // pred_check
      _
    $region35: #{tpu_custom_call.1} parent=1 // pred_check_branch
      %51 = sbr.rel (0) target = $region37
    $region36: #{tpu_custom_call.1} parent=1 // pred_region
      %52 = dma.done [#allocation10], 64
    $region37: #{tpu_custom_call.1} parent=1 // pred_fallthru
      _
    %v53 = vld [vmem:[%s0] sm:$0xff]
    %v54 = vlaneseq
    %v55 = vand.u32 %v54, 127
    %56 = vset.pattern.permute.xlu0 0
    %57 = vperm.xlu0 %56, %v53
    %v58 = vpop.permute.xlu0 %57
    %vm59 = vcmp.eq.s32.totalorder %v55, %v58
    %v60 = vsel %vm59, 1, 0
    %v61 = vcvt.s32.f32 %v60
    %v62 = vld [vmem:[%s1] sm:$0xff]
    %v63 = vld [vmem:[%s1 + $0x8] sm:$0xff]
    %vm64 = vcmask 130048
    %v66 = vsel %vm64, %v61, 0
    %68 = vmatprep.subr.mxu0 0.0
    %69 = vmatpush1.msra.mxu0 0.0
    %70 = vmatprep.subr.mxu0 0.0
    %71 = vmatpush1.msra.mxu0 0.0
    %72 = vmatprep.subr.mxu0 0.0
    %73 = vmatpush1.msra.mxu0 0.0
    %74 = vmatprep.subr.mxu0 0.0
    %75 = vmatpush1.msra.mxu0 0.0
    %76 = vmatprep.subr.mxu0 0.0
    %77 = vmatpush1.msra.mxu0 0.0
    %78 = vmatprep.subr.mxu0 0.0
    %79 = vmatpush1.msra.mxu0 0.0
    %80 = vmatprep.subr.mxu0 0.0
    %81 = vmatpush1.msra.mxu0 0.0
    %82 = vmatprep.subr.mxu0 0.0
    %83 = vmatpush1.msra.mxu0 0.0
    %84 = vmatprep.subr.mxu0 0.0
    %85 = vmatpush1.msra.mxu0 0.0
    %86 = vmatprep.subr.mxu0 0.0
    %87 = vmatpush1.msra.mxu0 0.0
    %88 = vmatprep.subr.mxu0 0.0
    %89 = vmatpush1.msra.mxu0 0.0
    %90 = vmatprep.subr.mxu0 0.0
    %91 = vmatpush1.msra.mxu0 0.0
    %92 = vmatprep.subr.mxu0 0.0
    %93 = vmatpush1.msra.mxu0 0.0
    %94 = vmatprep.subr.mxu0 0.0
    %95 = vmatpush1.msra.mxu0 0.0
    %96 = vmatprep.subr.mxu0 0.0
    %97 = vmatpush1.msra.mxu0 %v63
    %98 = vmatprep.subr.mxu0 0.0
    %99 = vmatpush1.msra.mxu0 %v62
    %100 = vmatprep.subr.mxu0 0.0
    %101 = vmatpush2.msra.mxu0 0.0
    %102 = vmatprep.subr.mxu0 0.0
    %103 = vmatpush2.msra.mxu0 0.0
    %104 = vmatprep.subr.mxu0 0.0
    %105 = vmatpush2.msra.mxu0 0.0
    %106 = vmatprep.subr.mxu0 0.0
    %107 = vmatpush2.msra.mxu0 0.0
    %108 = vmatprep.subr.mxu0 0.0
    %109 = vmatpush2.msra.mxu0 0.0
    %110 = vmatprep.subr.mxu0 0.0
    %111 = vmatpush2.msra.mxu0 0.0
    %112 = vmatprep.subr.mxu0 0.0
    %113 = vmatpush2.msra.mxu0 0.0
    %114 = vmatprep.subr.mxu0 0.0
    %115 = vmatpush2.msra.mxu0 0.0
    %116 = vmatprep.subr.mxu0 0.0
    %117 = vmatpush2.msra.mxu0 0.0
    %118 = vmatprep.subr.mxu0 0.0
    %119 = vmatpush2.msra.mxu0 0.0
    %120 = vmatprep.subr.mxu0 0.0
    %121 = vmatpush2.msra.mxu0 0.0
    %122 = vmatprep.subr.mxu0 0.0
    %123 = vmatpush2.msra.mxu0 0.0
    %124 = vmatprep.subr.mxu0 0.0
    %125 = vmatpush2.msra.mxu0 0.0
    %126 = vmatprep.subr.mxu0 0.0
    %127 = vmatpush2.msra.mxu0 0.0
    %128 = vmatprep.subr.mxu0 0.0
    %129 = vmatpush2.msra.mxu0 0.0
    %130 = vmatprep.subr.mxu0 0.0
    %131 = vmatpush2.msra.mxu0 0.0
    %132 = vmatprep.mubr.f32.mxu0 0.0
    %133 = vmatmul.mubr.f32.gmra.mxu0 %v66
    %v134 = vpop.f32.mrf.mxu0
    %v135 = vadd.f32 0.0, %v134
    %v136 = vpop.f32.mrf.mxu0
    %137 = vdwg.mxu0
    %v138 = vld [vmem:[%s2] sm:$0xff]
    %v139 = vld [vmem:[%s2 + $0x8] sm:$0xff]
    %v140 = vld [vmem:[%s2 + $0x10] sm:$0xff]
    %v141 = vld [vmem:[%s2 + $0x18] sm:$0xff]
    %v142 = vld [vmem:[%s2 + $0x20] sm:$0xff]
    %v143 = vld [vmem:[%s2 + $0x28] sm:$0xff]
    %v144 = vld [vmem:[%s2 + $0x30] sm:$0xff]
    %v145 = vld [vmem:[%s2 + $0x38] sm:$0xff]
    %v146 = vld [vmem:[%s2 + $0x40] sm:$0xff]
    %v147 = vld [vmem:[%s2 + $0x48] sm:$0xff]
    %v148 = vld [vmem:[%s2 + $0x50] sm:$0xff]
    %v149 = vld [vmem:[%s2 + $0x58] sm:$0xff]
    %v150 = vld [vmem:[%s2 + $0x60] sm:$0xff]
    %v151 = vld [vmem:[%s2 + $0x68] sm:$0xff]
    %v152 = vld [vmem:[%s2 + $0x70] sm:$0xff]
    %v153 = vld [vmem:[%s2 + $0x78] sm:$0xff]
    %v154 = vld [vmem:[#allocation9] sm:$0xf]
    %v156 = vlaneseq
    %v157 = vshrl.u32 %v156, 7
    %v158 = vsub.s32 0, %v157
    %v159 = vrot.slane %v154, %v158
    %v160 = vlaneseq
    %v161 = vshrl.u32 %v160, 7
    %v162 = vsub.s32 1, %v161
    %v163 = vrot.slane %v154, %v162
    %v164 = vlaneseq
    %v165 = vshrl.u32 %v164, 7
    %v166 = vsub.s32 2, %v165
    %v167 = vrot.slane %v154, %v166
    %v168 = vlaneseq
    %v169 = vshrl.u32 %v168, 7
    %v170 = vsub.s32 3, %v169
    %v171 = vrot.slane %v154, %v170
    %vm176 = vcmask 261120
    %v178 = vsel %vm176, %v135, 0
    %180 = vmatprep.subr.mxu0 0.0
    %181 = vmatpush1.msra.mxu0 0.0
    %182 = vmatprep.subr.mxu0 0.0
    %183 = vmatpush1.msra.mxu0 0.0
    %184 = vmatprep.subr.mxu0 0.0
    %185 = vmatpush1.msra.mxu0 0.0
    %186 = vmatprep.subr.mxu0 0.0
    %187 = vmatpush1.msra.mxu0 0.0
    %188 = vmatprep.subr.mxu0 0.0
    %189 = vmatpush1.msra.mxu0 0.0
    %190 = vmatprep.subr.mxu0 0.0
    %191 = vmatpush1.msra.mxu0 0.0
    %192 = vmatprep.subr.mxu0 0.0
    %193 = vmatpush1.msra.mxu0 0.0
    %194 = vmatprep.subr.mxu0 0.0
    %195 = vmatpush1.msra.mxu0 0.0
    %196 = vmatprep.subr.mxu0 0.0
    %197 = vmatpush1.msra.mxu0 0.0
    %198 = vmatprep.subr.mxu0 0.0
    %199 = vmatpush1.msra.mxu0 0.0
    %200 = vmatprep.subr.mxu0 0.0
    %201 = vmatpush1.msra.mxu0 0.0
    %202 = vmatprep.subr.mxu0 0.0
    %203 = vmatpush1.msra.mxu0 0.0
    %204 = vmatprep.subr.mxu0 %v151
    %205 = vmatpush1.msra.mxu0 %v150
    %206 = vmatprep.subr.mxu0 %v147
    %207 = vmatpush1.msra.mxu0 %v146
    %208 = vmatprep.subr.mxu0 %v143
    %209 = vmatpush1.msra.mxu0 %v142
    %210 = vmatprep.subr.mxu0 %v139
    %211 = vmatpush1.msra.mxu0 %v138
    %212 = vmatprep.subr.mxu0 0.0
    %213 = vmatpush2.msra.mxu0 0.0
    %214 = vmatprep.subr.mxu0 0.0
    %215 = vmatpush2.msra.mxu0 0.0
    %216 = vmatprep.subr.mxu0 0.0
    %217 = vmatpush2.msra.mxu0 0.0
    %218 = vmatprep.subr.mxu0 0.0
    %219 = vmatpush2.msra.mxu0 0.0
    %220 = vmatprep.subr.mxu0 0.0
    %221 = vmatpush2.msra.mxu0 0.0
    %222 = vmatprep.subr.mxu0 0.0
    %223 = vmatpush2.msra.mxu0 0.0
    %224 = vmatprep.subr.mxu0 0.0
    %225 = vmatpush2.msra.mxu0 0.0
    %226 = vmatprep.subr.mxu0 0.0
    %227 = vmatpush2.msra.mxu0 0.0
    %228 = vmatprep.subr.mxu0 0.0
    %229 = vmatpush2.msra.mxu0 0.0
    %230 = vmatprep.subr.mxu0 0.0
    %231 = vmatpush2.msra.mxu0 0.0
    %232 = vmatprep.subr.mxu0 0.0
    %233 = vmatpush2.msra.mxu0 0.0
    %234 = vmatprep.subr.mxu0 0.0
    %235 = vmatpush2.msra.mxu0 0.0
    %236 = vmatprep.subr.mxu0 0.0
    %237 = vmatpush2.msra.mxu0 0.0
    %238 = vmatprep.subr.mxu0 0.0
    %239 = vmatpush2.msra.mxu0 0.0
    %240 = vmatprep.subr.mxu0 0.0
    %241 = vmatpush2.msra.mxu0 0.0
    %242 = vmatprep.subr.mxu0 0.0
    %243 = vmatpush2.msra.mxu0 0.0
    %244 = vmatprep.mubr.f32.mxu0 0.0
    %245 = vmatmul.mubr.f32.gmra.mxu0 %v178
    %v246 = vpop.f32.mrf.mxu0
    %v247 = vadd.f32 %v159, %v246
    %v248 = vpop.f32.mrf.mxu0
    %v249 = vadd.f32 %v163, %v248
    %250 = vdwg.mxu0
    %251 = vmatprep.subr.mxu0 0.0
    %252 = vmatpush1.msra.mxu0 0.0
    %253 = vmatprep.subr.mxu0 0.0
    %254 = vmatpush1.msra.mxu0 0.0
    %255 = vmatprep.subr.mxu0 0.0
    %256 = vmatpush1.msra.mxu0 0.0
    %257 = vmatprep.subr.mxu0 0.0
    %258 = vmatpush1.msra.mxu0 0.0
    %259 = vmatprep.subr.mxu0 0.0
    %260 = vmatpush1.msra.mxu0 0.0
    %261 = vmatprep.subr.mxu0 0.0
    %262 = vmatpush1.msra.mxu0 0.0
    %263 = vmatprep.subr.mxu0 0.0
    %264 = vmatpush1.msra.mxu0 0.0
    %265 = vmatprep.subr.mxu0 0.0
    %266 = vmatpush1.msra.mxu0 0.0
    %267 = vmatprep.subr.mxu0 0.0
    %268 = vmatpush1.msra.mxu0 0.0
    %269 = vmatprep.subr.mxu0 0.0
    %270 = vmatpush1.msra.mxu0 0.0
    %271 = vmatprep.subr.mxu0 0.0
    %272 = vmatpush1.msra.mxu0 0.0
    %273 = vmatprep.subr.mxu0 0.0
    %274 = vmatpush1.msra.mxu0 0.0
    %275 = vmatprep.subr.mxu0 %v153
    %276 = vmatpush1.msra.mxu0 %v152
    %277 = vmatprep.subr.mxu0 %v149
    %278 = vmatpush1.msra.mxu0 %v148
    %279 = vmatprep.subr.mxu0 %v145
    %280 = vmatpush1.msra.mxu0 %v144
    %281 = vmatprep.subr.mxu0 %v141
    %282 = vmatpush1.msra.mxu0 %v140
    %283 = vmatprep.subr.mxu0 0.0
    %284 = vmatpush2.msra.mxu0 0.0
    %285 = vmatprep.subr.mxu0 0.0
    %286 = vmatpush2.msra.mxu0 0.0
    %287 = vmatprep.subr.mxu0 0.0
    %288 = vmatpush2.msra.mxu0 0.0
    %289 = vmatprep.subr.mxu0 0.0
    %290 = vmatpush2.msra.mxu0 0.0
    %291 = vmatprep.subr.mxu0 0.0
    %292 = vmatpush2.msra.mxu0 0.0
    %293 = vmatprep.subr.mxu0 0.0
    %294 = vmatpush2.msra.mxu0 0.0
    %295 = vmatprep.subr.mxu0 0.0
    %296 = vmatpush2.msra.mxu0 0.0
    %297 = vmatprep.subr.mxu0 0.0
    %298 = vmatpush2.msra.mxu0 0.0
    %299 = vmatprep.subr.mxu0 0.0
    %300 = vmatpush2.msra.mxu0 0.0
    %301 = vmatprep.subr.mxu0 0.0
    %302 = vmatpush2.msra.mxu0 0.0
    %303 = vmatprep.subr.mxu0 0.0
    %304 = vmatpush2.msra.mxu0 0.0
    %305 = vmatprep.subr.mxu0 0.0
    %306 = vmatpush2.msra.mxu0 0.0
    %307 = vmatprep.subr.mxu0 0.0
    %308 = vmatpush2.msra.mxu0 0.0
    %309 = vmatprep.subr.mxu0 0.0
    %310 = vmatpush2.msra.mxu0 0.0
    %311 = vmatprep.subr.mxu0 0.0
    %312 = vmatpush2.msra.mxu0 0.0
    %313 = vmatprep.subr.mxu0 0.0
    %314 = vmatpush2.msra.mxu0 0.0
    %315 = vmatprep.mubr.f32.mxu0 0.0
    %316 = vmatmul.mubr.f32.gmra.mxu0 %v178
    %v317 = vpop.f32.mrf.mxu0
    %v318 = vadd.f32 %v167, %v317
    %v319 = vpop.f32.mrf.mxu0
    %v320 = vadd.f32 %v171, %v319
    %321 = vdwg.mxu0
    %322 = vst [vmem:[#allocation2] sm:$0xff] %v247
    %323 = vst [vmem:[#allocation2 + $0x8] sm:$0xff] %v249
    %324 = vst [vmem:[#allocation2 + $0x10] sm:$0xff] %v318
    %325 = vst [vmem:[#allocation2 + $0x18] sm:$0xff] %v320
    %326 = vst [vmem:[#allocation4] sm:$0x1] 0.0
    %327 = vst [vmem:[#allocation5] sm:$0x1] 0.0
    %v328 = vld [vmem:[#allocation4] sm:$0x1]
    %v329 = vld [vmem:[#allocation6] sm:$0xff]
    %v330 = vld [vmem:[#allocation6 + $0x8] sm:$0xff]
    %v331 = vld [vmem:[#allocation6 + $0x10] sm:$0xff]
    %v332 = vld [vmem:[#allocation6 + $0x18] sm:$0xff]
    %v333 = vld [vmem:[#allocation6 + $0x20] sm:$0xff]
    %v334 = vld [vmem:[#allocation6 + $0x28] sm:$0xff]
    %v335 = vld [vmem:[#allocation6 + $0x30] sm:$0xff]
    %v336 = vld [vmem:[#allocation6 + $0x38] sm:$0xff]
    %v337 = vld [vmem:[#allocation6 + $0x40] sm:$0xff]
    %v338 = vld [vmem:[#allocation6 + $0x48] sm:$0xff]
    %v339 = vld [vmem:[#allocation6 + $0x50] sm:$0xff]
    %v340 = vld [vmem:[#allocation6 + $0x58] sm:$0xff]
    %v341 = vld [vmem:[#allocation6 + $0x60] sm:$0xff]
    %v342 = vld [vmem:[#allocation6 + $0x68] sm:$0xff]
    %v343 = vld [vmem:[#allocation6 + $0x70] sm:$0xff]
    %v344 = vld [vmem:[#allocation6 + $0x78] sm:$0xff]
    %v345 = vld [vmem:[#allocation6 + $0x80] sm:$0xff]
    %v346 = vld [vmem:[#allocation6 + $0x88] sm:$0xff]
    %v347 = vld [vmem:[#allocation6 + $0x90] sm:$0xff]
    %v348 = vld [vmem:[#allocation6 + $0x98] sm:$0xff]
    %v349 = vld [vmem:[#allocation6 + $0xa0] sm:$0xff]
    %v350 = vld [vmem:[#allocation6 + $0xa8] sm:$0xff]
    %v351 = vld [vmem:[#allocation6 + $0xb0] sm:$0xff]
    %v352 = vld [vmem:[#allocation6 + $0xb8] sm:$0xff]
    %v353 = vld [vmem:[#allocation6 + $0xc0] sm:$0xff]
    %v354 = vld [vmem:[#allocation6 + $0xc8] sm:$0xff]
    %v355 = vld [vmem:[#allocation6 + $0xd0] sm:$0xff]
    %v356 = vld [vmem:[#allocation6 + $0xd8] sm:$0xff]
    %v357 = vld [vmem:[#allocation6 + $0xe0] sm:$0xff]
    %v358 = vld [vmem:[#allocation6 + $0xe8] sm:$0xff]
    %v359 = vld [vmem:[#allocation6 + $0xf0] sm:$0xff]
    %v360 = vld [vmem:[#allocation6 + $0xf8] sm:$0xff]
    %v361 = vld [vmem:[#allocation6 + $0x100] sm:$0xff]
    %v362 = vld [vmem:[#allocation6 + $0x108] sm:$0xff]
    %v363 = vld [vmem:[#allocation6 + $0x110] sm:$0xff]
    %v364 = vld [vmem:[#allocation6 + $0x118] sm:$0xff]
    %v365 = vld [vmem:[#allocation6 + $0x120] sm:$0xff]
    %v366 = vld [vmem:[#allocation6 + $0x128] sm:$0xff]
    %v367 = vld [vmem:[#allocation6 + $0x130] sm:$0xff]
    %v368 = vld [vmem:[#allocation6 + $0x138] sm:$0xff]
    %v369 = vld [vmem:[#allocation6 + $0x140] sm:$0xff]
    %v370 = vld [vmem:[#allocation6 + $0x148] sm:$0xff]
    %v371 = vld [vmem:[#allocation6 + $0x150] sm:$0xff]
    %v372 = vld [vmem:[#allocation6 + $0x158] sm:$0xff]
    %v373 = vld [vmem:[#allocation6 + $0x160] sm:$0xff]
    %v374 = vld [vmem:[#allocation6 + $0x168] sm:$0xff]
    %v375 = vld [vmem:[#allocation6 + $0x170] sm:$0xff]
    %v376 = vld [vmem:[#allocation6 + $0x178] sm:$0xff]
    %v377 = vld [vmem:[#allocation6 + $0x180] sm:$0xff]
    %v378 = vld [vmem:[#allocation6 + $0x188] sm:$0xff]
    %v379 = vld [vmem:[#allocation6 + $0x190] sm:$0xff]
    %v380 = vld [vmem:[#allocation6 + $0x198] sm:$0xff]
    %v381 = vld [vmem:[#allocation6 + $0x1a0] sm:$0xff]
    %v382 = vld [vmem:[#allocation6 + $0x1a8] sm:$0xff]
    %v383 = vld [vmem:[#allocation6 + $0x1b0] sm:$0xff]
    %v384 = vld [vmem:[#allocation6 + $0x1b8] sm:$0xff]
    %v385 = vld [vmem:[#allocation6 + $0x1c0] sm:$0xff]
    %v386 = vld [vmem:[#allocation6 + $0x1c8] sm:$0xff]
    %v387 = vld [vmem:[#allocation6 + $0x1d0] sm:$0xff]
    %v388 = vld [vmem:[#allocation6 + $0x1d8] sm:$0xff]
    %v389 = vld [vmem:[#allocation6 + $0x1e0] sm:$0xff]
    %v390 = vld [vmem:[#allocation6 + $0x1e8] sm:$0xff]
    %v391 = vld [vmem:[#allocation6 + $0x1f0] sm:$0xff]
    %v392 = vld [vmem:[#allocation6 + $0x1f8] sm:$0xff]
    %v393 = vld [vmem:[#allocation2] ss:$8 sm:$0xf]
    %v395 = vlaneseq
    %v396 = vshrl.u32 %v395, 7
    %v397 = vsub.s32 0, %v396
    %v398 = vrot.slane %v393, %v397
    %v399 = vlaneseq
    %v400 = vshrl.u32 %v399, 7
    %v401 = vsub.s32 1, %v400
    %v402 = vrot.slane %v393, %v401
    %v403 = vlaneseq
    %v404 = vshrl.u32 %v403, 7
    %v405 = vsub.s32 2, %v404
    %v406 = vrot.slane %v393, %v405
    %v407 = vlaneseq
    %v408 = vshrl.u32 %v407, 7
    %v409 = vsub.s32 3, %v408
    %v410 = vrot.slane %v393, %v409
    %415 = vmatprep.subr.mxu0 %v390
    %416 = vmatpush1.msra.mxu0 %v389
    %417 = vmatprep.subr.mxu0 %v386
    %418 = vmatpush1.msra.mxu0 %v385
    %419 = vmatprep.subr.mxu0 %v382
    %420 = vmatpush1.msra.mxu0 %v381
    %421 = vmatprep.subr.mxu0 %v378
    %422 = vmatpush1.msra.mxu0 %v377
    %423 = vmatprep.subr.mxu0 %v374
    %424 = vmatpush1.msra.mxu0 %v373
    %425 = vmatprep.subr.mxu0 %v370
    %426 = vmatpush1.msra.mxu0 %v369
    %427 = vmatprep.subr.mxu0 %v366
    %428 = vmatpush1.msra.mxu0 %v365
    %429 = vmatprep.subr.mxu0 %v362
    %430 = vmatpush1.msra.mxu0 %v361
    %431 = vmatprep.subr.mxu0 %v358
    %432 = vmatpush1.msra.mxu0 %v357
    %433 = vmatprep.subr.mxu0 %v354
    %434 = vmatpush1.msra.mxu0 %v353
    %435 = vmatprep.subr.mxu0 %v350
    %436 = vmatpush1.msra.mxu0 %v349
    %437 = vmatprep.subr.mxu0 %v346
    %438 = vmatpush1.msra.mxu0 %v345
    %439 = vmatprep.subr.mxu0 %v342
    %440 = vmatpush1.msra.mxu0 %v341
    %441 = vmatprep.subr.mxu0 %v338
    %442 = vmatpush1.msra.mxu0 %v337
    %443 = vmatprep.subr.mxu0 %v334
    %444 = vmatpush1.msra.mxu0 %v333
    %445 = vmatprep.subr.mxu0 %v330
    %446 = vmatpush1.msra.mxu0 %v329
    %447 = vmatprep.subr.mxu0 0.0
    %448 = vmatpush2.msra.mxu0 0.0
    %449 = vmatprep.subr.mxu0 0.0
    %450 = vmatpush2.msra.mxu0 0.0
    %451 = vmatprep.subr.mxu0 0.0
    %452 = vmatpush2.msra.mxu0 0.0
    %453 = vmatprep.subr.mxu0 0.0
    %454 = vmatpush2.msra.mxu0 0.0
    %455 = vmatprep.subr.mxu0 0.0
    %456 = vmatpush2.msra.mxu0 0.0
    %457 = vmatprep.subr.mxu0 0.0
    %458 = vmatpush2.msra.mxu0 0.0
    %459 = vmatprep.subr.mxu0 0.0
    %460 = vmatpush2.msra.mxu0 0.0
    %461 = vmatprep.subr.mxu0 0.0
    %462 = vmatpush2.msra.mxu0 0.0
    %463 = vmatprep.subr.mxu0 0.0
    %464 = vmatpush2.msra.mxu0 0.0
    %465 = vmatprep.subr.mxu0 0.0
    %466 = vmatpush2.msra.mxu0 0.0
    %467 = vmatprep.subr.mxu0 0.0
    %468 = vmatpush2.msra.mxu0 0.0
    %469 = vmatprep.subr.mxu0 0.0
    %470 = vmatpush2.msra.mxu0 0.0
    %471 = vmatprep.subr.mxu0 0.0
    %472 = vmatpush2.msra.mxu0 0.0
    %473 = vmatprep.subr.mxu0 0.0
    %474 = vmatpush2.msra.mxu0 0.0
    %475 = vmatprep.subr.mxu0 0.0
    %476 = vmatpush2.msra.mxu0 0.0
    %477 = vmatprep.subr.mxu0 0.0
    %478 = vmatpush2.msra.mxu0 0.0
    %479 = vmatprep.mubr.f32.mxu0 0.0
    %480 = vmatmul.mubr.f32.gmra.mxu0 %v328
    %v481 = vpop.f32.mrf.mxu0
    %v482 = vadd.f32 %v398, %v481
    %v483 = vpop.f32.mrf.mxu0
    %v484 = vadd.f32 %v402, %v483
    %485 = vdwg.mxu0
    %486 = vmatprep.subr.mxu0 %v392
    %487 = vmatpush1.msra.mxu0 %v391
    %488 = vmatprep.subr.mxu0 %v388
    %489 = vmatpush1.msra.mxu0 %v387
    %490 = vmatprep.subr.mxu0 %v384
    %491 = vmatpush1.msra.mxu0 %v383
    %492 = vmatprep.subr.mxu0 %v380
    %493 = vmatpush1.msra.mxu0 %v379
    %494 = vmatprep.subr.mxu0 %v376
    %495 = vmatpush1.msra.mxu0 %v375
    %496 = vmatprep.subr.mxu0 %v372
    %497 = vmatpush1.msra.mxu0 %v371
    %498 = vmatprep.subr.mxu0 %v368
    %499 = vmatpush1.msra.mxu0 %v367
    %500 = vmatprep.subr.mxu0 %v364
    %501 = vmatpush1.msra.mxu0 %v363
    %502 = vmatprep.subr.mxu0 %v360
    %503 = vmatpush1.msra.mxu0 %v359
    %504 = vmatprep.subr.mxu0 %v356
    %505 = vmatpush1.msra.mxu0 %v355
    %506 = vmatprep.subr.mxu0 %v352
    %507 = vmatpush1.msra.mxu0 %v351
    %508 = vmatprep.subr.mxu0 %v348
    %509 = vmatpush1.msra.mxu0 %v347
    %510 = vmatprep.subr.mxu0 %v344
    %511 = vmatpush1.msra.mxu0 %v343
    %512 = vmatprep.subr.mxu0 %v340
    %513 = vmatpush1.msra.mxu0 %v339
    %514 = vmatprep.subr.mxu0 %v336
    %515 = vmatpush1.msra.mxu0 %v335
    %516 = vmatprep.subr.mxu0 %v332
    %517 = vmatpush1.msra.mxu0 %v331
    %518 = vmatprep.subr.mxu0 0.0
    %519 = vmatpush2.msra.mxu0 0.0
    %520 = vmatprep.subr.mxu0 0.0
    %521 = vmatpush2.msra.mxu0 0.0
    %522 = vmatprep.subr.mxu0 0.0
    %523 = vmatpush2.msra.mxu0 0.0
    %524 = vmatprep.subr.mxu0 0.0
    %525 = vmatpush2.msra.mxu0 0.0
    %526 = vmatprep.subr.mxu0 0.0
    %527 = vmatpush2.msra.mxu0 0.0
    %528 = vmatprep.subr.mxu0 0.0
    %529 = vmatpush2.msra.mxu0 0.0
    %530 = vmatprep.subr.mxu0 0.0
    %531 = vmatpush2.msra.mxu0 0.0
    %532 = vmatprep.subr.mxu0 0.0
    %533 = vmatpush2.msra.mxu0 0.0
    %534 = vmatprep.subr.mxu0 0.0
    %535 = vmatpush2.msra.mxu0 0.0
    %536 = vmatprep.subr.mxu0 0.0
    %537 = vmatpush2.msra.mxu0 0.0
    %538 = vmatprep.subr.mxu0 0.0
    %539 = vmatpush2.msra.mxu0 0.0
    %540 = vmatprep.subr.mxu0 0.0
    %541 = vmatpush2.msra.mxu0 0.0
    %542 = vmatprep.subr.mxu0 0.0
    %543 = vmatpush2.msra.mxu0 0.0
    %544 = vmatprep.subr.mxu0 0.0
    %545 = vmatpush2.msra.mxu0 0.0
    %546 = vmatprep.subr.mxu0 0.0
    %547 = vmatpush2.msra.mxu0 0.0
    %548 = vmatprep.subr.mxu0 0.0
    %549 = vmatpush2.msra.mxu0 0.0
    %550 = vmatprep.mubr.f32.mxu0 0.0
    %551 = vmatmul.mubr.f32.gmra.mxu0 %v328
    %v552 = vpop.f32.mrf.mxu0
    %v553 = vadd.f32 %v406, %v552
    %v554 = vpop.f32.mrf.mxu0
    %v555 = vadd.f32 %v410, %v554
    %556 = vdwg.mxu0
    %v557 = vxor.u32 %v482, 2147483648
    %v558 = vmul.f32 %v557, 1.442695
    %v559 = vpow.pop %v558
    %v560 = vadd.f32 %v559, 1.0
    %v561 = vrcp.pop %v560
    %v562 = vmul.f32 1.0, %v561
    %v563 = vxor.u32 %v484, 2147483648
    %v564 = vmul.f32 %v563, 1.442695
    %v565 = vpow.pop %v564
    %v566 = vadd.f32 %v565, 1.0
    %v567 = vrcp.pop %v566
    %v568 = vmul.f32 1.0, %v567
    %v569 = vtanh.pop %v553
    %v570 = vxor.u32 %v555, 2147483648
    %v571 = vmul.f32 %v570, 1.442695
    %v572 = vpow.pop %v571
    %v573 = vadd.f32 %v572, 1.0
    %v574 = vrcp.pop %v573
    %v575 = vmul.f32 1.0, %v574
    %v576 = vld [vmem:[#allocation5] sm:$0x1]
    %v577 = vmul.f32 %v568, %v576
    %v578 = vmul.f32 %v562, %v569
    %v579 = vadd.f32 %v577, %v578
    %v580 = vtanh.pop %v579
    %v581 = vmul.f32 %v575, %v580
    %582 = vst [vmem:[#allocation5] sm:$0x1] %v579
    %583 = vst [vmem:[#allocation4] sm:$0x1] %v581
    %584 = vst [vmem:[#allocation3] sm:$0x1] %v581
    %v585 = vld [vmem:[#allocation4] sm:$0x1]
    %v586 = vld [vmem:[#allocation6] sm:$0xff]
    %v587 = vld [vmem:[#allocation6 + $0x8] sm:$0xff]
    %v588 = vld [vmem:[#allocation6 + $0x10] sm:$0xff]
    %v589 = vld [vmem:[#allocation6 + $0x18] sm:$0xff]
    %v590 = vld [vmem:[#allocation6 + $0x20] sm:$0xff]
    %v591 = vld [vmem:[#allocation6 + $0x28] sm:$0xff]
    %v592 = vld [vmem:[#allocation6 + $0x30] sm:$0xff]
    %v593 = vld [vmem:[#allocation6 + $0x38] sm:$0xff]
    %v594 = vld [vmem:[#allocation6 + $0x40] sm:$0xff]
    %v595 = vld [vmem:[#allocation6 + $0x48] sm:$0xff]
    %v596 = vld [vmem:[#allocation6 + $0x50] sm:$0xff]
    %v597 = vld [vmem:[#allocation6 + $0x58] sm:$0xff]
    %v598 = vld [vmem:[#allocation6 + $0x60] sm:$0xff]
    %v599 = vld [vmem:[#allocation6 + $0x68] sm:$0xff]
    %v600 = vld [vmem:[#allocation6 + $0x70] sm:$0xff]
    %v601 = vld [vmem:[#allocation6 + $0x78] sm:$0xff]
    %v602 = vld [vmem:[#allocation6 + $0x80] sm:$0xff]
    %v603 = vld [vmem:[#allocation6 + $0x88] sm:$0xff]
    %v604 = vld [vmem:[#allocation6 + $0x90] sm:$0xff]
    %v605 = vld [vmem:[#allocation6 + $0x98] sm:$0xff]
    %v606 = vld [vmem:[#allocation6 + $0xa0] sm:$0xff]
    %v607 = vld [vmem:[#allocation6 + $0xa8] sm:$0xff]
    %v608 = vld [vmem:[#allocation6 + $0xb0] sm:$0xff]
    %v609 = vld [vmem:[#allocation6 + $0xb8] sm:$0xff]
    %v610 = vld [vmem:[#allocation6 + $0xc0] sm:$0xff]
    %v611 = vld [vmem:[#allocation6 + $0xc8] sm:$0xff]
    %v612 = vld [vmem:[#allocation6 + $0xd0] sm:$0xff]
    %v613 = vld [vmem:[#allocation6 + $0xd8] sm:$0xff]
    %v614 = vld [vmem:[#allocation6 + $0xe0] sm:$0xff]
    %v615 = vld [vmem:[#allocation6 + $0xe8] sm:$0xff]
    %v616 = vld [vmem:[#allocation6 + $0xf0] sm:$0xff]
    %v617 = vld [vmem:[#allocation6 + $0xf8] sm:$0xff]
    %v618 = vld [vmem:[#allocation6 + $0x100] sm:$0xff]
    %v619 = vld [vmem:[#allocation6 + $0x108] sm:$0xff]
    %v620 = vld [vmem:[#allocation6 + $0x110] sm:$0xff]
    %v621 = vld [vmem:[#allocation6 + $0x118] sm:$0xff]
    %v622 = vld [vmem:[#allocation6 + $0x120] sm:$0xff]
    %v623 = vld [vmem:[#allocation6 + $0x128] sm:$0xff]
    %v624 = vld [vmem:[#allocation6 + $0x130] sm:$0xff]
    %v625 = vld [vmem:[#allocation6 + $0x138] sm:$0xff]
    %v626 = vld [vmem:[#allocation6 + $0x140] sm:$0xff]
    %v627 = vld [vmem:[#allocation6 + $0x148] sm:$0xff]
    %v628 = vld [vmem:[#allocation6 + $0x150] sm:$0xff]
    %v629 = vld [vmem:[#allocation6 + $0x158] sm:$0xff]
    %v630 = vld [vmem:[#allocation6 + $0x160] sm:$0xff]
    %v631 = vld [vmem:[#allocation6 + $0x168] sm:$0xff]
    %v632 = vld [vmem:[#allocation6 + $0x170] sm:$0xff]
    %v633 = vld [vmem:[#allocation6 + $0x178] sm:$0xff]
    %v634 = vld [vmem:[#allocation6 + $0x180] sm:$0xff]
    %v635 = vld [vmem:[#allocation6 + $0x188] sm:$0xff]
    %v636 = vld [vmem:[#allocation6 + $0x190] sm:$0xff]
    %v637 = vld [vmem:[#allocation6 + $0x198] sm:$0xff]
    %v638 = vld [vmem:[#allocation6 + $0x1a0] sm:$0xff]
    %v639 = vld [vmem:[#allocation6 + $0x1a8] sm:$0xff]
    %v640 = vld [vmem:[#allocation6 + $0x1b0] sm:$0xff]
    %v641 = vld [vmem:[#allocation6 + $0x1b8] sm:$0xff]
    %v642 = vld [vmem:[#allocation6 + $0x1c0] sm:$0xff]
    %v643 = vld [vmem:[#allocation6 + $0x1c8] sm:$0xff]
    %v644 = vld [vmem:[#allocation6 + $0x1d0] sm:$0xff]
    %v645 = vld [vmem:[#allocation6 + $0x1d8] sm:$0xff]
    %v646 = vld [vmem:[#allocation6 + $0x1e0] sm:$0xff]
    %v647 = vld [vmem:[#allocation6 + $0x1e8] sm:$0xff]
    %v648 = vld [vmem:[#allocation6 + $0x1f0] sm:$0xff]
    %v649 = vld [vmem:[#allocation6 + $0x1f8] sm:$0xff]
    %s650 = scalar_lea.vmem [#allocation2], 1
    %v651 = vld [vmem:[%s650] ss:$8 sm:$0xf]
    %v653 = vlaneseq
    %v654 = vshrl.u32 %v653, 7
    %v655 = vsub.s32 0, %v654
    %v656 = vrot.slane %v651, %v655
    %v657 = vlaneseq
    %v658 = vshrl.u32 %v657, 7
    %v659 = vsub.s32 1, %v658
    %v660 = vrot.slane %v651, %v659
    %v661 = vlaneseq
    %v662 = vshrl.u32 %v661, 7
    %v663 = vsub.s32 2, %v662
    %v664 = vrot.slane %v651, %v663
    %v665 = vlaneseq
    %v666 = vshrl.u32 %v665, 7
    %v667 = vsub.s32 3, %v666
    %v668 = vrot.slane %v651, %v667
    %673 = vmatprep.subr.mxu0 %v647
    %674 = vmatpush1.msra.mxu0 %v646
    %675 = vmatprep.subr.mxu0 %v643
    %676 = vmatpush1.msra.mxu0 %v642
    %677 = vmatprep.subr.mxu0 %v639
    %678 = vmatpush1.msra.mxu0 %v638
    %679 = vmatprep.subr.mxu0 %v635
    %680 = vmatpush1.msra.mxu0 %v634
    %681 = vmatprep.subr.mxu0 %v631
    %682 = vmatpush1.msra.mxu0 %v630
    %683 = vmatprep.subr.mxu0 %v627
    %684 = vmatpush1.msra.mxu0 %v626
    %685 = vmatprep.subr.mxu0 %v623
    %686 = vmatpush1.msra.mxu0 %v622
    %687 = vmatprep.subr.mxu0 %v619
    %688 = vmatpush1.msra.mxu0 %v618
    %689 = vmatprep.subr.mxu0 %v615
    %690 = vmatpush1.msra.mxu0 %v614
    %691 = vmatprep.subr.mxu0 %v611
    %692 = vmatpush1.msra.mxu0 %v610
    %693 = vmatprep.subr.mxu0 %v607
    %694 = vmatpush1.msra.mxu0 %v606
    %695 = vmatprep.subr.mxu0 %v603
    %696 = vmatpush1.msra.mxu0 %v602
    %697 = vmatprep.subr.mxu0 %v599
    %698 = vmatpush1.msra.mxu0 %v598
    %699 = vmatprep.subr.mxu0 %v595
    %700 = vmatpush1.msra.mxu0 %v594
    %701 = vmatprep.subr.mxu0 %v591
    %702 = vmatpush1.msra.mxu0 %v590
    %703 = vmatprep.subr.mxu0 %v587
    %704 = vmatpush1.msra.mxu0 %v586
    %705 = vmatprep.subr.mxu0 0.0
    %706 = vmatpush2.msra.mxu0 0.0
    %707 = vmatprep.subr.mxu0 0.0
    %708 = vmatpush2.msra.mxu0 0.0
    %709 = vmatprep.subr.mxu0 0.0
    %710 = vmatpush2.msra.mxu0 0.0
    %711 = vmatprep.subr.mxu0 0.0
    %712 = vmatpush2.msra.mxu0 0.0
    %713 = vmatprep.subr.mxu0 0.0
    %714 = vmatpush2.msra.mxu0 0.0
    %715 = vmatprep.subr.mxu0 0.0
    %716 = vmatpush2.msra.mxu0 0.0
    %717 = vmatprep.subr.mxu0 0.0
    %718 = vmatpush2.msra.mxu0 0.0
    %719 = vmatprep.subr.mxu0 0.0
    %720 = vmatpush2.msra.mxu0 0.0
    %721 = vmatprep.subr.mxu0 0.0
    %722 = vmatpush2.msra.mxu0 0.0
    %723 = vmatprep.subr.mxu0 0.0
    %724 = vmatpush2.msra.mxu0 0.0
    %725 = vmatprep.subr.mxu0 0.0
    %726 = vmatpush2.msra.mxu0 0.0
    %727 = vmatprep.subr.mxu0 0.0
    %728 = vmatpush2.msra.mxu0 0.0
    %729 = vmatprep.subr.mxu0 0.0
    %730 = vmatpush2.msra.mxu0 0.0
    %731 = vmatprep.subr.mxu0 0.0
    %732 = vmatpush2.msra.mxu0 0.0
    %733 = vmatprep.subr.mxu0 0.0
    %734 = vmatpush2.msra.mxu0 0.0
    %735 = vmatprep.subr.mxu0 0.0
    %736 = vmatpush2.msra.mxu0 0.0
    %737 = vmatprep.mubr.f32.mxu0 0.0
    %738 = vmatmul.mubr.f32.gmra.mxu0 %v585
    %v739 = vpop.f32.mrf.mxu0
    %v740 = vadd.f32 %v656, %v739
    %v741 = vpop.f32.mrf.mxu0
    %v742 = vadd.f32 %v660, %v741
    %743 = vdwg.mxu0
    %744 = vmatprep.subr.mxu0 %v649
    %745 = vmatpush1.msra.mxu0 %v648
    %746 = vmatprep.subr.mxu0 %v645
    %747 = vmatpush1.msra.mxu0 %v644
    %748 = vmatprep.subr.mxu0 %v641
    %749 = vmatpush1.msra.mxu0 %v640
    %750 = vmatprep.subr.mxu0 %v637
    %751 = vmatpush1.msra.mxu0 %v636
    %752 = vmatprep.subr.mxu0 %v633
    %753 = vmatpush1.msra.mxu0 %v632
    %754 = vmatprep.subr.mxu0 %v629
    %755 = vmatpush1.msra.mxu0 %v628
    %756 = vmatprep.subr.mxu0 %v625
    %757 = vmatpush1.msra.mxu0 %v624
    %758 = vmatprep.subr.mxu0 %v621
    %759 = vmatpush1.msra.mxu0 %v620
    %760 = vmatprep.subr.mxu0 %v617
    %761 = vmatpush1.msra.mxu0 %v616
    %762 = vmatprep.subr.mxu0 %v613
    %763 = vmatpush1.msra.mxu0 %v612
    %764 = vmatprep.subr.mxu0 %v609
    %765 = vmatpush1.msra.mxu0 %v608
    %766 = vmatprep.subr.mxu0 %v605
    %767 = vmatpush1.msra.mxu0 %v604
    %768 = vmatprep.subr.mxu0 %v601
    %769 = vmatpush1.msra.mxu0 %v600
    %770 = vmatprep.subr.mxu0 %v597
    %771 = vmatpush1.msra.mxu0 %v596
    %772 = vmatprep.subr.mxu0 %v593
    %773 = vmatpush1.msra.mxu0 %v592
    %774 = vmatprep.subr.mxu0 %v589
    %775 = vmatpush1.msra.mxu0 %v588
    %776 = vmatprep.subr.mxu0 0.0
    %777 = vmatpush2.msra.mxu0 0.0
    %778 = vmatprep.subr.mxu0 0.0
    %779 = vmatpush2.msra.mxu0 0.0
    %780 = vmatprep.subr.mxu0 0.0
    %781 = vmatpush2.msra.mxu0 0.0
    %782 = vmatprep.subr.mxu0 0.0
    %783 = vmatpush2.msra.mxu0 0.0
    %784 = vmatprep.subr.mxu0 0.0
    %785 = vmatpush2.msra.mxu0 0.0
    %786 = vmatprep.subr.mxu0 0.0
    %787 = vmatpush2.msra.mxu0 0.0
    %788 = vmatprep.subr.mxu0 0.0
    %789 = vmatpush2.msra.mxu0 0.0
    %790 = vmatprep.subr.mxu0 0.0
    %791 = vmatpush2.msra.mxu0 0.0
    %792 = vmatprep.subr.mxu0 0.0
    %793 = vmatpush2.msra.mxu0 0.0
    %794 = vmatprep.subr.mxu0 0.0
    %795 = vmatpush2.msra.mxu0 0.0
    %796 = vmatprep.subr.mxu0 0.0
    %797 = vmatpush2.msra.mxu0 0.0
    %798 = vmatprep.subr.mxu0 0.0
    %799 = vmatpush2.msra.mxu0 0.0
    %800 = vmatprep.subr.mxu0 0.0
    %801 = vmatpush2.msra.mxu0 0.0
    %802 = vmatprep.subr.mxu0 0.0
    %803 = vmatpush2.msra.mxu0 0.0
    %804 = vmatprep.subr.mxu0 0.0
    %805 = vmatpush2.msra.mxu0 0.0
    %806 = vmatprep.subr.mxu0 0.0
    %807 = vmatpush2.msra.mxu0 0.0
    %808 = vmatprep.mubr.f32.mxu0 0.0
    %809 = vmatmul.mubr.f32.gmra.mxu0 %v585
    %v810 = vpop.f32.mrf.mxu0
    %v811 = vadd.f32 %v664, %v810
    %v812 = vpop.f32.mrf.mxu0
    %v813 = vadd.f32 %v668, %v812
    %814 = vdwg.mxu0
    %v815 = vxor.u32 %v740, 2147483648
    %v816 = vmul.f32 %v815, 1.442695
    %v817 = vpow.pop %v816
    %v818 = vadd.f32 %v817, 1.0
    %v819 = vrcp.pop %v818
    %v820 = vmul.f32 1.0, %v819
    %v821 = vxor.u32 %v742, 2147483648
    %v822 = vmul.f32 %v821, 1.442695
    %v823 = vpow.pop %v822
    %v824 = vadd.f32 %v823, 1.0
    %v825 = vrcp.pop %v824
    %v826 = vmul.f32 1.0, %v825
    %v827 = vtanh.pop %v811
    %v828 = vxor.u32 %v813, 2147483648
    %v829 = vmul.f32 %v828, 1.442695
    %v830 = vpow.pop %v829
    %v831 = vadd.f32 %v830, 1.0
    %v832 = vrcp.pop %v831
    %v833 = vmul.f32 1.0, %v832
    %v834 = vld [vmem:[#allocation5] sm:$0x1]
    %v835 = vmul.f32 %v826, %v834
    %v836 = vmul.f32 %v820, %v827
    %v837 = vadd.f32 %v835, %v836
    %v838 = vtanh.pop %v837
    %v839 = vmul.f32 %v833, %v838
    %840 = vst [vmem:[#allocation5] sm:$0x1] %v837
    %841 = vst [vmem:[#allocation4] sm:$0x1] %v839
    %842 = vst [vmem:[#allocation3 + $0x1] sm:$0x1] %v839
    %v843 = vld [vmem:[#allocation4] sm:$0x1]
    %v844 = vld [vmem:[#allocation6] sm:$0xff]
    %v845 = vld [vmem:[#allocation6 + $0x8] sm:$0xff]
    %v846 = vld [vmem:[#allocation6 + $0x10] sm:$0xff]
    %v847 = vld [vmem:[#allocation6 + $0x18] sm:$0xff]
    %v848 = vld [vmem:[#allocation6 + $0x20] sm:$0xff]
    %v849 = vld [vmem:[#allocation6 + $0x28] sm:$0xff]
    %v850 = vld [vmem:[#allocation6 + $0x30] sm:$0xff]
    %v851 = vld [vmem:[#allocation6 + $0x38] sm:$0xff]
    %v852 = vld [vmem:[#allocation6 + $0x40] sm:$0xff]
    %v853 = vld [vmem:[#allocation6 + $0x48] sm:$0xff]
    %v854 = vld [vmem:[#allocation6 + $0x50] sm:$0xff]
    %v855 = vld [vmem:[#allocation6 + $0x58] sm:$0xff]
    %v856 = vld [vmem:[#allocation6 + $0x60] sm:$0xff]
    %v857 = vld [vmem:[#allocation6 + $0x68] sm:$0xff]
    %v858 = vld [vmem:[#allocation6 + $0x70] sm:$0xff]
    %v859 = vld [vmem:[#allocation6 + $0x78] sm:$0xff]
    %v860 = vld [vmem:[#allocation6 + $0x80] sm:$0xff]
    %v861 = vld [vmem:[#allocation6 + $0x88] sm:$0xff]
    %v862 = vld [vmem:[#allocation6 + $0x90] sm:$0xff]
    %v863 = vld [vmem:[#allocation6 + $0x98] sm:$0xff]
    %v864 = vld [vmem:[#allocation6 + $0xa0] sm:$0xff]
    %v865 = vld [vmem:[#allocation6 + $0xa8] sm:$0xff]
    %v866 = vld [vmem:[#allocation6 + $0xb0] sm:$0xff]
    %v867 = vld [vmem:[#allocation6 + $0xb8] sm:$0xff]
    %v868 = vld [vmem:[#allocation6 + $0xc0] sm:$0xff]
    %v869 = vld [vmem:[#allocation6 + $0xc8] sm:$0xff]
    %v870 = vld [vmem:[#allocation6 + $0xd0] sm:$0xff]
    %v871 = vld [vmem:[#allocation6 + $0xd8] sm:$0xff]
    %v872 = vld [vmem:[#allocation6 + $0xe0] sm:$0xff]
    %v873 = vld [vmem:[#allocation6 + $0xe8] sm:$0xff]
    %v874 = vld [vmem:[#allocation6 + $0xf0] sm:$0xff]
    %v875 = vld [vmem:[#allocation6 + $0xf8] sm:$0xff]
    %v876 = vld [vmem:[#allocation6 + $0x100] sm:$0xff]
    %v877 = vld [vmem:[#allocation6 + $0x108] sm:$0xff]
    %v878 = vld [vmem:[#allocation6 + $0x110] sm:$0xff]
    %v879 = vld [vmem:[#allocation6 + $0x118] sm:$0xff]
    %v880 = vld [vmem:[#allocation6 + $0x120] sm:$0xff]
    %v881 = vld [vmem:[#allocation6 + $0x128] sm:$0xff]
    %v882 = vld [vmem:[#allocation6 + $0x130] sm:$0xff]
    %v883 = vld [vmem:[#allocation6 + $0x138] sm:$0xff]
    %v884 = vld [vmem:[#allocation6 + $0x140] sm:$0xff]
    %v885 = vld [vmem:[#allocation6 + $0x148] sm:$0xff]
    %v886 = vld [vmem:[#allocation6 + $0x150] sm:$0xff]
    %v887 = vld [vmem:[#allocation6 + $0x158] sm:$0xff]
    %v888 = vld [vmem:[#allocation6 + $0x160] sm:$0xff]
    %v889 = vld [vmem:[#allocation6 + $0x168] sm:$0xff]
    %v890 = vld [vmem:[#allocation6 + $0x170] sm:$0xff]
    %v891 = vld [vmem:[#allocation6 + $0x178] sm:$0xff]
    %v892 = vld [vmem:[#allocation6 + $0x180] sm:$0xff]
    %v893 = vld [vmem:[#allocation6 + $0x188] sm:$0xff]
    %v894 = vld [vmem:[#allocation6 + $0x190] sm:$0xff]
    %v895 = vld [vmem:[#allocation6 + $0x198] sm:$0xff]
    %v896 = vld [vmem:[#allocation6 + $0x1a0] sm:$0xff]
    %v897 = vld [vmem:[#allocation6 + $0x1a8] sm:$0xff]
    %v898 = vld [vmem:[#allocation6 + $0x1b0] sm:$0xff]
    %v899 = vld [vmem:[#allocation6 + $0x1b8] sm:$0xff]
    %v900 = vld [vmem:[#allocation6 + $0x1c0] sm:$0xff]
    %v901 = vld [vmem:[#allocation6 + $0x1c8] sm:$0xff]
    %v902 = vld [vmem:[#allocation6 + $0x1d0] sm:$0xff]
    %v903 = vld [vmem:[#allocation6 + $0x1d8] sm:$0xff]
    %v904 = vld [vmem:[#allocation6 + $0x1e0] sm:$0xff]
    %v905 = vld [vmem:[#allocation6 + $0x1e8] sm:$0xff]
    %v906 = vld [vmem:[#allocation6 + $0x1f0] sm:$0xff]
    %v907 = vld [vmem:[#allocation6 + $0x1f8] sm:$0xff]
    %s908 = scalar_lea.vmem [#allocation2], 2
    %v909 = vld [vmem:[%s908] ss:$8 sm:$0xf]
    %v911 = vlaneseq
    %v912 = vshrl.u32 %v911, 7
    %v913 = vsub.s32 0, %v912
    %v914 = vrot.slane %v909, %v913
    %v915 = vlaneseq
    %v916 = vshrl.u32 %v915, 7
    %v917 = vsub.s32 1, %v916
    %v918 = vrot.slane %v909, %v917
    %v919 = vlaneseq
    %v920 = vshrl.u32 %v919, 7
    %v921 = vsub.s32 2, %v920
    %v922 = vrot.slane %v909, %v921
    %v923 = vlaneseq
    %v924 = vshrl.u32 %v923, 7
    %v925 = vsub.s32 3, %v924
    %v926 = vrot.slane %v909, %v925
    %931 = vmatprep.subr.mxu0 %v905
    %932 = vmatpush1.msra.mxu0 %v904
    %933 = vmatprep.subr.mxu0 %v901
    %934 = vmatpush1.msra.mxu0 %v900
    %935 = vmatprep.subr.mxu0 %v897
    %936 = vmatpush1.msra.mxu0 %v896
    %937 = vmatprep.subr.mxu0 %v893
    %938 = vmatpush1.msra.mxu0 %v892
    %939 = vmatprep.subr.mxu0 %v889
    %940 = vmatpush1.msra.mxu0 %v888
    %941 = vmatprep.subr.mxu0 %v885
    %942 = vmatpush1.msra.mxu0 %v884
    %943 = vmatprep.subr.mxu0 %v881
    %944 = vmatpush1.msra.mxu0 %v880
    %945 = vmatprep.subr.mxu0 %v877
    %946 = vmatpush1.msra.mxu0 %v876
    %947 = vmatprep.subr.mxu0 %v873
    %948 = vmatpush1.msra.mxu0 %v872
    %949 = vmatprep.subr.mxu0 %v869
    %950 = vmatpush1.msra.mxu0 %v868
    %951 = vmatprep.subr.mxu0 %v865
    %952 = vmatpush1.msra.mxu0 %v864
    %953 = vmatprep.subr.mxu0 %v861
    %954 = vmatpush1.msra.mxu0 %v860
    %955 = vmatprep.subr.mxu0 %v857
    %956 = vmatpush1.msra.mxu0 %v856
    %957 = vmatprep.subr.mxu0 %v853
    %958 = vmatpush1.msra.mxu0 %v852
    %959 = vmatprep.subr.mxu0 %v849
    %960 = vmatpush1.msra.mxu0 %v848
    %961 = vmatprep.subr.mxu0 %v845
    %962 = vmatpush1.msra.mxu0 %v844
    %963 = vmatprep.subr.mxu0 0.0
    %964 = vmatpush2.msra.mxu0 0.0
    %965 = vmatprep.subr.mxu0 0.0
    %966 = vmatpush2.msra.mxu0 0.0
    %967 = vmatprep.subr.mxu0 0.0
    %968 = vmatpush2.msra.mxu0 0.0
    %969 = vmatprep.subr.mxu0 0.0
    %970 = vmatpush2.msra.mxu0 0.0
    %971 = vmatprep.subr.mxu0 0.0
    %972 = vmatpush2.msra.mxu0 0.0
    %973 = vmatprep.subr.mxu0 0.0
    %974 = vmatpush2.msra.mxu0 0.0
    %975 = vmatprep.subr.mxu0 0.0
    %976 = vmatpush2.msra.mxu0 0.0
    %977 = vmatprep.subr.mxu0 0.0
    %978 = vmatpush2.msra.mxu0 0.0
    %979 = vmatprep.subr.mxu0 0.0
    %980 = vmatpush2.msra.mxu0 0.0
    %981 = vmatprep.subr.mxu0 0.0
    %982 = vmatpush2.msra.mxu0 0.0
    %983 = vmatprep.subr.mxu0 0.0
    %984 = vmatpush2.msra.mxu0 0.0
    %985 = vmatprep.subr.mxu0 0.0
    %986 = vmatpush2.msra.mxu0 0.0
    %987 = vmatprep.subr.mxu0 0.0
    %988 = vmatpush2.msra.mxu0 0.0
    %989 = vmatprep.subr.mxu0 0.0
    %990 = vmatpush2.msra.mxu0 0.0
    %991 = vmatprep.subr.mxu0 0.0
    %992 = vmatpush2.msra.mxu0 0.0
    %993 = vmatprep.subr.mxu0 0.0
    %994 = vmatpush2.msra.mxu0 0.0
    %995 = vmatprep.mubr.f32.mxu0 0.0
    %996 = vmatmul.mubr.f32.gmra.mxu0 %v843
    %v997 = vpop.f32.mrf.mxu0
    %v998 = vadd.f32 %v914, %v997
    %v999 = vpop.f32.mrf.mxu0
    %v1000 = vadd.f32 %v918, %v999
    %1001 = vdwg.mxu0
    %1002 = vmatprep.subr.mxu0 %v907
    %1003 = vmatpush1.msra.mxu0 %v906
    %1004 = vmatprep.subr.mxu0 %v903
    %1005 = vmatpush1.msra.mxu0 %v902
    %1006 = vmatprep.subr.mxu0 %v899
    %1007 = vmatpush1.msra.mxu0 %v898
    %1008 = vmatprep.subr.mxu0 %v895
    %1009 = vmatpush1.msra.mxu0 %v894
    %1010 = vmatprep.subr.mxu0 %v891
    %1011 = vmatpush1.msra.mxu0 %v890
    %1012 = vmatprep.subr.mxu0 %v887
    %1013 = vmatpush1.msra.mxu0 %v886
    %1014 = vmatprep.subr.mxu0 %v883
    %1015 = vmatpush1.msra.mxu0 %v882
    %1016 = vmatprep.subr.mxu0 %v879
    %1017 = vmatpush1.msra.mxu0 %v878
    %1018 = vmatprep.subr.mxu0 %v875
    %1019 = vmatpush1.msra.mxu0 %v874
    %1020 = vmatprep.subr.mxu0 %v871
    %1021 = vmatpush1.msra.mxu0 %v870
    %1022 = vmatprep.subr.mxu0 %v867
    %1023 = vmatpush1.msra.mxu0 %v866
    %1024 = vmatprep.subr.mxu0 %v863
    %1025 = vmatpush1.msra.mxu0 %v862
    %1026 = vmatprep.subr.mxu0 %v859
    %1027 = vmatpush1.msra.mxu0 %v858
    %1028 = vmatprep.subr.mxu0 %v855
    %1029 = vmatpush1.msra.mxu0 %v854
    %1030 = vmatprep.subr.mxu0 %v851
    %1031 = vmatpush1.msra.mxu0 %v850
    %1032 = vmatprep.subr.mxu0 %v847
    %1033 = vmatpush1.msra.mxu0 %v846
    %1034 = vmatprep.subr.mxu0 0.0
    %1035 = vmatpush2.msra.mxu0 0.0
    %1036 = vmatprep.subr.mxu0 0.0
    %1037 = vmatpush2.msra.mxu0 0.0
    %1038 = vmatprep.subr.mxu0 0.0
    %1039 = vmatpush2.msra.mxu0 0.0
    %1040 = vmatprep.subr.mxu0 0.0
    %1041 = vmatpush2.msra.mxu0 0.0
    %1042 = vmatprep.subr.mxu0 0.0
    %1043 = vmatpush2.msra.mxu0 0.0
    %1044 = vmatprep.subr.mxu0 0.0
    %1045 = vmatpush2.msra.mxu0 0.0
    %1046 = vmatprep.subr.mxu0 0.0
    %1047 = vmatpush2.msra.mxu0 0.0
    %1048 = vmatprep.subr.mxu0 0.0
    %1049 = vmatpush2.msra.mxu0 0.0
    %1050 = vmatprep.subr.mxu0 0.0
    %1051 = vmatpush2.msra.mxu0 0.0
    %1052 = vmatprep.subr.mxu0 0.0
    %1053 = vmatpush2.msra.mxu0 0.0
    %1054 = vmatprep.subr.mxu0 0.0
    %1055 = vmatpush2.msra.mxu0 0.0
    %1056 = vmatprep.subr.mxu0 0.0
    %1057 = vmatpush2.msra.mxu0 0.0
    %1058 = vmatprep.subr.mxu0 0.0
    %1059 = vmatpush2.msra.mxu0 0.0
    %1060 = vmatprep.subr.mxu0 0.0
    %1061 = vmatpush2.msra.mxu0 0.0
    %1062 = vmatprep.subr.mxu0 0.0
    %1063 = vmatpush2.msra.mxu0 0.0
    %1064 = vmatprep.subr.mxu0 0.0
    %1065 = vmatpush2.msra.mxu0 0.0
    %1066 = vmatprep.mubr.f32.mxu0 0.0
    %1067 = vmatmul.mubr.f32.gmra.mxu0 %v843
    %v1068 = vpop.f32.mrf.mxu0
    %v1069 = vadd.f32 %v922, %v1068
    %v1070 = vpop.f32.mrf.mxu0
    %v1071 = vadd.f32 %v926, %v1070
    %1072 = vdwg.mxu0
    %v1073 = vxor.u32 %v998, 2147483648
    %v1074 = vmul.f32 %v1073, 1.442695
    %v1075 = vpow.pop %v1074
    %v1076 = vadd.f32 %v1075, 1.0
    %v1077 = vrcp.pop %v1076
    %v1078 = vmul.f32 1.0, %v1077
    %v1079 = vxor.u32 %v1000, 2147483648
    %v1080 = vmul.f32 %v1079, 1.442695
    %v1081 = vpow.pop %v1080
    %v1082 = vadd.f32 %v1081, 1.0
    %v1083 = vrcp.pop %v1082
    %v1084 = vmul.f32 1.0, %v1083
    %v1085 = vtanh.pop %v1069
    %v1086 = vxor.u32 %v1071, 2147483648
    %v1087 = vmul.f32 %v1086, 1.442695
    %v1088 = vpow.pop %v1087
    %v1089 = vadd.f32 %v1088, 1.0
    %v1090 = vrcp.pop %v1089
    %v1091 = vmul.f32 1.0, %v1090
    %v1092 = vld [vmem:[#allocation5] sm:$0x1]
    %v1093 = vmul.f32 %v1084, %v1092
    %v1094 = vmul.f32 %v1078, %v1085
    %v1095 = vadd.f32 %v1093, %v1094
    %v1096 = vtanh.pop %v1095
    %v1097 = vmul.f32 %v1091, %v1096
    %1098 = vst [vmem:[#allocation5] sm:$0x1] %v1095
    %1099 = vst [vmem:[#allocation4] sm:$0x1] %v1097
    %1100 = vst [vmem:[#allocation3 + $0x2] sm:$0x1] %v1097
    %v1101 = vld [vmem:[#allocation4] sm:$0x1]
    %v1102 = vld [vmem:[#allocation6] sm:$0xff]
    %v1103 = vld [vmem:[#allocation6 + $0x8] sm:$0xff]
    %v1104 = vld [vmem:[#allocation6 + $0x10] sm:$0xff]
    %v1105 = vld [vmem:[#allocation6 + $0x18] sm:$0xff]
    %v1106 = vld [vmem:[#allocation6 + $0x20] sm:$0xff]
    %v1107 = vld [vmem:[#allocation6 + $0x28] sm:$0xff]
    %v1108 = vld [vmem:[#allocation6 + $0x30] sm:$0xff]
    %v1109 = vld [vmem:[#allocation6 + $0x38] sm:$0xff]
    %v1110 = vld [vmem:[#allocation6 + $0x40] sm:$0xff]
    %v1111 = vld [vmem:[#allocation6 + $0x48] sm:$0xff]
    %v1112 = vld [vmem:[#allocation6 + $0x50] sm:$0xff]
    %v1113 = vld [vmem:[#allocation6 + $0x58] sm:$0xff]
    %v1114 = vld [vmem:[#allocation6 + $0x60] sm:$0xff]
    %v1115 = vld [vmem:[#allocation6 + $0x68] sm:$0xff]
    %v1116 = vld [vmem:[#allocation6 + $0x70] sm:$0xff]
    %v1117 = vld [vmem:[#allocation6 + $0x78] sm:$0xff]
    %v1118 = vld [vmem:[#allocation6 + $0x80] sm:$0xff]
    %v1119 = vld [vmem:[#allocation6 + $0x88] sm:$0xff]
    %v1120 = vld [vmem:[#allocation6 + $0x90] sm:$0xff]
    %v1121 = vld [vmem:[#allocation6 + $0x98] sm:$0xff]
    %v1122 = vld [vmem:[#allocation6 + $0xa0] sm:$0xff]
    %v1123 = vld [vmem:[#allocation6 + $0xa8] sm:$0xff]
    %v1124 = vld [vmem:[#allocation6 + $0xb0] sm:$0xff]
    %v1125 = vld [vmem:[#allocation6 + $0xb8] sm:$0xff]
    %v1126 = vld [vmem:[#allocation6 + $0xc0] sm:$0xff]
    %v1127 = vld [vmem:[#allocation6 + $0xc8] sm:$0xff]
    %v1128 = vld [vmem:[#allocation6 + $0xd0] sm:$0xff]
    %v1129 = vld [vmem:[#allocation6 + $0xd8] sm:$0xff]
    %v1130 = vld [vmem:[#allocation6 + $0xe0] sm:$0xff]
    %v1131 = vld [vmem:[#allocation6 + $0xe8] sm:$0xff]
    %v1132 = vld [vmem:[#allocation6 + $0xf0] sm:$0xff]
    %v1133 = vld [vmem:[#allocation6 + $0xf8] sm:$0xff]
    %v1134 = vld [vmem:[#allocation6 + $0x100] sm:$0xff]
    %v1135 = vld [vmem:[#allocation6 + $0x108] sm:$0xff]
    %v1136 = vld [vmem:[#allocation6 + $0x110] sm:$0xff]
    %v1137 = vld [vmem:[#allocation6 + $0x118] sm:$0xff]
    %v1138 = vld [vmem:[#allocation6 + $0x120] sm:$0xff]
    %v1139 = vld [vmem:[#allocation6 + $0x128] sm:$0xff]
    %v1140 = vld [vmem:[#allocation6 + $0x130] sm:$0xff]
    %v1141 = vld [vmem:[#allocation6 + $0x138] sm:$0xff]
    %v1142 = vld [vmem:[#allocation6 + $0x140] sm:$0xff]
    %v1143 = vld [vmem:[#allocation6 + $0x148] sm:$0xff]
    %v1144 = vld [vmem:[#allocation6 + $0x150] sm:$0xff]
    %v1145 = vld [vmem:[#allocation6 + $0x158] sm:$0xff]
    %v1146 = vld [vmem:[#allocation6 + $0x160] sm:$0xff]
    %v1147 = vld [vmem:[#allocation6 + $0x168] sm:$0xff]
    %v1148 = vld [vmem:[#allocation6 + $0x170] sm:$0xff]
    %v1149 = vld [vmem:[#allocation6 + $0x178] sm:$0xff]
    %v1150 = vld [vmem:[#allocation6 + $0x180] sm:$0xff]
    %v1151 = vld [vmem:[#allocation6 + $0x188] sm:$0xff]
    %v1152 = vld [vmem:[#allocation6 + $0x190] sm:$0xff]
    %v1153 = vld [vmem:[#allocation6 + $0x198] sm:$0xff]
    %v1154 = vld [vmem:[#allocation6 + $0x1a0] sm:$0xff]
    %v1155 = vld [vmem:[#allocation6 + $0x1a8] sm:$0xff]
    %v1156 = vld [vmem:[#allocation6 + $0x1b0] sm:$0xff]
    %v1157 = vld [vmem:[#allocation6 + $0x1b8] sm:$0xff]
    %v1158 = vld [vmem:[#allocation6 + $0x1c0] sm:$0xff]
    %v1159 = vld [vmem:[#allocation6 + $0x1c8] sm:$0xff]
    %v1160 = vld [vmem:[#allocation6 + $0x1d0] sm:$0xff]
    %v1161 = vld [vmem:[#allocation6 + $0x1d8] sm:$0xff]
    %v1162 = vld [vmem:[#allocation6 + $0x1e0] sm:$0xff]
    %v1163 = vld [vmem:[#allocation6 + $0x1e8] sm:$0xff]
    %v1164 = vld [vmem:[#allocation6 + $0x1f0] sm:$0xff]
    %v1165 = vld [vmem:[#allocation6 + $0x1f8] sm:$0xff]
    %s1166 = scalar_lea.vmem [#allocation2], 3
    %v1167 = vld [vmem:[%s1166] ss:$8 sm:$0xf]
    %v1169 = vlaneseq
    %v1170 = vshrl.u32 %v1169, 7
    %v1171 = vsub.s32 0, %v1170
    %v1172 = vrot.slane %v1167, %v1171
    %v1173 = vlaneseq
    %v1174 = vshrl.u32 %v1173, 7
    %v1175 = vsub.s32 1, %v1174
    %v1176 = vrot.slane %v1167, %v1175
    %v1177 = vlaneseq
    %v1178 = vshrl.u32 %v1177, 7
    %v1179 = vsub.s32 2, %v1178
    %v1180 = vrot.slane %v1167, %v1179
    %v1181 = vlaneseq
    %v1182 = vshrl.u32 %v1181, 7
    %v1183 = vsub.s32 3, %v1182
    %v1184 = vrot.slane %v1167, %v1183
    %1189 = vmatprep.subr.mxu0 %v1163
    %1190 = vmatpush1.msra.mxu0 %v1162
    %1191 = vmatprep.subr.mxu0 %v1159
    %1192 = vmatpush1.msra.mxu0 %v1158
    %1193 = vmatprep.subr.mxu0 %v1155
    %1194 = vmatpush1.msra.mxu0 %v1154
    %1195 = vmatprep.subr.mxu0 %v1151
    %1196 = vmatpush1.msra.mxu0 %v1150
    %1197 = vmatprep.subr.mxu0 %v1147
    %1198 = vmatpush1.msra.mxu0 %v1146
    %1199 = vmatprep.subr.mxu0 %v1143
    %1200 = vmatpush1.msra.mxu0 %v1142
    %1201 = vmatprep.subr.mxu0 %v1139
    %1202 = vmatpush1.msra.mxu0 %v1138
    %1203 = vmatprep.subr.mxu0 %v1135
    %1204 = vmatpush1.msra.mxu0 %v1134
    %1205 = vmatprep.subr.mxu0 %v1131
    %1206 = vmatpush1.msra.mxu0 %v1130
    %1207 = vmatprep.subr.mxu0 %v1127
    %1208 = vmatpush1.msra.mxu0 %v1126
    %1209 = vmatprep.subr.mxu0 %v1123
    %1210 = vmatpush1.msra.mxu0 %v1122
    %1211 = vmatprep.subr.mxu0 %v1119
    %1212 = vmatpush1.msra.mxu0 %v1118
    %1213 = vmatprep.subr.mxu0 %v1115
    %1214 = vmatpush1.msra.mxu0 %v1114
    %1215 = vmatprep.subr.mxu0 %v1111
    %1216 = vmatpush1.msra.mxu0 %v1110
    %1217 = vmatprep.subr.mxu0 %v1107
    %1218 = vmatpush1.msra.mxu0 %v1106
    %1219 = vmatprep.subr.mxu0 %v1103
    %1220 = vmatpush1.msra.mxu0 %v1102
    %1221 = vmatprep.subr.mxu0 0.0
    %1222 = vmatpush2.msra.mxu0 0.0
    %1223 = vmatprep.subr.mxu0 0.0
    %1224 = vmatpush2.msra.mxu0 0.0
    %1225 = vmatprep.subr.mxu0 0.0
    %1226 = vmatpush2.msra.mxu0 0.0
    %1227 = vmatprep.subr.mxu0 0.0
    %1228 = vmatpush2.msra.mxu0 0.0
    %1229 = vmatprep.subr.mxu0 0.0
    %1230 = vmatpush2.msra.mxu0 0.0
    %1231 = vmatprep.subr.mxu0 0.0
    %1232 = vmatpush2.msra.mxu0 0.0
    %1233 = vmatprep.subr.mxu0 0.0
    %1234 = vmatpush2.msra.mxu0 0.0
    %1235 = vmatprep.subr.mxu0 0.0
    %1236 = vmatpush2.msra.mxu0 0.0
    %1237 = vmatprep.subr.mxu0 0.0
    %1238 = vmatpush2.msra.mxu0 0.0
    %1239 = vmatprep.subr.mxu0 0.0
    %1240 = vmatpush2.msra.mxu0 0.0
    %1241 = vmatprep.subr.mxu0 0.0
    %1242 = vmatpush2.msra.mxu0 0.0
    %1243 = vmatprep.subr.mxu0 0.0
    %1244 = vmatpush2.msra.mxu0 0.0
    %1245 = vmatprep.subr.mxu0 0.0
    %1246 = vmatpush2.msra.mxu0 0.0
    %1247 = vmatprep.subr.mxu0 0.0
    %1248 = vmatpush2.msra.mxu0 0.0
    %1249 = vmatprep.subr.mxu0 0.0
    %1250 = vmatpush2.msra.mxu0 0.0
    %1251 = vmatprep.subr.mxu0 0.0
    %1252 = vmatpush2.msra.mxu0 0.0
    %1253 = vmatprep.mubr.f32.mxu0 0.0
    %1254 = vmatmul.mubr.f32.gmra.mxu0 %v1101
    %v1255 = vpop.f32.mrf.mxu0
    %v1256 = vadd.f32 %v1172, %v1255
    %v1257 = vpop.f32.mrf.mxu0
    %v1258 = vadd.f32 %v1176, %v1257
    %1259 = vdwg.mxu0
    %1260 = vmatprep.subr.mxu0 %v1165
    %1261 = vmatpush1.msra.mxu0 %v1164
    %1262 = vmatprep.subr.mxu0 %v1161
    %1263 = vmatpush1.msra.mxu0 %v1160
    %1264 = vmatprep.subr.mxu0 %v1157
    %1265 = vmatpush1.msra.mxu0 %v1156
    %1266 = vmatprep.subr.mxu0 %v1153
    %1267 = vmatpush1.msra.mxu0 %v1152
    %1268 = vmatprep.subr.mxu0 %v1149
    %1269 = vmatpush1.msra.mxu0 %v1148
    %1270 = vmatprep.subr.mxu0 %v1145
    %1271 = vmatpush1.msra.mxu0 %v1144
    %1272 = vmatprep.subr.mxu0 %v1141
    %1273 = vmatpush1.msra.mxu0 %v1140
    %1274 = vmatprep.subr.mxu0 %v1137
    %1275 = vmatpush1.msra.mxu0 %v1136
    %1276 = vmatprep.subr.mxu0 %v1133
    %1277 = vmatpush1.msra.mxu0 %v1132
    %1278 = vmatprep.subr.mxu0 %v1129
    %1279 = vmatpush1.msra.mxu0 %v1128
    %1280 = vmatprep.subr.mxu0 %v1125
    %1281 = vmatpush1.msra.mxu0 %v1124
    %1282 = vmatprep.subr.mxu0 %v1121
    %1283 = vmatpush1.msra.mxu0 %v1120
    %1284 = vmatprep.subr.mxu0 %v1117
    %1285 = vmatpush1.msra.mxu0 %v1116
    %1286 = vmatprep.subr.mxu0 %v1113
    %1287 = vmatpush1.msra.mxu0 %v1112
    %1288 = vmatprep.subr.mxu0 %v1109
    %1289 = vmatpush1.msra.mxu0 %v1108
    %1290 = vmatprep.subr.mxu0 %v1105
    %1291 = vmatpush1.msra.mxu0 %v1104
    %1292 = vmatprep.subr.mxu0 0.0
    %1293 = vmatpush2.msra.mxu0 0.0
    %1294 = vmatprep.subr.mxu0 0.0
    %1295 = vmatpush2.msra.mxu0 0.0
    %1296 = vmatprep.subr.mxu0 0.0
    %1297 = vmatpush2.msra.mxu0 0.0
    %1298 = vmatprep.subr.mxu0 0.0
    %1299 = vmatpush2.msra.mxu0 0.0
    %1300 = vmatprep.subr.mxu0 0.0
    %1301 = vmatpush2.msra.mxu0 0.0
    %1302 = vmatprep.subr.mxu0 0.0
    %1303 = vmatpush2.msra.mxu0 0.0
    %1304 = vmatprep.subr.mxu0 0.0
    %1305 = vmatpush2.msra.mxu0 0.0
    %1306 = vmatprep.subr.mxu0 0.0
    %1307 = vmatpush2.msra.mxu0 0.0
    %1308 = vmatprep.subr.mxu0 0.0
    %1309 = vmatpush2.msra.mxu0 0.0
    %1310 = vmatprep.subr.mxu0 0.0
    %1311 = vmatpush2.msra.mxu0 0.0
    %1312 = vmatprep.subr.mxu0 0.0
    %1313 = vmatpush2.msra.mxu0 0.0
    %1314 = vmatprep.subr.mxu0 0.0
    %1315 = vmatpush2.msra.mxu0 0.0
    %1316 = vmatprep.subr.mxu0 0.0
    %1317 = vmatpush2.msra.mxu0 0.0
    %1318 = vmatprep.subr.mxu0 0.0
    %1319 = vmatpush2.msra.mxu0 0.0
    %1320 = vmatprep.subr.mxu0 0.0
    %1321 = vmatpush2.msra.mxu0 0.0
    %1322 = vmatprep.subr.mxu0 0.0
    %1323 = vmatpush2.msra.mxu0 0.0
    %1324 = vmatprep.mubr.f32.mxu0 0.0
    %1325 = vmatmul.mubr.f32.gmra.mxu0 %v1101
    %v1326 = vpop.f32.mrf.mxu0
    %v1327 = vadd.f32 %v1180, %v1326
    %v1328 = vpop.f32.mrf.mxu0
    %v1329 = vadd.f32 %v1184, %v1328
    %1330 = vdwg.mxu0
    %v1331 = vxor.u32 %v1256, 2147483648
    %v1332 = vmul.f32 %v1331, 1.442695
    %v1333 = vpow.pop %v1332
    %v1334 = vadd.f32 %v1333, 1.0
    %v1335 = vrcp.pop %v1334
    %v1336 = vmul.f32 1.0, %v1335
    %v1337 = vxor.u32 %v1258, 2147483648
    %v1338 = vmul.f32 %v1337, 1.442695
    %v1339 = vpow.pop %v1338
    %v1340 = vadd.f32 %v1339, 1.0
    %v1341 = vrcp.pop %v1340
    %v1342 = vmul.f32 1.0, %v1341
    %v1343 = vtanh.pop %v1327
    %v1344 = vxor.u32 %v1329, 2147483648
    %v1345 = vmul.f32 %v1344, 1.442695
    %v1346 = vpow.pop %v1345
    %v1347 = vadd.f32 %v1346, 1.0
    %v1348 = vrcp.pop %v1347
    %v1349 = vmul.f32 1.0, %v1348
    %v1350 = vld [vmem:[#allocation5] sm:$0x1]
    %v1351 = vmul.f32 %v1342, %v1350
    %v1352 = vmul.f32 %v1336, %v1343
    %v1353 = vadd.f32 %v1351, %v1352
    %v1354 = vtanh.pop %v1353
    %v1355 = vmul.f32 %v1349, %v1354
    %1356 = vst [vmem:[#allocation5] sm:$0x1] %v1353
    %1357 = vst [vmem:[#allocation4] sm:$0x1] %v1355
    %1358 = vst [vmem:[#allocation3 + $0x3] sm:$0x1] %v1355
    %v1359 = vld [vmem:[#allocation4] sm:$0x1]
    %v1360 = vld [vmem:[#allocation6] sm:$0xff]
    %v1361 = vld [vmem:[#allocation6 + $0x8] sm:$0xff]
    %v1362 = vld [vmem:[#allocation6 + $0x10] sm:$0xff]
    %v1363 = vld [vmem:[#allocation6 + $0x18] sm:$0xff]
    %v1364 = vld [vmem:[#allocation6 + $0x20] sm:$0xff]
    %v1365 = vld [vmem:[#allocation6 + $0x28] sm:$0xff]
    %v1366 = vld [vmem:[#allocation6 + $0x30] sm:$0xff]
    %v1367 = vld [vmem:[#allocation6 + $0x38] sm:$0xff]
    %v1368 = vld [vmem:[#allocation6 + $0x40] sm:$0xff]
    %v1369 = vld [vmem:[#allocation6 + $0x48] sm:$0xff]
    %v1370 = vld [vmem:[#allocation6 + $0x50] sm:$0xff]
    %v1371 = vld [vmem:[#allocation6 + $0x58] sm:$0xff]
    %v1372 = vld [vmem:[#allocation6 + $0x60] sm:$0xff]
    %v1373 = vld [vmem:[#allocation6 + $0x68] sm:$0xff]
    %v1374 = vld [vmem:[#allocation6 + $0x70] sm:$0xff]
    %v1375 = vld [vmem:[#allocation6 + $0x78] sm:$0xff]
    %v1376 = vld [vmem:[#allocation6 + $0x80] sm:$0xff]
    %v1377 = vld [vmem:[#allocation6 + $0x88] sm:$0xff]
    %v1378 = vld [vmem:[#allocation6 + $0x90] sm:$0xff]
    %v1379 = vld [vmem:[#allocation6 + $0x98] sm:$0xff]
    %v1380 = vld [vmem:[#allocation6 + $0xa0] sm:$0xff]
    %v1381 = vld [vmem:[#allocation6 + $0xa8] sm:$0xff]
    %v1382 = vld [vmem:[#allocation6 + $0xb0] sm:$0xff]
    %v1383 = vld [vmem:[#allocation6 + $0xb8] sm:$0xff]
    %v1384 = vld [vmem:[#allocation6 + $0xc0] sm:$0xff]
    %v1385 = vld [vmem:[#allocation6 + $0xc8] sm:$0xff]
    %v1386 = vld [vmem:[#allocation6 + $0xd0] sm:$0xff]
    %v1387 = vld [vmem:[#allocation6 + $0xd8] sm:$0xff]
    %v1388 = vld [vmem:[#allocation6 + $0xe0] sm:$0xff]
    %v1389 = vld [vmem:[#allocation6 + $0xe8] sm:$0xff]
    %v1390 = vld [vmem:[#allocation6 + $0xf0] sm:$0xff]
    %v1391 = vld [vmem:[#allocation6 + $0xf8] sm:$0xff]
    %v1392 = vld [vmem:[#allocation6 + $0x100] sm:$0xff]
    %v1393 = vld [vmem:[#allocation6 + $0x108] sm:$0xff]
    %v1394 = vld [vmem:[#allocation6 + $0x110] sm:$0xff]
    %v1395 = vld [vmem:[#allocation6 + $0x118] sm:$0xff]
    %v1396 = vld [vmem:[#allocation6 + $0x120] sm:$0xff]
    %v1397 = vld [vmem:[#allocation6 + $0x128] sm:$0xff]
    %v1398 = vld [vmem:[#allocation6 + $0x130] sm:$0xff]
    %v1399 = vld [vmem:[#allocation6 + $0x138] sm:$0xff]
    %v1400 = vld [vmem:[#allocation6 + $0x140] sm:$0xff]
    %v1401 = vld [vmem:[#allocation6 + $0x148] sm:$0xff]
    %v1402 = vld [vmem:[#allocation6 + $0x150] sm:$0xff]
    %v1403 = vld [vmem:[#allocation6 + $0x158] sm:$0xff]
    %v1404 = vld [vmem:[#allocation6 + $0x160] sm:$0xff]
    %v1405 = vld [vmem:[#allocation6 + $0x168] sm:$0xff]
    %v1406 = vld [vmem:[#allocation6 + $0x170] sm:$0xff]
    %v1407 = vld [vmem:[#allocation6 + $0x178] sm:$0xff]
    %v1408 = vld [vmem:[#allocation6 + $0x180] sm:$0xff]
    %v1409 = vld [vmem:[#allocation6 + $0x188] sm:$0xff]
    %v1410 = vld [vmem:[#allocation6 + $0x190] sm:$0xff]
    %v1411 = vld [vmem:[#allocation6 + $0x198] sm:$0xff]
    %v1412 = vld [vmem:[#allocation6 + $0x1a0] sm:$0xff]
    %v1413 = vld [vmem:[#allocation6 + $0x1a8] sm:$0xff]
    %v1414 = vld [vmem:[#allocation6 + $0x1b0] sm:$0xff]
    %v1415 = vld [vmem:[#allocation6 + $0x1b8] sm:$0xff]
    %v1416 = vld [vmem:[#allocation6 + $0x1c0] sm:$0xff]
    %v1417 = vld [vmem:[#allocation6 + $0x1c8] sm:$0xff]
    %v1418 = vld [vmem:[#allocation6 + $0x1d0] sm:$0xff]
    %v1419 = vld [vmem:[#allocation6 + $0x1d8] sm:$0xff]
    %v1420 = vld [vmem:[#allocation6 + $0x1e0] sm:$0xff]
    %v1421 = vld [vmem:[#allocation6 + $0x1e8] sm:$0xff]
    %v1422 = vld [vmem:[#allocation6 + $0x1f0] sm:$0xff]
    %v1423 = vld [vmem:[#allocation6 + $0x1f8] sm:$0xff]
    %s1424 = scalar_lea.vmem [#allocation2], 4
    %v1425 = vld [vmem:[%s1424] ss:$8 sm:$0xf]
    %v1427 = vlaneseq
    %v1428 = vshrl.u32 %v1427, 7
    %v1429 = vsub.s32 0, %v1428
    %v1430 = vrot.slane %v1425, %v1429
    %v1431 = vlaneseq
    %v1432 = vshrl.u32 %v1431, 7
    %v1433 = vsub.s32 1, %v1432
    %v1434 = vrot.slane %v1425, %v1433
    %v1435 = vlaneseq
    %v1436 = vshrl.u32 %v1435, 7
    %v1437 = vsub.s32 2, %v1436
    %v1438 = vrot.slane %v1425, %v1437
    %v1439 = vlaneseq
    %v1440 = vshrl.u32 %v1439, 7
    %v1441 = vsub.s32 3, %v1440
    %v1442 = vrot.slane %v1425, %v1441
    %1447 = vmatprep.subr.mxu0 %v1421
    %1448 = vmatpush1.msra.mxu0 %v1420
    %1449 = vmatprep.subr.mxu0 %v1417
    %1450 = vmatpush1.msra.mxu0 %v1416
    %1451 = vmatprep.subr.mxu0 %v1413
    %1452 = vmatpush1.msra.mxu0 %v1412
    %1453 = vmatprep.subr.mxu0 %v1409
    %1454 = vmatpush1.msra.mxu0 %v1408
    %1455 = vmatprep.subr.mxu0 %v1405
    %1456 = vmatpush1.msra.mxu0 %v1404
    %1457 = vmatprep.subr.mxu0 %v1401
    %1458 = vmatpush1.msra.mxu0 %v1400
    %1459 = vmatprep.subr.mxu0 %v1397
    %1460 = vmatpush1.msra.mxu0 %v1396
    %1461 = vmatprep.subr.mxu0 %v1393
    %1462 = vmatpush1.msra.mxu0 %v1392
    %1463 = vmatprep.subr.mxu0 %v1389
    %1464 = vmatpush1.msra.mxu0 %v1388
    %1465 = vmatprep.subr.mxu0 %v1385
    %1466 = vmatpush1.msra.mxu0 %v1384
    %1467 = vmatprep.subr.mxu0 %v1381
    %1468 = vmatpush1.msra.mxu0 %v1380
    %1469 = vmatprep.subr.mxu0 %v1377
    %1470 = vmatpush1.msra.mxu0 %v1376
    %1471 = vmatprep.subr.mxu0 %v1373
    %1472 = vmatpush1.msra.mxu0 %v1372
    %1473 = vmatprep.subr.mxu0 %v1369
    %1474 = vmatpush1.msra.mxu0 %v1368
    %1475 = vmatprep.subr.mxu0 %v1365
    %1476 = vmatpush1.msra.mxu0 %v1364
    %1477 = vmatprep.subr.mxu0 %v1361
    %1478 = vmatpush1.msra.mxu0 %v1360
    %1479 = vmatprep.subr.mxu0 0.0
    %1480 = vmatpush2.msra.mxu0 0.0
    %1481 = vmatprep.subr.mxu0 0.0
    %1482 = vmatpush2.msra.mxu0 0.0
    %1483 = vmatprep.subr.mxu0 0.0
    %1484 = vmatpush2.msra.mxu0 0.0
    %1485 = vmatprep.subr.mxu0 0.0
    %1486 = vmatpush2.msra.mxu0 0.0
    %1487 = vmatprep.subr.mxu0 0.0
    %1488 = vmatpush2.msra.mxu0 0.0
    %1489 = vmatprep.subr.mxu0 0.0
    %1490 = vmatpush2.msra.mxu0 0.0
    %1491 = vmatprep.subr.mxu0 0.0
    %1492 = vmatpush2.msra.mxu0 0.0
    %1493 = vmatprep.subr.mxu0 0.0
    %1494 = vmatpush2.msra.mxu0 0.0
    %1495 = vmatprep.subr.mxu0 0.0
    %1496 = vmatpush2.msra.mxu0 0.0
    %1497 = vmatprep.subr.mxu0 0.0
    %1498 = vmatpush2.msra.mxu0 0.0
    %1499 = vmatprep.subr.mxu0 0.0
    %1500 = vmatpush2.msra.mxu0 0.0
    %1501 = vmatprep.subr.mxu0 0.0
    %1502 = vmatpush2.msra.mxu0 0.0
    %1503 = vmatprep.subr.mxu0 0.0
    %1504 = vmatpush2.msra.mxu0 0.0
    %1505 = vmatprep.subr.mxu0 0.0
    %1506 = vmatpush2.msra.mxu0 0.0
    %1507 = vmatprep.subr.mxu0 0.0
    %1508 = vmatpush2.msra.mxu0 0.0
    %1509 = vmatprep.subr.mxu0 0.0
    %1510 = vmatpush2.msra.mxu0 0.0
    %1511 = vmatprep.mubr.f32.mxu0 0.0
    %1512 = vmatmul.mubr.f32.gmra.mxu0 %v1359
    %v1513 = vpop.f32.mrf.mxu0
    %v1514 = vadd.f32 %v1430, %v1513
    %v1515 = vpop.f32.mrf.mxu0
    %v1516 = vadd.f32 %v1434, %v1515
    %1517 = vdwg.mxu0
    %1518 = vmatprep.subr.mxu0 %v1423
    %1519 = vmatpush1.msra.mxu0 %v1422
    %1520 = vmatprep.subr.mxu0 %v1419
    %1521 = vmatpush1.msra.mxu0 %v1418
    %1522 = vmatprep.subr.mxu0 %v1415
    %1523 = vmatpush1.msra.mxu0 %v1414
    %1524 = vmatprep.subr.mxu0 %v1411
    %1525 = vmatpush1.msra.mxu0 %v1410
    %1526 = vmatprep.subr.mxu0 %v1407
    %1527 = vmatpush1.msra.mxu0 %v1406
    %1528 = vmatprep.subr.mxu0 %v1403
    %1529 = vmatpush1.msra.mxu0 %v1402
    %1530 = vmatprep.subr.mxu0 %v1399
    %1531 = vmatpush1.msra.mxu0 %v1398
    %1532 = vmatprep.subr.mxu0 %v1395
    %1533 = vmatpush1.msra.mxu0 %v1394
    %1534 = vmatprep.subr.mxu0 %v1391
    %1535 = vmatpush1.msra.mxu0 %v1390
    %1536 = vmatprep.subr.mxu0 %v1387
    %1537 = vmatpush1.msra.mxu0 %v1386
    %1538 = vmatprep.subr.mxu0 %v1383
    %1539 = vmatpush1.msra.mxu0 %v1382
    %1540 = vmatprep.subr.mxu0 %v1379
    %1541 = vmatpush1.msra.mxu0 %v1378
    %1542 = vmatprep.subr.mxu0 %v1375
    %1543 = vmatpush1.msra.mxu0 %v1374
    %1544 = vmatprep.subr.mxu0 %v1371
    %1545 = vmatpush1.msra.mxu0 %v1370
    %1546 = vmatprep.subr.mxu0 %v1367
    %1547 = vmatpush1.msra.mxu0 %v1366
    %1548 = vmatprep.subr.mxu0 %v1363
    %1549 = vmatpush1.msra.mxu0 %v1362
    %1550 = vmatprep.subr.mxu0 0.0
    %1551 = vmatpush2.msra.mxu0 0.0
    %1552 = vmatprep.subr.mxu0 0.0
    %1553 = vmatpush2.msra.mxu0 0.0
    %1554 = vmatprep.subr.mxu0 0.0
    %1555 = vmatpush2.msra.mxu0 0.0
    %1556 = vmatprep.subr.mxu0 0.0
    %1557 = vmatpush2.msra.mxu0 0.0
    %1558 = vmatprep.subr.mxu0 0.0
    %1559 = vmatpush2.msra.mxu0 0.0
    %1560 = vmatprep.subr.mxu0 0.0
    %1561 = vmatpush2.msra.mxu0 0.0
    %1562 = vmatprep.subr.mxu0 0.0
    %1563 = vmatpush2.msra.mxu0 0.0
    %1564 = vmatprep.subr.mxu0 0.0
    %1565 = vmatpush2.msra.mxu0 0.0
    %1566 = vmatprep.subr.mxu0 0.0
    %1567 = vmatpush2.msra.mxu0 0.0
    %1568 = vmatprep.subr.mxu0 0.0
    %1569 = vmatpush2.msra.mxu0 0.0
    %1570 = vmatprep.subr.mxu0 0.0
    %1571 = vmatpush2.msra.mxu0 0.0
    %1572 = vmatprep.subr.mxu0 0.0
    %1573 = vmatpush2.msra.mxu0 0.0
    %1574 = vmatprep.subr.mxu0 0.0
    %1575 = vmatpush2.msra.mxu0 0.0
    %1576 = vmatprep.subr.mxu0 0.0
    %1577 = vmatpush2.msra.mxu0 0.0
    %1578 = vmatprep.subr.mxu0 0.0
    %1579 = vmatpush2.msra.mxu0 0.0
    %1580 = vmatprep.subr.mxu0 0.0
    %1581 = vmatpush2.msra.mxu0 0.0
    %1582 = vmatprep.mubr.f32.mxu0 0.0
    %1583 = vmatmul.mubr.f32.gmra.mxu0 %v1359
    %v1584 = vpop.f32.mrf.mxu0
    %v1585 = vadd.f32 %v1438, %v1584
    %v1586 = vpop.f32.mrf.mxu0
    %v1587 = vadd.f32 %v1442, %v1586
    %1588 = vdwg.mxu0
    %v1589 = vxor.u32 %v1514, 2147483648
    %v1590 = vmul.f32 %v1589, 1.442695
    %v1591 = vpow.pop %v1590
    %v1592 = vadd.f32 %v1591, 1.0
    %v1593 = vrcp.pop %v1592
    %v1594 = vmul.f32 1.0, %v1593
    %v1595 = vxor.u32 %v1516, 2147483648
    %v1596 = vmul.f32 %v1595, 1.442695
    %v1597 = vpow.pop %v1596
    %v1598 = vadd.f32 %v1597, 1.0
    %v1599 = vrcp.pop %v1598
    %v1600 = vmul.f32 1.0, %v1599
    %v1601 = vtanh.pop %v1585
    %v1602 = vxor.u32 %v1587, 2147483648
    %v1603 = vmul.f32 %v1602, 1.442695
    %v1604 = vpow.pop %v1603
    %v1605 = vadd.f32 %v1604, 1.0
    %v1606 = vrcp.pop %v1605
    %v1607 = vmul.f32 1.0, %v1606
    %v1608 = vld [vmem:[#allocation5] sm:$0x1]
    %v1609 = vmul.f32 %v1600, %v1608
    %v1610 = vmul.f32 %v1594, %v1601
    %v1611 = vadd.f32 %v1609, %v1610
    %v1612 = vtanh.pop %v1611
    %v1613 = vmul.f32 %v1607, %v1612
    %1614 = vst [vmem:[#allocation5] sm:$0x1] %v1611
    %1615 = vst [vmem:[#allocation4] sm:$0x1] %v1613
    %1616 = vst [vmem:[#allocation3 + $0x4] sm:$0x1] %v1613
    %v1617 = vld [vmem:[#allocation4] sm:$0x1]
    %v1618 = vld [vmem:[#allocation6] sm:$0xff]
    %v1619 = vld [vmem:[#allocation6 + $0x8] sm:$0xff]
    %v1620 = vld [vmem:[#allocation6 + $0x10] sm:$0xff]
    %v1621 = vld [vmem:[#allocation6 + $0x18] sm:$0xff]
    %v1622 = vld [vmem:[#allocation6 + $0x20] sm:$0xff]
    %v1623 = vld [vmem:[#allocation6 + $0x28] sm:$0xff]
    %v1624 = vld [vmem:[#allocation6 + $0x30] sm:$0xff]
    %v1625 = vld [vmem:[#allocation6 + $0x38] sm:$0xff]
    %v1626 = vld [vmem:[#allocation6 + $0x40] sm:$0xff]
    %v1627 = vld [vmem:[#allocation6 + $0x48] sm:$0xff]
    %v1628 = vld [vmem:[#allocation6 + $0x50] sm:$0xff]
    %v1629 = vld [vmem:[#allocation6 + $0x58] sm:$0xff]
    %v1630 = vld [vmem:[#allocation6 + $0x60] sm:$0xff]
    %v1631 = vld [vmem:[#allocation6 + $0x68] sm:$0xff]
    %v1632 = vld [vmem:[#allocation6 + $0x70] sm:$0xff]
    %v1633 = vld [vmem:[#allocation6 + $0x78] sm:$0xff]
    %v1634 = vld [vmem:[#allocation6 + $0x80] sm:$0xff]
    %v1635 = vld [vmem:[#allocation6 + $0x88] sm:$0xff]
    %v1636 = vld [vmem:[#allocation6 + $0x90] sm:$0xff]
    %v1637 = vld [vmem:[#allocation6 + $0x98] sm:$0xff]
    %v1638 = vld [vmem:[#allocation6 + $0xa0] sm:$0xff]
    %v1639 = vld [vmem:[#allocation6 + $0xa8] sm:$0xff]
    %v1640 = vld [vmem:[#allocation6 + $0xb0] sm:$0xff]
    %v1641 = vld [vmem:[#allocation6 + $0xb8] sm:$0xff]
    %v1642 = vld [vmem:[#allocation6 + $0xc0] sm:$0xff]
    %v1643 = vld [vmem:[#allocation6 + $0xc8] sm:$0xff]
    %v1644 = vld [vmem:[#allocation6 + $0xd0] sm:$0xff]
    %v1645 = vld [vmem:[#allocation6 + $0xd8] sm:$0xff]
    %v1646 = vld [vmem:[#allocation6 + $0xe0] sm:$0xff]
    %v1647 = vld [vmem:[#allocation6 + $0xe8] sm:$0xff]
    %v1648 = vld [vmem:[#allocation6 + $0xf0] sm:$0xff]
    %v1649 = vld [vmem:[#allocation6 + $0xf8] sm:$0xff]
    %v1650 = vld [vmem:[#allocation6 + $0x100] sm:$0xff]
    %v1651 = vld [vmem:[#allocation6 + $0x108] sm:$0xff]
    %v1652 = vld [vmem:[#allocation6 + $0x110] sm:$0xff]
    %v1653 = vld [vmem:[#allocation6 + $0x118] sm:$0xff]
    %v1654 = vld [vmem:[#allocation6 + $0x120] sm:$0xff]
    %v1655 = vld [vmem:[#allocation6 + $0x128] sm:$0xff]
    %v1656 = vld [vmem:[#allocation6 + $0x130] sm:$0xff]
    %v1657 = vld [vmem:[#allocation6 + $0x138] sm:$0xff]
    %v1658 = vld [vmem:[#allocation6 + $0x140] sm:$0xff]
    %v1659 = vld [vmem:[#allocation6 + $0x148] sm:$0xff]
    %v1660 = vld [vmem:[#allocation6 + $0x150] sm:$0xff]
    %v1661 = vld [vmem:[#allocation6 + $0x158] sm:$0xff]
    %v1662 = vld [vmem:[#allocation6 + $0x160] sm:$0xff]
    %v1663 = vld [vmem:[#allocation6 + $0x168] sm:$0xff]
    %v1664 = vld [vmem:[#allocation6 + $0x170] sm:$0xff]
    %v1665 = vld [vmem:[#allocation6 + $0x178] sm:$0xff]
    %v1666 = vld [vmem:[#allocation6 + $0x180] sm:$0xff]
    %v1667 = vld [vmem:[#allocation6 + $0x188] sm:$0xff]
    %v1668 = vld [vmem:[#allocation6 + $0x190] sm:$0xff]
    %v1669 = vld [vmem:[#allocation6 + $0x198] sm:$0xff]
    %v1670 = vld [vmem:[#allocation6 + $0x1a0] sm:$0xff]
    %v1671 = vld [vmem:[#allocation6 + $0x1a8] sm:$0xff]
    %v1672 = vld [vmem:[#allocation6 + $0x1b0] sm:$0xff]
    %v1673 = vld [vmem:[#allocation6 + $0x1b8] sm:$0xff]
    %v1674 = vld [vmem:[#allocation6 + $0x1c0] sm:$0xff]
    %v1675 = vld [vmem:[#allocation6 + $0x1c8] sm:$0xff]
    %v1676 = vld [vmem:[#allocation6 + $0x1d0] sm:$0xff]
    %v1677 = vld [vmem:[#allocation6 + $0x1d8] sm:$0xff]
    %v1678 = vld [vmem:[#allocation6 + $0x1e0] sm:$0xff]
    %v1679 = vld [vmem:[#allocation6 + $0x1e8] sm:$0xff]
    %v1680 = vld [vmem:[#allocation6 + $0x1f0] sm:$0xff]
    %v1681 = vld [vmem:[#allocation6 + $0x1f8] sm:$0xff]
    %s1682 = scalar_lea.vmem [#allocation2], 5
    %v1683 = vld [vmem:[%s1682] ss:$8 sm:$0xf]
    %v1685 = vlaneseq
    %v1686 = vshrl.u32 %v1685, 7
    %v1687 = vsub.s32 0, %v1686
    %v1688 = vrot.slane %v1683, %v1687
    %v1689 = vlaneseq
    %v1690 = vshrl.u32 %v1689, 7
    %v1691 = vsub.s32 1, %v1690
    %v1692 = vrot.slane %v1683, %v1691
    %v1693 = vlaneseq
    %v1694 = vshrl.u32 %v1693, 7
    %v1695 = vsub.s32 2, %v1694
    %v1696 = vrot.slane %v1683, %v1695
    %v1697 = vlaneseq
    %v1698 = vshrl.u32 %v1697, 7
    %v1699 = vsub.s32 3, %v1698
    %v1700 = vrot.slane %v1683, %v1699
    %1705 = vmatprep.subr.mxu0 %v1679
    %1706 = vmatpush1.msra.mxu0 %v1678
    %1707 = vmatprep.subr.mxu0 %v1675
    %1708 = vmatpush1.msra.mxu0 %v1674
    %1709 = vmatprep.subr.mxu0 %v1671
    %1710 = vmatpush1.msra.mxu0 %v1670
    %1711 = vmatprep.subr.mxu0 %v1667
    %1712 = vmatpush1.msra.mxu0 %v1666
    %1713 = vmatprep.subr.mxu0 %v1663
    %1714 = vmatpush1.msra.mxu0 %v1662
    %1715 = vmatprep.subr.mxu0 %v1659
    %1716 = vmatpush1.msra.mxu0 %v1658
    %1717 = vmatprep.subr.mxu0 %v1655
    %1718 = vmatpush1.msra.mxu0 %v1654
    %1719 = vmatprep.subr.mxu0 %v1651
    %1720 = vmatpush1.msra.mxu0 %v1650
    %1721 = vmatprep.subr.mxu0 %v1647
    %1722 = vmatpush1.msra.mxu0 %v1646
    %1723 = vmatprep.subr.mxu0 %v1643
    %1724 = vmatpush1.msra.mxu0 %v1642
    %1725 = vmatprep.subr.mxu0 %v1639
    %1726 = vmatpush1.msra.mxu0 %v1638
    %1727 = vmatprep.subr.mxu0 %v1635
    %1728 = vmatpush1.msra.mxu0 %v1634
    %1729 = vmatprep.subr.mxu0 %v1631
    %1730 = vmatpush1.msra.mxu0 %v1630
    %1731 = vmatprep.subr.mxu0 %v1627
    %1732 = vmatpush1.msra.mxu0 %v1626
    %1733 = vmatprep.subr.mxu0 %v1623
    %1734 = vmatpush1.msra.mxu0 %v1622
    %1735 = vmatprep.subr.mxu0 %v1619
    %1736 = vmatpush1.msra.mxu0 %v1618
    %1737 = vmatprep.subr.mxu0 0.0
    %1738 = vmatpush2.msra.mxu0 0.0
    %1739 = vmatprep.subr.mxu0 0.0
    %1740 = vmatpush2.msra.mxu0 0.0
    %1741 = vmatprep.subr.mxu0 0.0
    %1742 = vmatpush2.msra.mxu0 0.0
    %1743 = vmatprep.subr.mxu0 0.0
    %1744 = vmatpush2.msra.mxu0 0.0
    %1745 = vmatprep.subr.mxu0 0.0
    %1746 = vmatpush2.msra.mxu0 0.0
    %1747 = vmatprep.subr.mxu0 0.0
    %1748 = vmatpush2.msra.mxu0 0.0
    %1749 = vmatprep.subr.mxu0 0.0
    %1750 = vmatpush2.msra.mxu0 0.0
    %1751 = vmatprep.subr.mxu0 0.0
    %1752 = vmatpush2.msra.mxu0 0.0
    %1753 = vmatprep.subr.mxu0 0.0
    %1754 = vmatpush2.msra.mxu0 0.0
    %1755 = vmatprep.subr.mxu0 0.0
    %1756 = vmatpush2.msra.mxu0 0.0
    %1757 = vmatprep.subr.mxu0 0.0
    %1758 = vmatpush2.msra.mxu0 0.0
    %1759 = vmatprep.subr.mxu0 0.0
    %1760 = vmatpush2.msra.mxu0 0.0
    %1761 = vmatprep.subr.mxu0 0.0
    %1762 = vmatpush2.msra.mxu0 0.0
    %1763 = vmatprep.subr.mxu0 0.0
    %1764 = vmatpush2.msra.mxu0 0.0
    %1765 = vmatprep.subr.mxu0 0.0
    %1766 = vmatpush2.msra.mxu0 0.0
    %1767 = vmatprep.subr.mxu0 0.0
    %1768 = vmatpush2.msra.mxu0 0.0
    %1769 = vmatprep.mubr.f32.mxu0 0.0
    %1770 = vmatmul.mubr.f32.gmra.mxu0 %v1617
    %v1771 = vpop.f32.mrf.mxu0
    %v1772 = vadd.f32 %v1688, %v1771
    %v1773 = vpop.f32.mrf.mxu0
    %v1774 = vadd.f32 %v1692, %v1773
    %1775 = vdwg.mxu0
    %1776 = vmatprep.subr.mxu0 %v1681
    %1777 = vmatpush1.msra.mxu0 %v1680
    %1778 = vmatprep.subr.mxu0 %v1677
    %1779 = vmatpush1.msra.mxu0 %v1676
    %1780 = vmatprep.subr.mxu0 %v1673
    %1781 = vmatpush1.msra.mxu0 %v1672
    %1782 = vmatprep.subr.mxu0 %v1669
    %1783 = vmatpush1.msra.mxu0 %v1668
    %1784 = vmatprep.subr.mxu0 %v1665
    %1785 = vmatpush1.msra.mxu0 %v1664
    %1786 = vmatprep.subr.mxu0 %v1661
    %1787 = vmatpush1.msra.mxu0 %v1660
    %1788 = vmatprep.subr.mxu0 %v1657
    %1789 = vmatpush1.msra.mxu0 %v1656
    %1790 = vmatprep.subr.mxu0 %v1653
    %1791 = vmatpush1.msra.mxu0 %v1652
    %1792 = vmatprep.subr.mxu0 %v1649
    %1793 = vmatpush1.msra.mxu0 %v1648
    %1794 = vmatprep.subr.mxu0 %v1645
    %1795 = vmatpush1.msra.mxu0 %v1644
    %1796 = vmatprep.subr.mxu0 %v1641
    %1797 = vmatpush1.msra.mxu0 %v1640
    %1798 = vmatprep.subr.mxu0 %v1637
    %1799 = vmatpush1.msra.mxu0 %v1636
    %1800 = vmatprep.subr.mxu0 %v1633
    %1801 = vmatpush1.msra.mxu0 %v1632
    %1802 = vmatprep.subr.mxu0 %v1629
    %1803 = vmatpush1.msra.mxu0 %v1628
    %1804 = vmatprep.subr.mxu0 %v1625
    %1805 = vmatpush1.msra.mxu0 %v1624
    %1806 = vmatprep.subr.mxu0 %v1621
    %1807 = vmatpush1.msra.mxu0 %v1620
    %1808 = vmatprep.subr.mxu0 0.0
    %1809 = vmatpush2.msra.mxu0 0.0
    %1810 = vmatprep.subr.mxu0 0.0
    %1811 = vmatpush2.msra.mxu0 0.0
    %1812 = vmatprep.subr.mxu0 0.0
    %1813 = vmatpush2.msra.mxu0 0.0
    %1814 = vmatprep.subr.mxu0 0.0
    %1815 = vmatpush2.msra.mxu0 0.0
    %1816 = vmatprep.subr.mxu0 0.0
    %1817 = vmatpush2.msra.mxu0 0.0
    %1818 = vmatprep.subr.mxu0 0.0
    %1819 = vmatpush2.msra.mxu0 0.0
    %1820 = vmatprep.subr.mxu0 0.0
    %1821 = vmatpush2.msra.mxu0 0.0
    %1822 = vmatprep.subr.mxu0 0.0
    %1823 = vmatpush2.msra.mxu0 0.0
    %1824 = vmatprep.subr.mxu0 0.0
    %1825 = vmatpush2.msra.mxu0 0.0
    %1826 = vmatprep.subr.mxu0 0.0
    %1827 = vmatpush2.msra.mxu0 0.0
    %1828 = vmatprep.subr.mxu0 0.0
    %1829 = vmatpush2.msra.mxu0 0.0
    %1830 = vmatprep.subr.mxu0 0.0
    %1831 = vmatpush2.msra.mxu0 0.0
    %1832 = vmatprep.subr.mxu0 0.0
    %1833 = vmatpush2.msra.mxu0 0.0
    %1834 = vmatprep.subr.mxu0 0.0
    %1835 = vmatpush2.msra.mxu0 0.0
    %1836 = vmatprep.subr.mxu0 0.0
    %1837 = vmatpush2.msra.mxu0 0.0
    %1838 = vmatprep.subr.mxu0 0.0
    %1839 = vmatpush2.msra.mxu0 0.0
    %1840 = vmatprep.mubr.f32.mxu0 0.0
    %1841 = vmatmul.mubr.f32.gmra.mxu0 %v1617
    %v1842 = vpop.f32.mrf.mxu0
    %v1843 = vadd.f32 %v1696, %v1842
    %v1844 = vpop.f32.mrf.mxu0
    %v1845 = vadd.f32 %v1700, %v1844
    %1846 = vdwg.mxu0
    %v1847 = vxor.u32 %v1772, 2147483648
    %v1848 = vmul.f32 %v1847, 1.442695
    %v1849 = vpow.pop %v1848
    %v1850 = vadd.f32 %v1849, 1.0
    %v1851 = vrcp.pop %v1850
    %v1852 = vmul.f32 1.0, %v1851
    %v1853 = vxor.u32 %v1774, 2147483648
    %v1854 = vmul.f32 %v1853, 1.442695
    %v1855 = vpow.pop %v1854
    %v1856 = vadd.f32 %v1855, 1.0
    %v1857 = vrcp.pop %v1856
    %v1858 = vmul.f32 1.0, %v1857
    %v1859 = vtanh.pop %v1843
    %v1860 = vxor.u32 %v1845, 2147483648
    %v1861 = vmul.f32 %v1860, 1.442695
    %v1862 = vpow.pop %v1861
    %v1863 = vadd.f32 %v1862, 1.0
    %v1864 = vrcp.pop %v1863
    %v1865 = vmul.f32 1.0, %v1864
    %v1866 = vld [vmem:[#allocation5] sm:$0x1]
    %v1867 = vmul.f32 %v1858, %v1866
    %v1868 = vmul.f32 %v1852, %v1859
    %v1869 = vadd.f32 %v1867, %v1868
    %v1870 = vtanh.pop %v1869
    %v1871 = vmul.f32 %v1865, %v1870
    %1872 = vst [vmem:[#allocation5] sm:$0x1] %v1869
    %1873 = vst [vmem:[#allocation4] sm:$0x1] %v1871
    %1874 = vst [vmem:[#allocation3 + $0x5] sm:$0x1] %v1871
    %v1875 = vld [vmem:[#allocation4] sm:$0x1]
    %v1876 = vld [vmem:[#allocation6] sm:$0xff]
    %v1877 = vld [vmem:[#allocation6 + $0x8] sm:$0xff]
    %v1878 = vld [vmem:[#allocation6 + $0x10] sm:$0xff]
    %v1879 = vld [vmem:[#allocation6 + $0x18] sm:$0xff]
    %v1880 = vld [vmem:[#allocation6 + $0x20] sm:$0xff]
    %v1881 = vld [vmem:[#allocation6 + $0x28] sm:$0xff]
    %v1882 = vld [vmem:[#allocation6 + $0x30] sm:$0xff]
    %v1883 = vld [vmem:[#allocation6 + $0x38] sm:$0xff]
    %v1884 = vld [vmem:[#allocation6 + $0x40] sm:$0xff]
    %v1885 = vld [vmem:[#allocation6 + $0x48] sm:$0xff]
    %v1886 = vld [vmem:[#allocation6 + $0x50] sm:$0xff]
    %v1887 = vld [vmem:[#allocation6 + $0x58] sm:$0xff]
    %v1888 = vld [vmem:[#allocation6 + $0x60] sm:$0xff]
    %v1889 = vld [vmem:[#allocation6 + $0x68] sm:$0xff]
    %v1890 = vld [vmem:[#allocation6 + $0x70] sm:$0xff]
    %v1891 = vld [vmem:[#allocation6 + $0x78] sm:$0xff]
    %v1892 = vld [vmem:[#allocation6 + $0x80] sm:$0xff]
    %v1893 = vld [vmem:[#allocation6 + $0x88] sm:$0xff]
    %v1894 = vld [vmem:[#allocation6 + $0x90] sm:$0xff]
    %v1895 = vld [vmem:[#allocation6 + $0x98] sm:$0xff]
    %v1896 = vld [vmem:[#allocation6 + $0xa0] sm:$0xff]
    %v1897 = vld [vmem:[#allocation6 + $0xa8] sm:$0xff]
    %v1898 = vld [vmem:[#allocation6 + $0xb0] sm:$0xff]
    %v1899 = vld [vmem:[#allocation6 + $0xb8] sm:$0xff]
    %v1900 = vld [vmem:[#allocation6 + $0xc0] sm:$0xff]
    %v1901 = vld [vmem:[#allocation6 + $0xc8] sm:$0xff]
    %v1902 = vld [vmem:[#allocation6 + $0xd0] sm:$0xff]
    %v1903 = vld [vmem:[#allocation6 + $0xd8] sm:$0xff]
    %v1904 = vld [vmem:[#allocation6 + $0xe0] sm:$0xff]
    %v1905 = vld [vmem:[#allocation6 + $0xe8] sm:$0xff]
    %v1906 = vld [vmem:[#allocation6 + $0xf0] sm:$0xff]
    %v1907 = vld [vmem:[#allocation6 + $0xf8] sm:$0xff]
    %v1908 = vld [vmem:[#allocation6 + $0x100] sm:$0xff]
    %v1909 = vld [vmem:[#allocation6 + $0x108] sm:$0xff]
    %v1910 = vld [vmem:[#allocation6 + $0x110] sm:$0xff]
    %v1911 = vld [vmem:[#allocation6 + $0x118] sm:$0xff]
    %v1912 = vld [vmem:[#allocation6 + $0x120] sm:$0xff]
    %v1913 = vld [vmem:[#allocation6 + $0x128] sm:$0xff]
    %v1914 = vld [vmem:[#allocation6 + $0x130] sm:$0xff]
    %v1915 = vld [vmem:[#allocation6 + $0x138] sm:$0xff]
    %v1916 = vld [vmem:[#allocation6 + $0x140] sm:$0xff]
    %v1917 = vld [vmem:[#allocation6 + $0x148] sm:$0xff]
    %v1918 = vld [vmem:[#allocation6 + $0x150] sm:$0xff]
    %v1919 = vld [vmem:[#allocation6 + $0x158] sm:$0xff]
    %v1920 = vld [vmem:[#allocation6 + $0x160] sm:$0xff]
    %v1921 = vld [vmem:[#allocation6 + $0x168] sm:$0xff]
    %v1922 = vld [vmem:[#allocation6 + $0x170] sm:$0xff]
    %v1923 = vld [vmem:[#allocation6 + $0x178] sm:$0xff]
    %v1924 = vld [vmem:[#allocation6 + $0x180] sm:$0xff]
    %v1925 = vld [vmem:[#allocation6 + $0x188] sm:$0xff]
    %v1926 = vld [vmem:[#allocation6 + $0x190] sm:$0xff]
    %v1927 = vld [vmem:[#allocation6 + $0x198] sm:$0xff]
    %v1928 = vld [vmem:[#allocation6 + $0x1a0] sm:$0xff]
    %v1929 = vld [vmem:[#allocation6 + $0x1a8] sm:$0xff]
    %v1930 = vld [vmem:[#allocation6 + $0x1b0] sm:$0xff]
    %v1931 = vld [vmem:[#allocation6 + $0x1b8] sm:$0xff]
    %v1932 = vld [vmem:[#allocation6 + $0x1c0] sm:$0xff]
    %v1933 = vld [vmem:[#allocation6 + $0x1c8] sm:$0xff]
    %v1934 = vld [vmem:[#allocation6 + $0x1d0] sm:$0xff]
    %v1935 = vld [vmem:[#allocation6 + $0x1d8] sm:$0xff]
    %v1936 = vld [vmem:[#allocation6 + $0x1e0] sm:$0xff]
    %v1937 = vld [vmem:[#allocation6 + $0x1e8] sm:$0xff]
    %v1938 = vld [vmem:[#allocation6 + $0x1f0] sm:$0xff]
    %v1939 = vld [vmem:[#allocation6 + $0x1f8] sm:$0xff]
    %s1940 = scalar_lea.vmem [#allocation2], 6
    %v1941 = vld [vmem:[%s1940] ss:$8 sm:$0xf]
    %v1943 = vlaneseq
    %v1944 = vshrl.u32 %v1943, 7
    %v1945 = vsub.s32 0, %v1944
    %v1946 = vrot.slane %v1941, %v1945
    %v1947 = vlaneseq
    %v1948 = vshrl.u32 %v1947, 7
    %v1949 = vsub.s32 1, %v1948
    %v1950 = vrot.slane %v1941, %v1949
    %v1951 = vlaneseq
    %v1952 = vshrl.u32 %v1951, 7
    %v1953 = vsub.s32 2, %v1952
    %v1954 = vrot.slane %v1941, %v1953
    %v1955 = vlaneseq
    %v1956 = vshrl.u32 %v1955, 7
    %v1957 = vsub.s32 3, %v1956
    %v1958 = vrot.slane %v1941, %v1957
    %1963 = vmatprep.subr.mxu0 %v1937
    %1964 = vmatpush1.msra.mxu0 %v1936
    %1965 = vmatprep.subr.mxu0 %v1933
    %1966 = vmatpush1.msra.mxu0 %v1932
    %1967 = vmatprep.subr.mxu0 %v1929
    %1968 = vmatpush1.msra.mxu0 %v1928
    %1969 = vmatprep.subr.mxu0 %v1925
    %1970 = vmatpush1.msra.mxu0 %v1924
    %1971 = vmatprep.subr.mxu0 %v1921
    %1972 = vmatpush1.msra.mxu0 %v1920
    %1973 = vmatprep.subr.mxu0 %v1917
    %1974 = vmatpush1.msra.mxu0 %v1916
    %1975 = vmatprep.subr.mxu0 %v1913
    %1976 = vmatpush1.msra.mxu0 %v1912
    %1977 = vmatprep.subr.mxu0 %v1909
    %1978 = vmatpush1.msra.mxu0 %v1908
    %1979 = vmatprep.subr.mxu0 %v1905
    %1980 = vmatpush1.msra.mxu0 %v1904
    %1981 = vmatprep.subr.mxu0 %v1901
    %1982 = vmatpush1.msra.mxu0 %v1900
    %1983 = vmatprep.subr.mxu0 %v1897
    %1984 = vmatpush1.msra.mxu0 %v1896
    %1985 = vmatprep.subr.mxu0 %v1893
    %1986 = vmatpush1.msra.mxu0 %v1892
    %1987 = vmatprep.subr.mxu0 %v1889
    %1988 = vmatpush1.msra.mxu0 %v1888
    %1989 = vmatprep.subr.mxu0 %v1885
    %1990 = vmatpush1.msra.mxu0 %v1884
    %1991 = vmatprep.subr.mxu0 %v1881
    %1992 = vmatpush1.msra.mxu0 %v1880
    %1993 = vmatprep.subr.mxu0 %v1877
    %1994 = vmatpush1.msra.mxu0 %v1876
    %1995 = vmatprep.subr.mxu0 0.0
    %1996 = vmatpush2.msra.mxu0 0.0
    %1997 = vmatprep.subr.mxu0 0.0
    %1998 = vmatpush2.msra.mxu0 0.0
    %1999 = vmatprep.subr.mxu0 0.0
    %2000 = vmatpush2.msra.mxu0 0.0
    %2001 = vmatprep.subr.mxu0 0.0
    %2002 = vmatpush2.msra.mxu0 0.0
    %2003 = vmatprep.subr.mxu0 0.0
    %2004 = vmatpush2.msra.mxu0 0.0
    %2005 = vmatprep.subr.mxu0 0.0
    %2006 = vmatpush2.msra.mxu0 0.0
    %2007 = vmatprep.subr.mxu0 0.0
    %2008 = vmatpush2.msra.mxu0 0.0
    %2009 = vmatprep.subr.mxu0 0.0
    %2010 = vmatpush2.msra.mxu0 0.0
    %2011 = vmatprep.subr.mxu0 0.0
    %2012 = vmatpush2.msra.mxu0 0.0
    %2013 = vmatprep.subr.mxu0 0.0
    %2014 = vmatpush2.msra.mxu0 0.0
    %2015 = vmatprep.subr.mxu0 0.0
    %2016 = vmatpush2.msra.mxu0 0.0
    %2017 = vmatprep.subr.mxu0 0.0
    %2018 = vmatpush2.msra.mxu0 0.0
    %2019 = vmatprep.subr.mxu0 0.0
    %2020 = vmatpush2.msra.mxu0 0.0
    %2021 = vmatprep.subr.mxu0 0.0
    %2022 = vmatpush2.msra.mxu0 0.0
    %2023 = vmatprep.subr.mxu0 0.0
    %2024 = vmatpush2.msra.mxu0 0.0
    %2025 = vmatprep.subr.mxu0 0.0
    %2026 = vmatpush2.msra.mxu0 0.0
    %2027 = vmatprep.mubr.f32.mxu0 0.0
    %2028 = vmatmul.mubr.f32.gmra.mxu0 %v1875
    %v2029 = vpop.f32.mrf.mxu0
    %v2030 = vadd.f32 %v1946, %v2029
    %v2031 = vpop.f32.mrf.mxu0
    %v2032 = vadd.f32 %v1950, %v2031
    %2033 = vdwg.mxu0
    %2034 = vmatprep.subr.mxu0 %v1939
    %2035 = vmatpush1.msra.mxu0 %v1938
    %2036 = vmatprep.subr.mxu0 %v1935
    %2037 = vmatpush1.msra.mxu0 %v1934
    %2038 = vmatprep.subr.mxu0 %v1931
    %2039 = vmatpush1.msra.mxu0 %v1930
    %2040 = vmatprep.subr.mxu0 %v1927
    %2041 = vmatpush1.msra.mxu0 %v1926
    %2042 = vmatprep.subr.mxu0 %v1923
    %2043 = vmatpush1.msra.mxu0 %v1922
    %2044 = vmatprep.subr.mxu0 %v1919
    %2045 = vmatpush1.msra.mxu0 %v1918
    %2046 = vmatprep.subr.mxu0 %v1915
    %2047 = vmatpush1.msra.mxu0 %v1914
    %2048 = vmatprep.subr.mxu0 %v1911
    %2049 = vmatpush1.msra.mxu0 %v1910
    %2050 = vmatprep.subr.mxu0 %v1907
    %2051 = vmatpush1.msra.mxu0 %v1906
    %2052 = vmatprep.subr.mxu0 %v1903
    %2053 = vmatpush1.msra.mxu0 %v1902
    %2054 = vmatprep.subr.mxu0 %v1899
    %2055 = vmatpush1.msra.mxu0 %v1898
    %2056 = vmatprep.subr.mxu0 %v1895
    %2057 = vmatpush1.msra.mxu0 %v1894
    %2058 = vmatprep.subr.mxu0 %v1891
    %2059 = vmatpush1.msra.mxu0 %v1890
    %2060 = vmatprep.subr.mxu0 %v1887
    %2061 = vmatpush1.msra.mxu0 %v1886
    %2062 = vmatprep.subr.mxu0 %v1883
    %2063 = vmatpush1.msra.mxu0 %v1882
    %2064 = vmatprep.subr.mxu0 %v1879
    %2065 = vmatpush1.msra.mxu0 %v1878
    %2066 = vmatprep.subr.mxu0 0.0
    %2067 = vmatpush2.msra.mxu0 0.0
    %2068 = vmatprep.subr.mxu0 0.0
    %2069 = vmatpush2.msra.mxu0 0.0
    %2070 = vmatprep.subr.mxu0 0.0
    %2071 = vmatpush2.msra.mxu0 0.0
    %2072 = vmatprep.subr.mxu0 0.0
    %2073 = vmatpush2.msra.mxu0 0.0
    %2074 = vmatprep.subr.mxu0 0.0
    %2075 = vmatpush2.msra.mxu0 0.0
    %2076 = vmatprep.subr.mxu0 0.0
    %2077 = vmatpush2.msra.mxu0 0.0
    %2078 = vmatprep.subr.mxu0 0.0
    %2079 = vmatpush2.msra.mxu0 0.0
    %2080 = vmatprep.subr.mxu0 0.0
    %2081 = vmatpush2.msra.mxu0 0.0
    %2082 = vmatprep.subr.mxu0 0.0
    %2083 = vmatpush2.msra.mxu0 0.0
    %2084 = vmatprep.subr.mxu0 0.0
    %2085 = vmatpush2.msra.mxu0 0.0
    %2086 = vmatprep.subr.mxu0 0.0
    %2087 = vmatpush2.msra.mxu0 0.0
    %2088 = vmatprep.subr.mxu0 0.0
    %2089 = vmatpush2.msra.mxu0 0.0
    %2090 = vmatprep.subr.mxu0 0.0
    %2091 = vmatpush2.msra.mxu0 0.0
    %2092 = vmatprep.subr.mxu0 0.0
    %2093 = vmatpush2.msra.mxu0 0.0
    %2094 = vmatprep.subr.mxu0 0.0
    %2095 = vmatpush2.msra.mxu0 0.0
    %2096 = vmatprep.subr.mxu0 0.0
    %2097 = vmatpush2.msra.mxu0 0.0
    %2098 = vmatprep.mubr.f32.mxu0 0.0
    %2099 = vmatmul.mubr.f32.gmra.mxu0 %v1875
    %v2100 = vpop.f32.mrf.mxu0
    %v2101 = vadd.f32 %v1954, %v2100
    %v2102 = vpop.f32.mrf.mxu0
    %v2103 = vadd.f32 %v1958, %v2102
    %2104 = vdwg.mxu0
    %v2105 = vxor.u32 %v2030, 2147483648
    %v2106 = vmul.f32 %v2105, 1.442695
    %v2107 = vpow.pop %v2106
    %v2108 = vadd.f32 %v2107, 1.0
    %v2109 = vrcp.pop %v2108
    %v2110 = vmul.f32 1.0, %v2109
    %v2111 = vxor.u32 %v2032, 2147483648
    %v2112 = vmul.f32 %v2111, 1.442695
    %v2113 = vpow.pop %v2112
    %v2114 = vadd.f32 %v2113, 1.0
    %v2115 = vrcp.pop %v2114
    %v2116 = vmul.f32 1.0, %v2115
    %v2117 = vtanh.pop %v2101
    %v2118 = vxor.u32 %v2103, 2147483648
    %v2119 = vmul.f32 %v2118, 1.442695
    %v2120 = vpow.pop %v2119
    %v2121 = vadd.f32 %v2120, 1.0
    %v2122 = vrcp.pop %v2121
    %v2123 = vmul.f32 1.0, %v2122
    %v2124 = vld [vmem:[#allocation5] sm:$0x1]
    %v2125 = vmul.f32 %v2116, %v2124
    %v2126 = vmul.f32 %v2110, %v2117
    %v2127 = vadd.f32 %v2125, %v2126
    %v2128 = vtanh.pop %v2127
    %v2129 = vmul.f32 %v2123, %v2128
    %2130 = vst [vmem:[#allocation5] sm:$0x1] %v2127
    %2131 = vst [vmem:[#allocation4] sm:$0x1] %v2129
    %2132 = vst [vmem:[#allocation3 + $0x6] sm:$0x1] %v2129
    %v2133 = vld [vmem:[#allocation4] sm:$0x1]
    %v2134 = vld [vmem:[#allocation6] sm:$0xff]
    %v2135 = vld [vmem:[#allocation6 + $0x8] sm:$0xff]
    %v2136 = vld [vmem:[#allocation6 + $0x10] sm:$0xff]
    %v2137 = vld [vmem:[#allocation6 + $0x18] sm:$0xff]
    %v2138 = vld [vmem:[#allocation6 + $0x20] sm:$0xff]
    %v2139 = vld [vmem:[#allocation6 + $0x28] sm:$0xff]
    %v2140 = vld [vmem:[#allocation6 + $0x30] sm:$0xff]
    %v2141 = vld [vmem:[#allocation6 + $0x38] sm:$0xff]
    %v2142 = vld [vmem:[#allocation6 + $0x40] sm:$0xff]
    %v2143 = vld [vmem:[#allocation6 + $0x48] sm:$0xff]
    %v2144 = vld [vmem:[#allocation6 + $0x50] sm:$0xff]
    %v2145 = vld [vmem:[#allocation6 + $0x58] sm:$0xff]
    %v2146 = vld [vmem:[#allocation6 + $0x60] sm:$0xff]
    %v2147 = vld [vmem:[#allocation6 + $0x68] sm:$0xff]
    %v2148 = vld [vmem:[#allocation6 + $0x70] sm:$0xff]
    %v2149 = vld [vmem:[#allocation6 + $0x78] sm:$0xff]
    %v2150 = vld [vmem:[#allocation6 + $0x80] sm:$0xff]
    %v2151 = vld [vmem:[#allocation6 + $0x88] sm:$0xff]
    %v2152 = vld [vmem:[#allocation6 + $0x90] sm:$0xff]
    %v2153 = vld [vmem:[#allocation6 + $0x98] sm:$0xff]
    %v2154 = vld [vmem:[#allocation6 + $0xa0] sm:$0xff]
    %v2155 = vld [vmem:[#allocation6 + $0xa8] sm:$0xff]
    %v2156 = vld [vmem:[#allocation6 + $0xb0] sm:$0xff]
    %v2157 = vld [vmem:[#allocation6 + $0xb8] sm:$0xff]
    %v2158 = vld [vmem:[#allocation6 + $0xc0] sm:$0xff]
    %v2159 = vld [vmem:[#allocation6 + $0xc8] sm:$0xff]
    %v2160 = vld [vmem:[#allocation6 + $0xd0] sm:$0xff]
    %v2161 = vld [vmem:[#allocation6 + $0xd8] sm:$0xff]
    %v2162 = vld [vmem:[#allocation6 + $0xe0] sm:$0xff]
    %v2163 = vld [vmem:[#allocation6 + $0xe8] sm:$0xff]
    %v2164 = vld [vmem:[#allocation6 + $0xf0] sm:$0xff]
    %v2165 = vld [vmem:[#allocation6 + $0xf8] sm:$0xff]
    %v2166 = vld [vmem:[#allocation6 + $0x100] sm:$0xff]
    %v2167 = vld [vmem:[#allocation6 + $0x108] sm:$0xff]
    %v2168 = vld [vmem:[#allocation6 + $0x110] sm:$0xff]
    %v2169 = vld [vmem:[#allocation6 + $0x118] sm:$0xff]
    %v2170 = vld [vmem:[#allocation6 + $0x120] sm:$0xff]
    %v2171 = vld [vmem:[#allocation6 + $0x128] sm:$0xff]
    %v2172 = vld [vmem:[#allocation6 + $0x130] sm:$0xff]
    %v2173 = vld [vmem:[#allocation6 + $0x138] sm:$0xff]
    %v2174 = vld [vmem:[#allocation6 + $0x140] sm:$0xff]
    %v2175 = vld [vmem:[#allocation6 + $0x148] sm:$0xff]
    %v2176 = vld [vmem:[#allocation6 + $0x150] sm:$0xff]
    %v2177 = vld [vmem:[#allocation6 + $0x158] sm:$0xff]
    %v2178 = vld [vmem:[#allocation6 + $0x160] sm:$0xff]
    %v2179 = vld [vmem:[#allocation6 + $0x168] sm:$0xff]
    %v2180 = vld [vmem:[#allocation6 + $0x170] sm:$0xff]
    %v2181 = vld [vmem:[#allocation6 + $0x178] sm:$0xff]
    %v2182 = vld [vmem:[#allocation6 + $0x180] sm:$0xff]
    %v2183 = vld [vmem:[#allocation6 + $0x188] sm:$0xff]
    %v2184 = vld [vmem:[#allocation6 + $0x190] sm:$0xff]
    %v2185 = vld [vmem:[#allocation6 + $0x198] sm:$0xff]
    %v2186 = vld [vmem:[#allocation6 + $0x1a0] sm:$0xff]
    %v2187 = vld [vmem:[#allocation6 + $0x1a8] sm:$0xff]
    %v2188 = vld [vmem:[#allocation6 + $0x1b0] sm:$0xff]
    %v2189 = vld [vmem:[#allocation6 + $0x1b8] sm:$0xff]
    %v2190 = vld [vmem:[#allocation6 + $0x1c0] sm:$0xff]
    %v2191 = vld [vmem:[#allocation6 + $0x1c8] sm:$0xff]
    %v2192 = vld [vmem:[#allocation6 + $0x1d0] sm:$0xff]
    %v2193 = vld [vmem:[#allocation6 + $0x1d8] sm:$0xff]
    %v2194 = vld [vmem:[#allocation6 + $0x1e0] sm:$0xff]
    %v2195 = vld [vmem:[#allocation6 + $0x1e8] sm:$0xff]
    %v2196 = vld [vmem:[#allocation6 + $0x1f0] sm:$0xff]
    %v2197 = vld [vmem:[#allocation6 + $0x1f8] sm:$0xff]
    %s2198 = scalar_lea.vmem [#allocation2], 7
    %v2199 = vld [vmem:[%s2198] ss:$8 sm:$0xf]
    %v2201 = vlaneseq
    %v2202 = vshrl.u32 %v2201, 7
    %v2203 = vsub.s32 0, %v2202
    %v2204 = vrot.slane %v2199, %v2203
    %v2205 = vlaneseq
    %v2206 = vshrl.u32 %v2205, 7
    %v2207 = vsub.s32 1, %v2206
    %v2208 = vrot.slane %v2199, %v2207
    %v2209 = vlaneseq
    %v2210 = vshrl.u32 %v2209, 7
    %v2211 = vsub.s32 2, %v2210
    %v2212 = vrot.slane %v2199, %v2211
    %v2213 = vlaneseq
    %v2214 = vshrl.u32 %v2213, 7
    %v2215 = vsub.s32 3, %v2214
    %v2216 = vrot.slane %v2199, %v2215
    %2221 = vmatprep.subr.mxu0 %v2195
    %2222 = vmatpush1.msra.mxu0 %v2194
    %2223 = vmatprep.subr.mxu0 %v2191
    %2224 = vmatpush1.msra.mxu0 %v2190
    %2225 = vmatprep.subr.mxu0 %v2187
    %2226 = vmatpush1.msra.mxu0 %v2186
    %2227 = vmatprep.subr.mxu0 %v2183
    %2228 = vmatpush1.msra.mxu0 %v2182
    %2229 = vmatprep.subr.mxu0 %v2179
    %2230 = vmatpush1.msra.mxu0 %v2178
    %2231 = vmatprep.subr.mxu0 %v2175
    %2232 = vmatpush1.msra.mxu0 %v2174
    %2233 = vmatprep.subr.mxu0 %v2171
    %2234 = vmatpush1.msra.mxu0 %v2170
    %2235 = vmatprep.subr.mxu0 %v2167
    %2236 = vmatpush1.msra.mxu0 %v2166
    %2237 = vmatprep.subr.mxu0 %v2163
    %2238 = vmatpush1.msra.mxu0 %v2162
    %2239 = vmatprep.subr.mxu0 %v2159
    %2240 = vmatpush1.msra.mxu0 %v2158
    %2241 = vmatprep.subr.mxu0 %v2155
    %2242 = vmatpush1.msra.mxu0 %v2154
    %2243 = vmatprep.subr.mxu0 %v2151
    %2244 = vmatpush1.msra.mxu0 %v2150
    %2245 = vmatprep.subr.mxu0 %v2147
    %2246 = vmatpush1.msra.mxu0 %v2146
    %2247 = vmatprep.subr.mxu0 %v2143
    %2248 = vmatpush1.msra.mxu0 %v2142
    %2249 = vmatprep.subr.mxu0 %v2139
    %2250 = vmatpush1.msra.mxu0 %v2138
    %2251 = vmatprep.subr.mxu0 %v2135
    %2252 = vmatpush1.msra.mxu0 %v2134
    %2253 = vmatprep.subr.mxu0 0.0
    %2254 = vmatpush2.msra.mxu0 0.0
    %2255 = vmatprep.subr.mxu0 0.0
    %2256 = vmatpush2.msra.mxu0 0.0
    %2257 = vmatprep.subr.mxu0 0.0
    %2258 = vmatpush2.msra.mxu0 0.0
    %2259 = vmatprep.subr.mxu0 0.0
    %2260 = vmatpush2.msra.mxu0 0.0
    %2261 = vmatprep.subr.mxu0 0.0
    %2262 = vmatpush2.msra.mxu0 0.0
    %2263 = vmatprep.subr.mxu0 0.0
    %2264 = vmatpush2.msra.mxu0 0.0
    %2265 = vmatprep.subr.mxu0 0.0
    %2266 = vmatpush2.msra.mxu0 0.0
    %2267 = vmatprep.subr.mxu0 0.0
    %2268 = vmatpush2.msra.mxu0 0.0
    %2269 = vmatprep.subr.mxu0 0.0
    %2270 = vmatpush2.msra.mxu0 0.0
    %2271 = vmatprep.subr.mxu0 0.0
    %2272 = vmatpush2.msra.mxu0 0.0
    %2273 = vmatprep.subr.mxu0 0.0
    %2274 = vmatpush2.msra.mxu0 0.0
    %2275 = vmatprep.subr.mxu0 0.0
    %2276 = vmatpush2.msra.mxu0 0.0
    %2277 = vmatprep.subr.mxu0 0.0
    %2278 = vmatpush2.msra.mxu0 0.0
    %2279 = vmatprep.subr.mxu0 0.0
    %2280 = vmatpush2.msra.mxu0 0.0
    %2281 = vmatprep.subr.mxu0 0.0
    %2282 = vmatpush2.msra.mxu0 0.0
    %2283 = vmatprep.subr.mxu0 0.0
    %2284 = vmatpush2.msra.mxu0 0.0
    %2285 = vmatprep.mubr.f32.mxu0 0.0
    %2286 = vmatmul.mubr.f32.gmra.mxu0 %v2133
    %v2287 = vpop.f32.mrf.mxu0
    %v2288 = vadd.f32 %v2204, %v2287
    %v2289 = vpop.f32.mrf.mxu0
    %v2290 = vadd.f32 %v2208, %v2289
    %2291 = vdwg.mxu0
    %2292 = vmatprep.subr.mxu0 %v2197
    %2293 = vmatpush1.msra.mxu0 %v2196
    %2294 = vmatprep.subr.mxu0 %v2193
    %2295 = vmatpush1.msra.mxu0 %v2192
    %2296 = vmatprep.subr.mxu0 %v2189
    %2297 = vmatpush1.msra.mxu0 %v2188
    %2298 = vmatprep.subr.mxu0 %v2185
    %2299 = vmatpush1.msra.mxu0 %v2184
    %2300 = vmatprep.subr.mxu0 %v2181
    %2301 = vmatpush1.msra.mxu0 %v2180
    %2302 = vmatprep.subr.mxu0 %v2177
    %2303 = vmatpush1.msra.mxu0 %v2176
    %2304 = vmatprep.subr.mxu0 %v2173
    %2305 = vmatpush1.msra.mxu0 %v2172
    %2306 = vmatprep.subr.mxu0 %v2169
    %2307 = vmatpush1.msra.mxu0 %v2168
    %2308 = vmatprep.subr.mxu0 %v2165
    %2309 = vmatpush1.msra.mxu0 %v2164
    %2310 = vmatprep.subr.mxu0 %v2161
    %2311 = vmatpush1.msra.mxu0 %v2160
    %2312 = vmatprep.subr.mxu0 %v2157
    %2313 = vmatpush1.msra.mxu0 %v2156
    %2314 = vmatprep.subr.mxu0 %v2153
    %2315 = vmatpush1.msra.mxu0 %v2152
    %2316 = vmatprep.subr.mxu0 %v2149
    %2317 = vmatpush1.msra.mxu0 %v2148
    %2318 = vmatprep.subr.mxu0 %v2145
    %2319 = vmatpush1.msra.mxu0 %v2144
    %2320 = vmatprep.subr.mxu0 %v2141
    %2321 = vmatpush1.msra.mxu0 %v2140
    %2322 = vmatprep.subr.mxu0 %v2137
    %2323 = vmatpush1.msra.mxu0 %v2136
    %2324 = vmatprep.subr.mxu0 0.0
    %2325 = vmatpush2.msra.mxu0 0.0
    %2326 = vmatprep.subr.mxu0 0.0
    %2327 = vmatpush2.msra.mxu0 0.0
    %2328 = vmatprep.subr.mxu0 0.0
    %2329 = vmatpush2.msra.mxu0 0.0
    %2330 = vmatprep.subr.mxu0 0.0
    %2331 = vmatpush2.msra.mxu0 0.0
    %2332 = vmatprep.subr.mxu0 0.0
    %2333 = vmatpush2.msra.mxu0 0.0
    %2334 = vmatprep.subr.mxu0 0.0
    %2335 = vmatpush2.msra.mxu0 0.0
    %2336 = vmatprep.subr.mxu0 0.0
    %2337 = vmatpush2.msra.mxu0 0.0
    %2338 = vmatprep.subr.mxu0 0.0
    %2339 = vmatpush2.msra.mxu0 0.0
    %2340 = vmatprep.subr.mxu0 0.0
    %2341 = vmatpush2.msra.mxu0 0.0
    %2342 = vmatprep.subr.mxu0 0.0
    %2343 = vmatpush2.msra.mxu0 0.0
    %2344 = vmatprep.subr.mxu0 0.0
    %2345 = vmatpush2.msra.mxu0 0.0
    %2346 = vmatprep.subr.mxu0 0.0
    %2347 = vmatpush2.msra.mxu0 0.0
    %2348 = vmatprep.subr.mxu0 0.0
    %2349 = vmatpush2.msra.mxu0 0.0
    %2350 = vmatprep.subr.mxu0 0.0
    %2351 = vmatpush2.msra.mxu0 0.0
    %2352 = vmatprep.subr.mxu0 0.0
    %2353 = vmatpush2.msra.mxu0 0.0
    %2354 = vmatprep.subr.mxu0 0.0
    %2355 = vmatpush2.msra.mxu0 0.0
    %2356 = vmatprep.mubr.f32.mxu0 0.0
    %2357 = vmatmul.mubr.f32.gmra.mxu0 %v2133
    %v2358 = vpop.f32.mrf.mxu0
    %v2359 = vadd.f32 %v2212, %v2358
    %v2360 = vpop.f32.mrf.mxu0
    %v2361 = vadd.f32 %v2216, %v2360
    %2362 = vdwg.mxu0
    %v2363 = vxor.u32 %v2288, 2147483648
    %v2364 = vmul.f32 %v2363, 1.442695
    %v2365 = vpow.pop %v2364
    %v2366 = vadd.f32 %v2365, 1.0
    %v2367 = vrcp.pop %v2366
    %v2368 = vmul.f32 1.0, %v2367
    %v2369 = vxor.u32 %v2290, 2147483648
    %v2370 = vmul.f32 %v2369, 1.442695
    %v2371 = vpow.pop %v2370
    %v2372 = vadd.f32 %v2371, 1.0
    %v2373 = vrcp.pop %v2372
    %v2374 = vmul.f32 1.0, %v2373
    %v2375 = vtanh.pop %v2359
    %v2376 = vxor.u32 %v2361, 2147483648
    %v2377 = vmul.f32 %v2376, 1.442695
    %v2378 = vpow.pop %v2377
    %v2379 = vadd.f32 %v2378, 1.0
    %v2380 = vrcp.pop %v2379
    %v2381 = vmul.f32 1.0, %v2380
    %v2382 = vld [vmem:[#allocation5] sm:$0x1]
    %v2383 = vmul.f32 %v2374, %v2382
    %v2384 = vmul.f32 %v2368, %v2375
    %v2385 = vadd.f32 %v2383, %v2384
    %v2386 = vtanh.pop %v2385
    %v2387 = vmul.f32 %v2381, %v2386
    %2388 = vst [vmem:[#allocation5] sm:$0x1] %v2385
    %2389 = vst [vmem:[#allocation4] sm:$0x1] %v2387
    %2390 = vst [vmem:[#allocation3 + $0x7] sm:$0x1] %v2387
    %v2391 = vld [vmem:[#allocation3] sm:$0xff]
    %v2392 = vld [vmem:[%s5] sm:$0xff]
    %v2393 = vld [vmem:[%s5 + $0x8] sm:$0xff]
    %v2394 = vld [vmem:[%s5 + $0x10] sm:$0xff]
    %v2395 = vld [vmem:[%s5 + $0x18] sm:$0xff]
    %v2396 = vld [vmem:[%s5 + $0x20] sm:$0xff]
    %v2397 = vld [vmem:[%s5 + $0x28] sm:$0xff]
    %v2398 = vld [vmem:[%s5 + $0x30] sm:$0xff]
    %v2399 = vld [vmem:[%s5 + $0x38] sm:$0xff]
    %v2400 = vld [vmem:[%s5 + $0x40] sm:$0xff]
    %v2401 = vld [vmem:[%s5 + $0x48] sm:$0xff]
    %v2402 = vld [vmem:[%s5 + $0x50] sm:$0xff]
    %v2403 = vld [vmem:[%s5 + $0x58] sm:$0xff]
    %v2404 = vld [vmem:[%s5 + $0x60] sm:$0xff]
    %v2405 = vld [vmem:[%s5 + $0x68] sm:$0xff]
    %v2406 = vld [vmem:[%s5 + $0x70] sm:$0xff]
    %v2407 = vld [vmem:[%s5 + $0x78] sm:$0xff]
    %v2408 = vld [vmem:[%s6] sm:$0x1]
    %v2410 = vlaneseq
    %v2411 = vshrl.u32 %v2410, 7
    %v2412 = vsub.s32 0, %v2411
    %v2413 = vrot.slane %v2408, %v2412
    %2415 = vmatprep.subr.mxu0 0.0
    %2416 = vmatpush1.msra.mxu0 %v2407
    %2417 = vmatprep.subr.mxu0 0.0
    %2418 = vmatpush1.msra.mxu0 %v2406
    %2419 = vmatprep.subr.mxu0 0.0
    %2420 = vmatpush1.msra.mxu0 %v2405
    %2421 = vmatprep.subr.mxu0 0.0
    %2422 = vmatpush1.msra.mxu0 %v2404
    %2423 = vmatprep.subr.mxu0 0.0
    %2424 = vmatpush1.msra.mxu0 %v2403
    %2425 = vmatprep.subr.mxu0 0.0
    %2426 = vmatpush1.msra.mxu0 %v2402
    %2427 = vmatprep.subr.mxu0 0.0
    %2428 = vmatpush1.msra.mxu0 %v2401
    %2429 = vmatprep.subr.mxu0 0.0
    %2430 = vmatpush1.msra.mxu0 %v2400
    %2431 = vmatprep.subr.mxu0 0.0
    %2432 = vmatpush1.msra.mxu0 %v2399
    %2433 = vmatprep.subr.mxu0 0.0
    %2434 = vmatpush1.msra.mxu0 %v2398
    %2435 = vmatprep.subr.mxu0 0.0
    %2436 = vmatpush1.msra.mxu0 %v2397
    %2437 = vmatprep.subr.mxu0 0.0
    %2438 = vmatpush1.msra.mxu0 %v2396
    %2439 = vmatprep.subr.mxu0 0.0
    %2440 = vmatpush1.msra.mxu0 %v2395
    %2441 = vmatprep.subr.mxu0 0.0
    %2442 = vmatpush1.msra.mxu0 %v2394
    %2443 = vmatprep.subr.mxu0 0.0
    %2444 = vmatpush1.msra.mxu0 %v2393
    %2445 = vmatprep.subr.mxu0 0.0
    %2446 = vmatpush1.msra.mxu0 %v2392
    %2447 = vmatprep.subr.mxu0 0.0
    %2448 = vmatpush2.msra.mxu0 0.0
    %2449 = vmatprep.subr.mxu0 0.0
    %2450 = vmatpush2.msra.mxu0 0.0
    %2451 = vmatprep.subr.mxu0 0.0
    %2452 = vmatpush2.msra.mxu0 0.0
    %2453 = vmatprep.subr.mxu0 0.0
    %2454 = vmatpush2.msra.mxu0 0.0
    %2455 = vmatprep.subr.mxu0 0.0
    %2456 = vmatpush2.msra.mxu0 0.0
    %2457 = vmatprep.subr.mxu0 0.0
    %2458 = vmatpush2.msra.mxu0 0.0
    %2459 = vmatprep.subr.mxu0 0.0
    %2460 = vmatpush2.msra.mxu0 0.0
    %2461 = vmatprep.subr.mxu0 0.0
    %2462 = vmatpush2.msra.mxu0 0.0
    %2463 = vmatprep.subr.mxu0 0.0
    %2464 = vmatpush2.msra.mxu0 0.0
    %2465 = vmatprep.subr.mxu0 0.0
    %2466 = vmatpush2.msra.mxu0 0.0
    %2467 = vmatprep.subr.mxu0 0.0
    %2468 = vmatpush2.msra.mxu0 0.0
    %2469 = vmatprep.subr.mxu0 0.0
    %2470 = vmatpush2.msra.mxu0 0.0
    %2471 = vmatprep.subr.mxu0 0.0
    %2472 = vmatpush2.msra.mxu0 0.0
    %2473 = vmatprep.subr.mxu0 0.0
    %2474 = vmatpush2.msra.mxu0 0.0
    %2475 = vmatprep.subr.mxu0 0.0
    %2476 = vmatpush2.msra.mxu0 0.0
    %2477 = vmatprep.subr.mxu0 0.0
    %2478 = vmatpush2.msra.mxu0 0.0
    %2479 = vmatprep.mubr.f32.mxu0 0.0
    %2480 = vmatmul.mubr.f32.gmra.mxu0 %v2391
    %v2481 = vpop.f32.mrf.mxu0
    %v2482 = vadd.f32 %v2413, %v2481
    %v2483 = vpop.f32.mrf.mxu0
    %2484 = vdwg.mxu0
    %vm2485 = vcmask 64512
    %v2486 = vsel %vm2485, %v2482, -inf
    %2487 = vmax.xlane.f32.xlu0 %v2486
    %v2488 = vpop.xlane.xlu0 %2487
    %v2489 = vsub.f32 %v2482, %v2488
    %v2490 = vmul.f32 %v2489, 1.442695
    %v2491 = vpow.pop %v2490
    %v2492 = vsel %vm2485, %v2491, 0.0
    %2493 = vadd.xlane.f32.xlu0 %v2492
    %v2494 = vpop.xlane.xlu0 %2493
    %v2495 = vlog2.pop %v2494
    %v2496 = vmul.f32 %v2495, 0.6931472
    %v2497 = vsub.f32 %v2489, %v2496
    %2498 = vst.msk [vmem:[#allocation11] sm:$0xff] %vm2485, %v2497
    // Predicated region
    $region38: #{tpu_custom_call.1} parent=1 // pred_check
      _
    $region39: #{tpu_custom_call.1} parent=1 // pred_check_branch
      %2500 = sbr.rel (0) target = $region41
    $region40: #{tpu_custom_call.1} parent=1 // pred_region
      %s2502 = ssub.s32 128, 128
      %2503 = vsyncadd [#allocation8], %s2502
      %s2505 = sshll.u32 [#allocation11], 4
      %s2506 = int_to_ptr.vmem [resolvable:$true] %s2505
      %2508 = dma.vmem_to_hbm [thread:$0]  %s2506, 128, %s7, [#allocation8]
    $region41: #{tpu_custom_call.1} parent=1 // pred_fallthru
      _
    // Predicated region
    $region42: #{tpu_custom_call.1} parent=1 // pred_check
      _
    $region43: #{tpu_custom_call.1} parent=1 // pred_check_branch
      %2510 = sbr.rel (0) target = $region45
    $region44: #{tpu_custom_call.1} parent=1 // pred_region
      %2511 = dma.done [#allocation8], 128
    $region45: #{tpu_custom_call.1} parent=1 // pred_fallthru
      _
    %2512 = vsyncpa [#allocation7], 1
    %2513 = vsyncpa [#allocation10], 1
    %2514 = vsyncpa [#allocation8], 1

</llo_original>
